<compile_context>
chip_gen: v5e
topology: v5e:2x2
jax: 0.10.0
libtpu: 0.0.40
codegen_flags: <defaults>
</compile_context>

<pallas_src>
import jax
import jax.numpy as jnp
from jax import lax
from jax.experimental import pallas as pl
from jax.experimental.pallas import tpu as pltpu

# ----------------------------- configuration --------------------------------
B = 2               # batch
L = 50              # trm_max_len (pos_emb rows)
LP = 64             # L padded to a multiple of 8 (sublane alignment)
H = 32              # trm_hidden_dim
NH = 2              # trm_num_heads
NB = 2              # trm_num_blocks
NUM_ITEMS = 100
VOCAB = NUM_ITEMS + 2
VP = 128            # vocab padded to a lane-dense multiple of 128
PAD = VOCAB - 1     # nn.Embedding(padding_idx=-1) -> index VOCAB - 1
HD = H // NH
EPS = 1e-8
SCALE = 1.0 / float(HD) ** 0.5
WCOLS = 8 * H       # 256-lane packed weight slab: [Wq|Wk|Wv|Wo|W1|W2|pad]
NVROWS = 10         # vector slab rows: ln1_g, ln1_b, bq, bk, bv, bo, ln2_g, ln2_b, b1, b2
OUT_SUB = 8         # sublane padding for the per-batch logits block


# ----------------------------- small helpers --------------------------------
def _layernorm(x, g, b):
    mu = jnp.mean(x, axis=-1, keepdims=True)
    var = jnp.mean((x - mu) ** 2, axis=-1, keepdims=True)
    return (x - mu) * lax.rsqrt(var + EPS) * g + b


def _mm(a_bf, b_bf):
    # bf16 MXU operands, f32 accumulation (operands already bf16).
    return jnp.dot(a_bf, b_bf, preferred_element_type=jnp.float32)


def _mm_nt(a_bf, b_bf):
    # a @ b.T without materializing the transpose.
    return lax.dot_general(a_bf, b_bf,
                           dimension_numbers=(((1,), (1,)), ((), ())),
                           preferred_element_type=jnp.float32)


# ----------------------------- fused kernel ---------------------------------
def sasrec_fused_kernel(length_ref,                       # SMEM (B,) scalar prefetch
                        seqs_ref, tmask_ref,              # per-batch (LP, H) blocks
                        wslab_ref, vslab_ref,             # packed params (resident)
                        lnf_ref, embT_ref,
                        out_ref):
    b = pl.program_id(0)
    x = seqs_ref[...]                                     # (LP, H) f32
    tm = tmask_ref[...]                                   # (LP, H) f32 (pre-broadcast)

    # causal mask, built ONCE for all blocks / heads
    row = lax.broadcasted_iota(jnp.int32, (LP, LP), 0)
    col = lax.broadcasted_iota(jnp.int32, (LP, LP), 1)
    neg = jnp.where(col > row, jnp.float32(-1e9), jnp.float32(0.0))

    for blk in range(NB):                                 # NB static -> unrolled
        w = wslab_ref[blk]                                # (H, 8H) bf16 packed weights
        v = vslab_ref[blk]                                # (NVROWS, H) f32 biases / LN
        wq = w[:, 0 * H:1 * H]
        wkv = w[:, 1 * H:3 * H]                           # fused [Wk | Wv] -> (H, 2H)
        wo = w[:, 3 * H:4 * H]
        w1 = w[:, 4 * H:5 * H]
        w2 = w[:, 5 * H:6 * H]
        ln1_g, ln1_b = v[0:1], v[1:2]
        bq, bk, bv, bo = v[2:3], v[3:4], v[4:5], v[5:6]
        ln2_g, ln2_b = v[6:7], v[7:8]
        b1, b2 = v[8:9], v[9:10]

        # Q from attention_layernorm(seqs); K, V from raw seqs (SASRec quirk)
        q_in = _layernorm(x, ln1_g, ln1_b)                # (LP, H) f32
        x_bf = x.astype(jnp.bfloat16)
        q_bf = (_mm(q_in.astype(jnp.bfloat16), wq) + bq).astype(jnp.bfloat16)
        kv = _mm(x_bf, wkv)                               # (LP, 2H) f32 — one matmul for K & V
        k_bf = (kv[:, :H] + bk).astype(jnp.bfloat16)
        v_bf = (kv[:, H:] + bv).astype(jnp.bfloat16)

        # multi-head causal attention; head outputs stay in registers
        heads = []
        for hh in range(NH):                              # tiny & static -> unrolled
            c0 = hh * HD
            qh = q_bf[:, c0:c0 + HD]
            kh = k_bf[:, c0:c0 + HD]
            vh = v_bf[:, c0:c0 + HD]
            s = _mm_nt(qh, kh) * SCALE + neg              # (LP, LP) f32
            s = s - jnp.max(s, axis=-1, keepdims=True)
            p = jnp.exp(s)
            p = p / jnp.sum(p, axis=-1, keepdims=True)    # exact divide
            heads.append(_mm(p.astype(jnp.bfloat16), vh))
        att = jnp.concatenate(heads, axis=-1).astype(jnp.bfloat16)   # (LP, H)

        mha = _mm(att, wo) + bo
        res = q_in + mha                                  # residual against layernormed Q

        # forward layernorm + PointWiseFeedForward (residual inside the FFN)
        y = _layernorm(res, ln2_g, ln2_b)
        y_bf = y.astype(jnp.bfloat16)
        h1 = jnp.maximum(_mm(y_bf, w1) + b1, 0.0)
        ff = _mm(h1.astype(jnp.bfloat16), w2) + b2 + y

        x = ff * tm                                       # seqs *= ~timeline_mask

    # ---- head: gather last valid position, last_layernorm, all_predict -----
    idx = length_ref[b]                                   # scalar from SMEM
    rows = lax.broadcasted_iota(jnp.int32, (LP, H), 0)
    feat = jnp.sum(jnp.where(rows == idx, x, 0.0), axis=0, keepdims=True)   # (1, H)

    lnf = lnf_ref[...]
    feat_ln = _layernorm(feat, lnf[0:1], lnf[1:2])        # (1, H)
    feat8 = jnp.broadcast_to(feat_ln, (OUT_SUB, H))
    # final prediction matmul kept in f32 (ranking fidelity over 102 logits)
    out_ref[...] = jnp.dot(feat8, embT_ref[...], preferred_element_type=jnp.float32)


def _make_fused_call():
    def fixed(shape):
        nd = len(shape)
        return pl.BlockSpec(shape, lambda b, lens, _nd=nd: (0,) * _nd)

    in_specs = [
        pl.BlockSpec((None, LP, H), lambda b, lens: (b, 0, 0)),   # seqs, per-batch block
        pl.BlockSpec((None, LP, H), lambda b, lens: (b, 0, 0)),   # timeline mask, per-batch
        fixed((NB, H, WCOLS)),                                    # packed weights (bf16)
        fixed((NB, NVROWS, H)),                                   # packed biases + LN params
        fixed((2, H)),                                            # last_layernorm gamma/beta
        fixed((H, VP)),                                           # item_emb^T (f32, 128 lanes)
    ]
    return pl.pallas_call(
        sasrec_fused_kernel,
        out_shape=jax.ShapeDtypeStruct((B, OUT_SUB, VP), jnp.float32),
        grid_spec=pltpu.PrefetchScalarGridSpec(
            num_scalar_prefetch=1,
            grid=(B,),
            in_specs=in_specs,
            out_specs=pl.BlockSpec((None, OUT_SUB, VP), lambda b, lens: (b, 0, 0)),
        ),
        compiler_params=pltpu.CompilerParams(dimension_semantics=("parallel",)),
    )


_fused_call = _make_fused_call()


# ----------------------------- params ---------------------------------------
def init_params(key):
    def nrm(k, shape, std=0.02):
        return jax.random.normal(k, shape, jnp.float32) * std

    keys = jax.random.split(key, 2 + NB * 6)
    item_emb = nrm(keys[0], (VOCAB, H)).at[PAD].set(0.0)   # padding_idx row is zero
    pos_emb = nrm(keys[1], (L, H))

    # packed per-block weight slab (input-major W so the kernel computes x @ W)
    wslab = jnp.zeros((NB, H, WCOLS), jnp.float32)
    for i in range(NB):
        ks = keys[2 + i * 6: 2 + (i + 1) * 6]
        mats = [nrm(ks[j], (H, H)) for j in range(6)]      # Wq, Wk, Wv, Wo, W1, W2
        for j, m in enumerate(mats):
            wslab = wslab.at[i, :, j * H:(j + 1) * H].set(m)
    wslab = wslab.astype(jnp.bfloat16)                     # pre-cast once on host

    # packed per-block vector slab: ln1_g, ln1_b, bq, bk, bv, bo, ln2_g, ln2_b, b1, b2
    vslab = jnp.zeros((NB, NVROWS, H), jnp.float32)
    vslab = vslab.at[:, 0, :].set(1.0)                     # ln1 gamma
    vslab = vslab.at[:, 6, :].set(1.0)                     # ln2 gamma
    # biases / LN betas stay zero (PyTorch-style defaults)

    lnf = jnp.concatenate([jnp.ones((1, H), jnp.float32),
                           jnp.zeros((1, H), jnp.float32)], axis=0)

    # item_emb^T padded to 128 lane-dense columns, built ONCE outside the jit
    emb_t_pad = jnp.zeros((H, VP), jnp.float32).at[:, :VOCAB].set(item_emb.T)

    return dict(item_emb=item_emb, pos_emb=pos_emb, wslab=wslab, vslab=vslab,
                lnf=lnf, emb_t_pad=emb_t_pad)


# ----------------------------- forward wrapper -------------------------------
@jax.jit
def sasrec_forward(x_ids, length, item_emb, pos_emb, wslab, vslab, lnf, emb_t_pad):
    # log2feats glue (tiny XLA ops): embedding lookup, scale, positions, padding mask
    seqs = jnp.take(item_emb, x_ids, axis=0) * (float(H) ** 0.5)    # (B, L, H)
    seqs = seqs + pos_emb[None, :, :]
    # TODO(synk): emb_dropout / attention / FFN dropout are identity (eval mode).
    tmask = (x_ids != PAD).astype(jnp.float32)[..., None]           # (B, L, 1)
    seqs = seqs * tmask
    # pad the sequence axis to LP (multiple of 8); padded rows stay zero & masked,
    # and are inert under the causal mask.
    seqs = jnp.pad(seqs, ((0, 0), (0, LP - L), (0, 0)))
    tmask_b = jnp.pad(jnp.broadcast_to(tmask, (B, L, H)),           # pre-broadcast once
                      ((0, 0), (0, LP - L), (0, 0)))

    logits_pad = _fused_call(
        length.reshape(-1).astype(jnp.int32),                       # scalar prefetch
        seqs, tmask_b, wslab, vslab, lnf, emb_t_pad)
    return logits_pad[:, 0, :VOCAB]                                 # drop sublane/lane padding


# ----------------------------- demo ------------------------------------------
if __name__ == "__main__":
    key = jax.random.PRNGKey(0)
    pkey, xkey = jax.random.split(key)
    params = init_params(pkey)

    # deterministic example input: right-padded item-id sequences + lengths
    valid_lens = [30, 45]
    x = jax.random.randint(xkey, (B, L), 0, NUM_ITEMS + 1, dtype=jnp.int32)
    pos = jnp.arange(L)[None, :]
    lens = jnp.array(valid_lens, jnp.int32)[:, None]
    x = jnp.where(pos < lens, x, PAD)                               # pad the tail
    length = (lens - 1).astype(jnp.int32)                           # (B, 1) last valid index

    logits = sasrec_forward(x, length,
                            params["item_emb"], params["pos_emb"],
                            params["wslab"], params["vslab"],
                            params["lnf"], params["emb_t_pad"])
    jax.block_until_ready(logits)
    assert logits.shape == (B, VOCAB)
    print("KERNEL_OK")
</pallas_src>

<mosaic_0001>
module attributes {stable_mosaic.version = 11 : i64} {
  func.func @sasrec_fused_kernel(%arg0: i32, %arg1: memref<2xi32, #tpu.memory_space<smem>>, %arg2: memref<1x64x32xf32, #tpu.memory_space<vmem>>, %arg3: memref<1x64x32xf32, #tpu.memory_space<vmem>>, %arg4: memref<2x32x256xbf16, #tpu.memory_space<vmem>>, %arg5: memref<2x10x32xf32, #tpu.memory_space<vmem>>, %arg6: memref<2x32xf32, #tpu.memory_space<vmem>>, %arg7: memref<32x128xf32, #tpu.memory_space<vmem>>, %arg8: memref<1x8x128xf32, #tpu.memory_space<vmem>>) attributes {dimension_semantics = [#tpu.dimension_semantics<parallel>], iteration_bounds = array<i64: 2>, scalar_prefetch = 1 : i64, scratch_operands = 0 : i64, tpu.core_type = #tpu.core_type<tc>, window_params = [{transform_indices = @transform_0, window_bounds = array<i64: 1, 64, 32>}, {transform_indices = @transform_1, window_bounds = array<i64: 1, 64, 32>}, {pipeline_mode = #tpu.pipeline_mode<synchronous>, transform_indices = @transform_2, window_bounds = array<i64: 2, 32, 256>}, {pipeline_mode = #tpu.pipeline_mode<synchronous>, transform_indices = @transform_3, window_bounds = array<i64: 2, 10, 32>}, {pipeline_mode = #tpu.pipeline_mode<synchronous>, transform_indices = @transform_4, window_bounds = array<i64: 2, 32>}, {pipeline_mode = #tpu.pipeline_mode<synchronous>, transform_indices = @transform_5, window_bounds = array<i64: 32, 128>}, {transform_indices = @transform_6, window_bounds = array<i64: 1, 8, 128>}]} {
    %c0 = arith.constant 0 : index
    %c0_0 = arith.constant 0 : index
    %c0_1 = arith.constant 0 : index
    %0 = vector.load %arg2[%c0, %c0_0, %c0_1] : memref<1x64x32xf32, #tpu.memory_space<vmem>>, vector<1x64x32xf32>
    %1 = vector.shape_cast %0 : vector<1x64x32xf32> to vector<64x32xf32>
    %c0_2 = arith.constant 0 : index
    %c0_3 = arith.constant 0 : index
    %c0_4 = arith.constant 0 : index
    %2 = vector.load %arg3[%c0_2, %c0_3, %c0_4] : memref<1x64x32xf32, #tpu.memory_space<vmem>>, vector<1x64x32xf32>
    %3 = vector.shape_cast %2 : vector<1x64x32xf32> to vector<64x32xf32>
    %4 = tpu.iota {dimensions = array<i32: 0>} : vector<64x64xi32>
    %5 = tpu.iota {dimensions = array<i32: 1>} : vector<64x64xi32>
    %6 = arith.cmpi sgt, %5, %4 : vector<64x64xi32>
    %cst = arith.constant -1.000000e+09 : f32
    %cst_5 = arith.constant 0.000000e+00 : f32
    %7 = vector.broadcast %cst : f32 to vector<64x64xf32>
    %8 = vector.broadcast %cst_5 : f32 to vector<64x64xf32>
    %9 = arith.select %6, %7, %8 : vector<64x64xi1>, vector<64x64xf32>
    %c0_6 = arith.constant 0 : index
    %c0_7 = arith.constant 0 : index
    %c0_8 = arith.constant 0 : index
    %10 = vector.load %arg4[%c0_6, %c0_7, %c0_8] : memref<2x32x256xbf16, #tpu.memory_space<vmem>>, vector<1x32x256xbf16>
    %11 = vector.shape_cast %10 : vector<1x32x256xbf16> to vector<32x256xbf16>
    %c0_9 = arith.constant 0 : index
    %c0_10 = arith.constant 0 : index
    %c0_11 = arith.constant 0 : index
    %12 = vector.load %arg5[%c0_9, %c0_10, %c0_11] : memref<2x10x32xf32, #tpu.memory_space<vmem>>, vector<1x10x32xf32>
    %13 = vector.shape_cast %12 : vector<1x10x32xf32> to vector<10x32xf32>
    %14 = vector.extract_strided_slice %11 {offsets = [0, 0], sizes = [32, 32], strides = [1, 1]} : vector<32x256xbf16> to vector<32x32xbf16>
    %15 = vector.extract_strided_slice %11 {offsets = [0, 32], sizes = [32, 64], strides = [1, 1]} : vector<32x256xbf16> to vector<32x64xbf16>
    %16 = vector.extract_strided_slice %11 {offsets = [0, 96], sizes = [32, 32], strides = [1, 1]} : vector<32x256xbf16> to vector<32x32xbf16>
    %17 = vector.extract_strided_slice %11 {offsets = [0, 128], sizes = [32, 32], strides = [1, 1]} : vector<32x256xbf16> to vector<32x32xbf16>
    %18 = vector.extract_strided_slice %11 {offsets = [0, 160], sizes = [32, 32], strides = [1, 1]} : vector<32x256xbf16> to vector<32x32xbf16>
    %19 = vector.extract_strided_slice %13 {offsets = [0, 0], sizes = [1, 32], strides = [1, 1]} : vector<10x32xf32> to vector<1x32xf32>
    %20 = vector.extract_strided_slice %13 {offsets = [1, 0], sizes = [1, 32], strides = [1, 1]} : vector<10x32xf32> to vector<1x32xf32>
    %21 = vector.extract_strided_slice %13 {offsets = [2, 0], sizes = [1, 32], strides = [1, 1]} : vector<10x32xf32> to vector<1x32xf32>
    %22 = vector.extract_strided_slice %13 {offsets = [3, 0], sizes = [1, 32], strides = [1, 1]} : vector<10x32xf32> to vector<1x32xf32>
    %23 = vector.extract_strided_slice %13 {offsets = [4, 0], sizes = [1, 32], strides = [1, 1]} : vector<10x32xf32> to vector<1x32xf32>
    %24 = vector.extract_strided_slice %13 {offsets = [5, 0], sizes = [1, 32], strides = [1, 1]} : vector<10x32xf32> to vector<1x32xf32>
    %25 = vector.extract_strided_slice %13 {offsets = [6, 0], sizes = [1, 32], strides = [1, 1]} : vector<10x32xf32> to vector<1x32xf32>
    %26 = vector.extract_strided_slice %13 {offsets = [7, 0], sizes = [1, 32], strides = [1, 1]} : vector<10x32xf32> to vector<1x32xf32>
    %27 = vector.extract_strided_slice %13 {offsets = [8, 0], sizes = [1, 32], strides = [1, 1]} : vector<10x32xf32> to vector<1x32xf32>
    %28 = vector.extract_strided_slice %13 {offsets = [9, 0], sizes = [1, 32], strides = [1, 1]} : vector<10x32xf32> to vector<1x32xf32>
    %cst_12 = arith.constant dense<0.000000e+00> : vector<64xf32>
    %29 = vector.multi_reduction <add>, %1, %cst_12 [1] : vector<64x32xf32> to vector<64xf32>
    %30 = vector.shape_cast %29 : vector<64xf32> to vector<64x1xf32>
    %cst_13 = arith.constant 3.200000e+01 : f32
    %31 = vector.broadcast %cst_13 : f32 to vector<64x1xf32>
    %32 = arith.divf %30, %31 : vector<64x1xf32>
    %33 = vector.broadcast %32 : vector<64x1xf32> to vector<64x32xf32>
    %34 = arith.subf %1, %33 : vector<64x32xf32>
    %35 = arith.mulf %34, %34 : vector<64x32xf32>
    %cst_14 = arith.constant dense<0.000000e+00> : vector<64xf32>
    %36 = vector.multi_reduction <add>, %35, %cst_14 [1] : vector<64x32xf32> to vector<64xf32>
    %37 = vector.shape_cast %36 : vector<64xf32> to vector<64x1xf32>
    %cst_15 = arith.constant 3.200000e+01 : f32
    %38 = vector.broadcast %cst_15 : f32 to vector<64x1xf32>
    %39 = arith.divf %37, %38 : vector<64x1xf32>
    %40 = vector.broadcast %32 : vector<64x1xf32> to vector<64x32xf32>
    %41 = arith.subf %1, %40 : vector<64x32xf32>
    %cst_16 = arith.constant 9.99999993E-9 : f32
    %42 = vector.broadcast %cst_16 : f32 to vector<64x1xf32>
    %43 = arith.addf %39, %42 : vector<64x1xf32>
    %44 = math.rsqrt %43 : vector<64x1xf32>
    %45 = vector.broadcast %44 : vector<64x1xf32> to vector<64x32xf32>
    %46 = arith.mulf %41, %45 : vector<64x32xf32>
    %47 = vector.broadcast %19 : vector<1x32xf32> to vector<64x32xf32>
    %48 = arith.mulf %46, %47 : vector<64x32xf32>
    %49 = vector.broadcast %20 : vector<1x32xf32> to vector<64x32xf32>
    %50 = arith.addf %48, %49 : vector<64x32xf32>
    %51 = arith.truncf %1 : vector<64x32xf32> to vector<64x32xbf16>
    %52 = arith.truncf %50 : vector<64x32xf32> to vector<64x32xbf16>
    %cst_17 = arith.constant dense<0.000000e+00> : vector<64x32xf32>
    %53 = tpu.matmul %52, %14, %cst_17 {dimension_numbers = #tpu.dot_dimension_numbers<[1], [0], [0], [1], [0, 0, 1, 1], [], []>} : vector<64x32xbf16>, vector<32x32xbf16>, vector<64x32xf32> -> vector<64x32xf32>
    %54 = vector.broadcast %21 : vector<1x32xf32> to vector<64x32xf32>
    %55 = arith.addf %53, %54 : vector<64x32xf32>
    %56 = arith.truncf %55 : vector<64x32xf32> to vector<64x32xbf16>
    %cst_18 = arith.constant dense<0.000000e+00> : vector<64x64xf32>
    %57 = tpu.matmul %51, %15, %cst_18 {dimension_numbers = #tpu.dot_dimension_numbers<[1], [0], [0], [1], [0, 0, 1, 1], [], []>} : vector<64x32xbf16>, vector<32x64xbf16>, vector<64x64xf32> -> vector<64x64xf32>
    %58 = vector.extract_strided_slice %57 {offsets = [0, 0], sizes = [64, 32], strides = [1, 1]} : vector<64x64xf32> to vector<64x32xf32>
    %59 = vector.broadcast %22 : vector<1x32xf32> to vector<64x32xf32>
    %60 = arith.addf %58, %59 : vector<64x32xf32>
    %61 = arith.truncf %60 : vector<64x32xf32> to vector<64x32xbf16>
    %62 = vector.extract_strided_slice %57 {offsets = [0, 32], sizes = [64, 32], strides = [1, 1]} : vector<64x64xf32> to vector<64x32xf32>
    %63 = vector.broadcast %23 : vector<1x32xf32> to vector<64x32xf32>
    %64 = arith.addf %62, %63 : vector<64x32xf32>
    %65 = arith.truncf %64 : vector<64x32xf32> to vector<64x32xbf16>
    %66 = vector.extract_strided_slice %56 {offsets = [0, 0], sizes = [64, 16], strides = [1, 1]} : vector<64x32xbf16> to vector<64x16xbf16>
    %67 = vector.extract_strided_slice %61 {offsets = [0, 0], sizes = [64, 16], strides = [1, 1]} : vector<64x32xbf16> to vector<64x16xbf16>
    %68 = vector.extract_strided_slice %65 {offsets = [0, 0], sizes = [64, 16], strides = [1, 1]} : vector<64x32xbf16> to vector<64x16xbf16>
    %cst_19 = arith.constant dense<0.000000e+00> : vector<64x64xf32>
    %69 = tpu.matmul %66, %67, %cst_19 {dimension_numbers = #tpu.dot_dimension_numbers<[1], [1], [0], [0], [0, 0, 1, 0], [], []>} : vector<64x16xbf16>, vector<64x16xbf16>, vector<64x64xf32> -> vector<64x64xf32>
    %cst_20 = arith.constant 2.500000e-01 : f32
    %70 = vector.broadcast %cst_20 : f32 to vector<64x64xf32>
    %71 = arith.mulf %69, %70 : vector<64x64xf32>
    %72 = arith.addf %71, %9 : vector<64x64xf32>
    %cst_21 = arith.constant dense<0xFF800000> : vector<64xf32>
    %73 = vector.multi_reduction <maximumf>, %72, %cst_21 [1] : vector<64x64xf32> to vector<64xf32>
    %74 = vector.shape_cast %73 : vector<64xf32> to vector<64x1xf32>
    %75 = vector.broadcast %74 : vector<64x1xf32> to vector<64x64xf32>
    %76 = arith.subf %72, %75 : vector<64x64xf32>
    %77 = math.exp %76 : vector<64x64xf32>
    %cst_22 = arith.constant dense<0.000000e+00> : vector<64xf32>
    %78 = vector.multi_reduction <add>, %77, %cst_22 [1] : vector<64x64xf32> to vector<64xf32>
    %79 = vector.shape_cast %78 : vector<64xf32> to vector<64x1xf32>
    %80 = vector.broadcast %79 : vector<64x1xf32> to vector<64x64xf32>
    %81 = arith.divf %77, %80 : vector<64x64xf32>
    %82 = arith.truncf %81 : vector<64x64xf32> to vector<64x64xbf16>
    %cst_23 = arith.constant dense<0.000000e+00> : vector<64x16xf32>
    %83 = tpu.matmul %82, %68, %cst_23 {dimension_numbers = #tpu.dot_dimension_numbers<[1], [0], [0], [1], [0, 0, 1, 1], [], []>} : vector<64x64xbf16>, vector<64x16xbf16>, vector<64x16xf32> -> vector<64x16xf32>
    %84 = vector.extract_strided_slice %56 {offsets = [0, 16], sizes = [64, 16], strides = [1, 1]} : vector<64x32xbf16> to vector<64x16xbf16>
    %85 = vector.extract_strided_slice %61 {offsets = [0, 16], sizes = [64, 16], strides = [1, 1]} : vector<64x32xbf16> to vector<64x16xbf16>
    %86 = vector.extract_strided_slice %65 {offsets = [0, 16], sizes = [64, 16], strides = [1, 1]} : vector<64x32xbf16> to vector<64x16xbf16>
    %cst_24 = arith.constant dense<0.000000e+00> : vector<64x64xf32>
    %87 = tpu.matmul %84, %85, %cst_24 {dimension_numbers = #tpu.dot_dimension_numbers<[1], [1], [0], [0], [0, 0, 1, 0], [], []>} : vector<64x16xbf16>, vector<64x16xbf16>, vector<64x64xf32> -> vector<64x64xf32>
    %cst_25 = arith.constant 2.500000e-01 : f32
    %88 = vector.broadcast %cst_25 : f32 to vector<64x64xf32>
    %89 = arith.mulf %87, %88 : vector<64x64xf32>
    %90 = arith.addf %89, %9 : vector<64x64xf32>
    %cst_26 = arith.constant dense<0xFF800000> : vector<64xf32>
    %91 = vector.multi_reduction <maximumf>, %90, %cst_26 [1] : vector<64x64xf32> to vector<64xf32>
    %92 = vector.shape_cast %91 : vector<64xf32> to vector<64x1xf32>
    %93 = vector.broadcast %92 : vector<64x1xf32> to vector<64x64xf32>
    %94 = arith.subf %90, %93 : vector<64x64xf32>
    %95 = math.exp %94 : vector<64x64xf32>
    %cst_27 = arith.constant dense<0.000000e+00> : vector<64xf32>
    %96 = vector.multi_reduction <add>, %95, %cst_27 [1] : vector<64x64xf32> to vector<64xf32>
    %97 = vector.shape_cast %96 : vector<64xf32> to vector<64x1xf32>
    %98 = vector.broadcast %97 : vector<64x1xf32> to vector<64x64xf32>
    %99 = arith.divf %95, %98 : vector<64x64xf32>
    %100 = arith.truncf %99 : vector<64x64xf32> to vector<64x64xbf16>
    %cst_28 = arith.constant dense<0.000000e+00> : vector<64x16xf32>
    %101 = tpu.matmul %100, %86, %cst_28 {dimension_numbers = #tpu.dot_dimension_numbers<[1], [0], [0], [1], [0, 0, 1, 1], [], []>} : vector<64x64xbf16>, vector<64x16xbf16>, vector<64x16xf32> -> vector<64x16xf32>
    %102 = tpu.concatenate %83, %101 in 1 : vector<64x16xf32>, vector<64x16xf32> -> vector<64x32xf32>
    %103 = arith.truncf %102 : vector<64x32xf32> to vector<64x32xbf16>
    %cst_29 = arith.constant dense<0.000000e+00> : vector<64x32xf32>
    %104 = tpu.matmul %103, %16, %cst_29 {dimension_numbers = #tpu.dot_dimension_numbers<[1], [0], [0], [1], [0, 0, 1, 1], [], []>} : vector<64x32xbf16>, vector<32x32xbf16>, vector<64x32xf32> -> vector<64x32xf32>
    %105 = vector.broadcast %24 : vector<1x32xf32> to vector<64x32xf32>
    %106 = arith.addf %104, %105 : vector<64x32xf32>
    %107 = arith.addf %50, %106 : vector<64x32xf32>
    %cst_30 = arith.constant dense<0.000000e+00> : vector<64xf32>
    %108 = vector.multi_reduction <add>, %107, %cst_30 [1] : vector<64x32xf32> to vector<64xf32>
    %109 = vector.shape_cast %108 : vector<64xf32> to vector<64x1xf32>
    %cst_31 = arith.constant 3.200000e+01 : f32
    %110 = vector.broadcast %cst_31 : f32 to vector<64x1xf32>
    %111 = arith.divf %109, %110 : vector<64x1xf32>
    %112 = vector.broadcast %111 : vector<64x1xf32> to vector<64x32xf32>
    %113 = arith.subf %107, %112 : vector<64x32xf32>
    %114 = arith.mulf %113, %113 : vector<64x32xf32>
    %cst_32 = arith.constant dense<0.000000e+00> : vector<64xf32>
    %115 = vector.multi_reduction <add>, %114, %cst_32 [1] : vector<64x32xf32> to vector<64xf32>
    %116 = vector.shape_cast %115 : vector<64xf32> to vector<64x1xf32>
    %cst_33 = arith.constant 3.200000e+01 : f32
    %117 = vector.broadcast %cst_33 : f32 to vector<64x1xf32>
    %118 = arith.divf %116, %117 : vector<64x1xf32>
    %119 = vector.broadcast %111 : vector<64x1xf32> to vector<64x32xf32>
    %120 = arith.subf %107, %119 : vector<64x32xf32>
    %cst_34 = arith.constant 9.99999993E-9 : f32
    %121 = vector.broadcast %cst_34 : f32 to vector<64x1xf32>
    %122 = arith.addf %118, %121 : vector<64x1xf32>
    %123 = math.rsqrt %122 : vector<64x1xf32>
    %124 = vector.broadcast %123 : vector<64x1xf32> to vector<64x32xf32>
    %125 = arith.mulf %120, %124 : vector<64x32xf32>
    %126 = vector.broadcast %25 : vector<1x32xf32> to vector<64x32xf32>
    %127 = arith.mulf %125, %126 : vector<64x32xf32>
    %128 = vector.broadcast %26 : vector<1x32xf32> to vector<64x32xf32>
    %129 = arith.addf %127, %128 : vector<64x32xf32>
    %130 = arith.truncf %129 : vector<64x32xf32> to vector<64x32xbf16>
    %cst_35 = arith.constant dense<0.000000e+00> : vector<64x32xf32>
    %131 = tpu.matmul %130, %17, %cst_35 {dimension_numbers = #tpu.dot_dimension_numbers<[1], [0], [0], [1], [0, 0, 1, 1], [], []>} : vector<64x32xbf16>, vector<32x32xbf16>, vector<64x32xf32> -> vector<64x32xf32>
    %132 = vector.broadcast %27 : vector<1x32xf32> to vector<64x32xf32>
    %133 = arith.addf %131, %132 : vector<64x32xf32>
    %cst_36 = arith.constant 0.000000e+00 : f32
    %134 = vector.broadcast %cst_36 : f32 to vector<64x32xf32>
    %135 = arith.maximumf %133, %134 : vector<64x32xf32>
    %136 = arith.truncf %135 : vector<64x32xf32> to vector<64x32xbf16>
    %cst_37 = arith.constant dense<0.000000e+00> : vector<64x32xf32>
    %137 = tpu.matmul %136, %18, %cst_37 {dimension_numbers = #tpu.dot_dimension_numbers<[1], [0], [0], [1], [0, 0, 1, 1], [], []>} : vector<64x32xbf16>, vector<32x32xbf16>, vector<64x32xf32> -> vector<64x32xf32>
    %138 = vector.broadcast %28 : vector<1x32xf32> to vector<64x32xf32>
    %139 = arith.addf %137, %138 : vector<64x32xf32>
    %140 = arith.addf %139, %129 : vector<64x32xf32>
    %141 = arith.mulf %140, %3 : vector<64x32xf32>
    %c1 = arith.constant 1 : index
    %c0_38 = arith.constant 0 : index
    %c0_39 = arith.constant 0 : index
    %142 = vector.load %arg4[%c1, %c0_38, %c0_39] : memref<2x32x256xbf16, #tpu.memory_space<vmem>>, vector<1x32x256xbf16>
    %143 = vector.shape_cast %142 : vector<1x32x256xbf16> to vector<32x256xbf16>
    %c1_40 = arith.constant 1 : index
    %c0_41 = arith.constant 0 : index
    %c0_42 = arith.constant 0 : index
    %144 = vector.load %arg5[%c1_40, %c0_41, %c0_42] : memref<2x10x32xf32, #tpu.memory_space<vmem>>, vector<1x10x32xf32>
    %145 = vector.shape_cast %144 : vector<1x10x32xf32> to vector<10x32xf32>
    %146 = vector.extract_strided_slice %143 {offsets = [0, 0], sizes = [32, 32], strides = [1, 1]} : vector<32x256xbf16> to vector<32x32xbf16>
    %147 = vector.extract_strided_slice %143 {offsets = [0, 32], sizes = [32, 64], strides = [1, 1]} : vector<32x256xbf16> to vector<32x64xbf16>
    %148 = vector.extract_strided_slice %143 {offsets = [0, 96], sizes = [32, 32], strides = [1, 1]} : vector<32x256xbf16> to vector<32x32xbf16>
    %149 = vector.extract_strided_slice %143 {offsets = [0, 128], sizes = [32, 32], strides = [1, 1]} : vector<32x256xbf16> to vector<32x32xbf16>
    %150 = vector.extract_strided_slice %143 {offsets = [0, 160], sizes = [32, 32], strides = [1, 1]} : vector<32x256xbf16> to vector<32x32xbf16>
    %151 = vector.extract_strided_slice %145 {offsets = [0, 0], sizes = [1, 32], strides = [1, 1]} : vector<10x32xf32> to vector<1x32xf32>
    %152 = vector.extract_strided_slice %145 {offsets = [1, 0], sizes = [1, 32], strides = [1, 1]} : vector<10x32xf32> to vector<1x32xf32>
    %153 = vector.extract_strided_slice %145 {offsets = [2, 0], sizes = [1, 32], strides = [1, 1]} : vector<10x32xf32> to vector<1x32xf32>
    %154 = vector.extract_strided_slice %145 {offsets = [3, 0], sizes = [1, 32], strides = [1, 1]} : vector<10x32xf32> to vector<1x32xf32>
    %155 = vector.extract_strided_slice %145 {offsets = [4, 0], sizes = [1, 32], strides = [1, 1]} : vector<10x32xf32> to vector<1x32xf32>
    %156 = vector.extract_strided_slice %145 {offsets = [5, 0], sizes = [1, 32], strides = [1, 1]} : vector<10x32xf32> to vector<1x32xf32>
    %157 = vector.extract_strided_slice %145 {offsets = [6, 0], sizes = [1, 32], strides = [1, 1]} : vector<10x32xf32> to vector<1x32xf32>
    %158 = vector.extract_strided_slice %145 {offsets = [7, 0], sizes = [1, 32], strides = [1, 1]} : vector<10x32xf32> to vector<1x32xf32>
    %159 = vector.extract_strided_slice %145 {offsets = [8, 0], sizes = [1, 32], strides = [1, 1]} : vector<10x32xf32> to vector<1x32xf32>
    %160 = vector.extract_strided_slice %145 {offsets = [9, 0], sizes = [1, 32], strides = [1, 1]} : vector<10x32xf32> to vector<1x32xf32>
    %cst_43 = arith.constant dense<0.000000e+00> : vector<64xf32>
    %161 = vector.multi_reduction <add>, %141, %cst_43 [1] : vector<64x32xf32> to vector<64xf32>
    %162 = vector.shape_cast %161 : vector<64xf32> to vector<64x1xf32>
    %cst_44 = arith.constant 3.200000e+01 : f32
    %163 = vector.broadcast %cst_44 : f32 to vector<64x1xf32>
    %164 = arith.divf %162, %163 : vector<64x1xf32>
    %165 = vector.broadcast %164 : vector<64x1xf32> to vector<64x32xf32>
    %166 = arith.subf %141, %165 : vector<64x32xf32>
    %167 = arith.mulf %166, %166 : vector<64x32xf32>
    %cst_45 = arith.constant dense<0.000000e+00> : vector<64xf32>
    %168 = vector.multi_reduction <add>, %167, %cst_45 [1] : vector<64x32xf32> to vector<64xf32>
    %169 = vector.shape_cast %168 : vector<64xf32> to vector<64x1xf32>
    %cst_46 = arith.constant 3.200000e+01 : f32
    %170 = vector.broadcast %cst_46 : f32 to vector<64x1xf32>
    %171 = arith.divf %169, %170 : vector<64x1xf32>
    %172 = vector.broadcast %164 : vector<64x1xf32> to vector<64x32xf32>
    %173 = arith.subf %141, %172 : vector<64x32xf32>
    %cst_47 = arith.constant 9.99999993E-9 : f32
    %174 = vector.broadcast %cst_47 : f32 to vector<64x1xf32>
    %175 = arith.addf %171, %174 : vector<64x1xf32>
    %176 = math.rsqrt %175 : vector<64x1xf32>
    %177 = vector.broadcast %176 : vector<64x1xf32> to vector<64x32xf32>
    %178 = arith.mulf %173, %177 : vector<64x32xf32>
    %179 = vector.broadcast %151 : vector<1x32xf32> to vector<64x32xf32>
    %180 = arith.mulf %178, %179 : vector<64x32xf32>
    %181 = vector.broadcast %152 : vector<1x32xf32> to vector<64x32xf32>
    %182 = arith.addf %180, %181 : vector<64x32xf32>
    %183 = arith.truncf %141 : vector<64x32xf32> to vector<64x32xbf16>
    %184 = arith.truncf %182 : vector<64x32xf32> to vector<64x32xbf16>
    %cst_48 = arith.constant dense<0.000000e+00> : vector<64x32xf32>
    %185 = tpu.matmul %184, %146, %cst_48 {dimension_numbers = #tpu.dot_dimension_numbers<[1], [0], [0], [1], [0, 0, 1, 1], [], []>} : vector<64x32xbf16>, vector<32x32xbf16>, vector<64x32xf32> -> vector<64x32xf32>
    %186 = vector.broadcast %153 : vector<1x32xf32> to vector<64x32xf32>
    %187 = arith.addf %185, %186 : vector<64x32xf32>
    %188 = arith.truncf %187 : vector<64x32xf32> to vector<64x32xbf16>
    %cst_49 = arith.constant dense<0.000000e+00> : vector<64x64xf32>
    %189 = tpu.matmul %183, %147, %cst_49 {dimension_numbers = #tpu.dot_dimension_numbers<[1], [0], [0], [1], [0, 0, 1, 1], [], []>} : vector<64x32xbf16>, vector<32x64xbf16>, vector<64x64xf32> -> vector<64x64xf32>
    %190 = vector.extract_strided_slice %189 {offsets = [0, 0], sizes = [64, 32], strides = [1, 1]} : vector<64x64xf32> to vector<64x32xf32>
    %191 = vector.broadcast %154 : vector<1x32xf32> to vector<64x32xf32>
    %192 = arith.addf %190, %191 : vector<64x32xf32>
    %193 = arith.truncf %192 : vector<64x32xf32> to vector<64x32xbf16>
    %194 = vector.extract_strided_slice %189 {offsets = [0, 32], sizes = [64, 32], strides = [1, 1]} : vector<64x64xf32> to vector<64x32xf32>
    %195 = vector.broadcast %155 : vector<1x32xf32> to vector<64x32xf32>
    %196 = arith.addf %194, %195 : vector<64x32xf32>
    %197 = arith.truncf %196 : vector<64x32xf32> to vector<64x32xbf16>
    %198 = vector.extract_strided_slice %188 {offsets = [0, 0], sizes = [64, 16], strides = [1, 1]} : vector<64x32xbf16> to vector<64x16xbf16>
    %199 = vector.extract_strided_slice %193 {offsets = [0, 0], sizes = [64, 16], strides = [1, 1]} : vector<64x32xbf16> to vector<64x16xbf16>
    %200 = vector.extract_strided_slice %197 {offsets = [0, 0], sizes = [64, 16], strides = [1, 1]} : vector<64x32xbf16> to vector<64x16xbf16>
    %cst_50 = arith.constant dense<0.000000e+00> : vector<64x64xf32>
    %201 = tpu.matmul %198, %199, %cst_50 {dimension_numbers = #tpu.dot_dimension_numbers<[1], [1], [0], [0], [0, 0, 1, 0], [], []>} : vector<64x16xbf16>, vector<64x16xbf16>, vector<64x64xf32> -> vector<64x64xf32>
    %cst_51 = arith.constant 2.500000e-01 : f32
    %202 = vector.broadcast %cst_51 : f32 to vector<64x64xf32>
    %203 = arith.mulf %201, %202 : vector<64x64xf32>
    %204 = arith.addf %203, %9 : vector<64x64xf32>
    %cst_52 = arith.constant dense<0xFF800000> : vector<64xf32>
    %205 = vector.multi_reduction <maximumf>, %204, %cst_52 [1] : vector<64x64xf32> to vector<64xf32>
    %206 = vector.shape_cast %205 : vector<64xf32> to vector<64x1xf32>
    %207 = vector.broadcast %206 : vector<64x1xf32> to vector<64x64xf32>
    %208 = arith.subf %204, %207 : vector<64x64xf32>
    %209 = math.exp %208 : vector<64x64xf32>
    %cst_53 = arith.constant dense<0.000000e+00> : vector<64xf32>
    %210 = vector.multi_reduction <add>, %209, %cst_53 [1] : vector<64x64xf32> to vector<64xf32>
    %211 = vector.shape_cast %210 : vector<64xf32> to vector<64x1xf32>
    %212 = vector.broadcast %211 : vector<64x1xf32> to vector<64x64xf32>
    %213 = arith.divf %209, %212 : vector<64x64xf32>
    %214 = arith.truncf %213 : vector<64x64xf32> to vector<64x64xbf16>
    %cst_54 = arith.constant dense<0.000000e+00> : vector<64x16xf32>
    %215 = tpu.matmul %214, %200, %cst_54 {dimension_numbers = #tpu.dot_dimension_numbers<[1], [0], [0], [1], [0, 0, 1, 1], [], []>} : vector<64x64xbf16>, vector<64x16xbf16>, vector<64x16xf32> -> vector<64x16xf32>
    %216 = vector.extract_strided_slice %188 {offsets = [0, 16], sizes = [64, 16], strides = [1, 1]} : vector<64x32xbf16> to vector<64x16xbf16>
    %217 = vector.extract_strided_slice %193 {offsets = [0, 16], sizes = [64, 16], strides = [1, 1]} : vector<64x32xbf16> to vector<64x16xbf16>
    %218 = vector.extract_strided_slice %197 {offsets = [0, 16], sizes = [64, 16], strides = [1, 1]} : vector<64x32xbf16> to vector<64x16xbf16>
    %cst_55 = arith.constant dense<0.000000e+00> : vector<64x64xf32>
    %219 = tpu.matmul %216, %217, %cst_55 {dimension_numbers = #tpu.dot_dimension_numbers<[1], [1], [0], [0], [0, 0, 1, 0], [], []>} : vector<64x16xbf16>, vector<64x16xbf16>, vector<64x64xf32> -> vector<64x64xf32>
    %cst_56 = arith.constant 2.500000e-01 : f32
    %220 = vector.broadcast %cst_56 : f32 to vector<64x64xf32>
    %221 = arith.mulf %219, %220 : vector<64x64xf32>
    %222 = arith.addf %221, %9 : vector<64x64xf32>
    %cst_57 = arith.constant dense<0xFF800000> : vector<64xf32>
    %223 = vector.multi_reduction <maximumf>, %222, %cst_57 [1] : vector<64x64xf32> to vector<64xf32>
    %224 = vector.shape_cast %223 : vector<64xf32> to vector<64x1xf32>
    %225 = vector.broadcast %224 : vector<64x1xf32> to vector<64x64xf32>
    %226 = arith.subf %222, %225 : vector<64x64xf32>
    %227 = math.exp %226 : vector<64x64xf32>
    %cst_58 = arith.constant dense<0.000000e+00> : vector<64xf32>
    %228 = vector.multi_reduction <add>, %227, %cst_58 [1] : vector<64x64xf32> to vector<64xf32>
    %229 = vector.shape_cast %228 : vector<64xf32> to vector<64x1xf32>
    %230 = vector.broadcast %229 : vector<64x1xf32> to vector<64x64xf32>
    %231 = arith.divf %227, %230 : vector<64x64xf32>
    %232 = arith.truncf %231 : vector<64x64xf32> to vector<64x64xbf16>
    %cst_59 = arith.constant dense<0.000000e+00> : vector<64x16xf32>
    %233 = tpu.matmul %232, %218, %cst_59 {dimension_numbers = #tpu.dot_dimension_numbers<[1], [0], [0], [1], [0, 0, 1, 1], [], []>} : vector<64x64xbf16>, vector<64x16xbf16>, vector<64x16xf32> -> vector<64x16xf32>
    %234 = tpu.concatenate %215, %233 in 1 : vector<64x16xf32>, vector<64x16xf32> -> vector<64x32xf32>
    %235 = arith.truncf %234 : vector<64x32xf32> to vector<64x32xbf16>
    %cst_60 = arith.constant dense<0.000000e+00> : vector<64x32xf32>
    %236 = tpu.matmul %235, %148, %cst_60 {dimension_numbers = #tpu.dot_dimension_numbers<[1], [0], [0], [1], [0, 0, 1, 1], [], []>} : vector<64x32xbf16>, vector<32x32xbf16>, vector<64x32xf32> -> vector<64x32xf32>
    %237 = vector.broadcast %156 : vector<1x32xf32> to vector<64x32xf32>
    %238 = arith.addf %236, %237 : vector<64x32xf32>
    %239 = arith.addf %182, %238 : vector<64x32xf32>
    %cst_61 = arith.constant dense<0.000000e+00> : vector<64xf32>
    %240 = vector.multi_reduction <add>, %239, %cst_61 [1] : vector<64x32xf32> to vector<64xf32>
    %241 = vector.shape_cast %240 : vector<64xf32> to vector<64x1xf32>
    %cst_62 = arith.constant 3.200000e+01 : f32
    %242 = vector.broadcast %cst_62 : f32 to vector<64x1xf32>
    %243 = arith.divf %241, %242 : vector<64x1xf32>
    %244 = vector.broadcast %243 : vector<64x1xf32> to vector<64x32xf32>
    %245 = arith.subf %239, %244 : vector<64x32xf32>
    %246 = arith.mulf %245, %245 : vector<64x32xf32>
    %cst_63 = arith.constant dense<0.000000e+00> : vector<64xf32>
    %247 = vector.multi_reduction <add>, %246, %cst_63 [1] : vector<64x32xf32> to vector<64xf32>
    %248 = vector.shape_cast %247 : vector<64xf32> to vector<64x1xf32>
    %cst_64 = arith.constant 3.200000e+01 : f32
    %249 = vector.broadcast %cst_64 : f32 to vector<64x1xf32>
    %250 = arith.divf %248, %249 : vector<64x1xf32>
    %251 = vector.broadcast %243 : vector<64x1xf32> to vector<64x32xf32>
    %252 = arith.subf %239, %251 : vector<64x32xf32>
    %cst_65 = arith.constant 9.99999993E-9 : f32
    %253 = vector.broadcast %cst_65 : f32 to vector<64x1xf32>
    %254 = arith.addf %250, %253 : vector<64x1xf32>
    %255 = math.rsqrt %254 : vector<64x1xf32>
    %256 = vector.broadcast %255 : vector<64x1xf32> to vector<64x32xf32>
    %257 = arith.mulf %252, %256 : vector<64x32xf32>
    %258 = vector.broadcast %157 : vector<1x32xf32> to vector<64x32xf32>
    %259 = arith.mulf %257, %258 : vector<64x32xf32>
    %260 = vector.broadcast %158 : vector<1x32xf32> to vector<64x32xf32>
    %261 = arith.addf %259, %260 : vector<64x32xf32>
    %262 = arith.truncf %261 : vector<64x32xf32> to vector<64x32xbf16>
    %cst_66 = arith.constant dense<0.000000e+00> : vector<64x32xf32>
    %263 = tpu.matmul %262, %149, %cst_66 {dimension_numbers = #tpu.dot_dimension_numbers<[1], [0], [0], [1], [0, 0, 1, 1], [], []>} : vector<64x32xbf16>, vector<32x32xbf16>, vector<64x32xf32> -> vector<64x32xf32>
    %264 = vector.broadcast %159 : vector<1x32xf32> to vector<64x32xf32>
    %265 = arith.addf %263, %264 : vector<64x32xf32>
    %cst_67 = arith.constant 0.000000e+00 : f32
    %266 = vector.broadcast %cst_67 : f32 to vector<64x32xf32>
    %267 = arith.maximumf %265, %266 : vector<64x32xf32>
    %268 = arith.truncf %267 : vector<64x32xf32> to vector<64x32xbf16>
    %cst_68 = arith.constant dense<0.000000e+00> : vector<64x32xf32>
    %269 = tpu.matmul %268, %150, %cst_68 {dimension_numbers = #tpu.dot_dimension_numbers<[1], [0], [0], [1], [0, 0, 1, 1], [], []>} : vector<64x32xbf16>, vector<32x32xbf16>, vector<64x32xf32> -> vector<64x32xf32>
    %270 = vector.broadcast %160 : vector<1x32xf32> to vector<64x32xf32>
    %271 = arith.addf %269, %270 : vector<64x32xf32>
    %272 = arith.addf %271, %261 : vector<64x32xf32>
    %273 = arith.mulf %272, %3 : vector<64x32xf32>
    %274 = arith.index_cast %arg0 : i32 to index
    %275 = memref.load %arg1[%274] : memref<2xi32, #tpu.memory_space<smem>>
    %276 = tpu.iota {dimensions = array<i32: 0>} : vector<64x32xi32>
    %277 = vector.broadcast %275 : i32 to vector<64x32xi32>
    %278 = arith.cmpi eq, %276, %277 : vector<64x32xi32>
    %cst_69 = arith.constant 0.000000e+00 : f32
    %279 = vector.broadcast %cst_69 : f32 to vector<64x32xf32>
    %280 = arith.select %278, %273, %279 : vector<64x32xi1>, vector<64x32xf32>
    %cst_70 = arith.constant dense<0.000000e+00> : vector<32xf32>
    %281 = vector.multi_reduction <add>, %280, %cst_70 [0] : vector<64x32xf32> to vector<32xf32>
    %282 = vector.shape_cast %281 : vector<32xf32> to vector<1x32xf32>
    %c0_71 = arith.constant 0 : index
    %c0_72 = arith.constant 0 : index
    %283 = vector.load %arg6[%c0_71, %c0_72] : memref<2x32xf32, #tpu.memory_space<vmem>>, vector<2x32xf32>
    %284 = vector.extract_strided_slice %283 {offsets = [0, 0], sizes = [1, 32], strides = [1, 1]} : vector<2x32xf32> to vector<1x32xf32>
    %285 = vector.extract_strided_slice %283 {offsets = [1, 0], sizes = [1, 32], strides = [1, 1]} : vector<2x32xf32> to vector<1x32xf32>
    %cst_73 = arith.constant dense<0.000000e+00> : vector<1xf32>
    %286 = vector.multi_reduction <add>, %282, %cst_73 [1] : vector<1x32xf32> to vector<1xf32>
    %287 = vector.shape_cast %286 : vector<1xf32> to vector<1x1xf32>
    %cst_74 = arith.constant 3.200000e+01 : f32
    %288 = vector.broadcast %cst_74 : f32 to vector<1x1xf32>
    %289 = arith.divf %287, %288 : vector<1x1xf32>
    %290 = vector.broadcast %289 : vector<1x1xf32> to vector<1x32xf32>
    %291 = arith.subf %282, %290 : vector<1x32xf32>
    %292 = arith.mulf %291, %291 : vector<1x32xf32>
    %cst_75 = arith.constant dense<0.000000e+00> : vector<1xf32>
    %293 = vector.multi_reduction <add>, %292, %cst_75 [1] : vector<1x32xf32> to vector<1xf32>
    %294 = vector.shape_cast %293 : vector<1xf32> to vector<1x1xf32>
    %cst_76 = arith.constant 3.200000e+01 : f32
    %295 = vector.broadcast %cst_76 : f32 to vector<1x1xf32>
    %296 = arith.divf %294, %295 : vector<1x1xf32>
    %297 = vector.broadcast %289 : vector<1x1xf32> to vector<1x32xf32>
    %298 = arith.subf %282, %297 : vector<1x32xf32>
    %cst_77 = arith.constant 9.99999993E-9 : f32
    %299 = vector.broadcast %cst_77 : f32 to vector<1x1xf32>
    %300 = arith.addf %296, %299 : vector<1x1xf32>
    %301 = math.rsqrt %300 : vector<1x1xf32>
    %302 = vector.broadcast %301 : vector<1x1xf32> to vector<1x32xf32>
    %303 = arith.mulf %298, %302 : vector<1x32xf32>
    %304 = arith.mulf %303, %284 : vector<1x32xf32>
    %305 = arith.addf %304, %285 : vector<1x32xf32>
    %306 = vector.shape_cast %305 : vector<1x32xf32> to vector<1x32xf32>
    %307 = vector.broadcast %306 : vector<1x32xf32> to vector<8x32xf32>
    %c0_78 = arith.constant 0 : index
    %c0_79 = arith.constant 0 : index
    %308 = vector.load %arg7[%c0_78, %c0_79] : memref<32x128xf32, #tpu.memory_space<vmem>>, vector<32x128xf32>
    %cst_80 = arith.constant dense<0.000000e+00> : vector<8x128xf32>
    %309 = tpu.matmul %307, %308, %cst_80 {dimension_numbers = #tpu.dot_dimension_numbers<[1], [0], [0], [1], [0, 0, 1, 1], [], []>} : vector<8x32xf32>, vector<32x128xf32>, vector<8x128xf32> -> vector<8x128xf32>
    %c0_81 = arith.constant 0 : index
    %c0_82 = arith.constant 0 : index
    %c0_83 = arith.constant 0 : index
    %310 = vector.load %arg8[%c0_81, %c0_82, %c0_83] : memref<1x8x128xf32, #tpu.memory_space<vmem>>, vector<1x8x128xf32>
    %311 = vector.shape_cast %310 : vector<1x8x128xf32> to vector<8x128xf32>
    %312 = vector.shape_cast %309 : vector<8x128xf32> to vector<1x8x128xf32>
    tpu.vector_store %arg8[%c0_81, %c0_82, %c0_83], %312 {strides = array<i32>} : memref<1x8x128xf32, #tpu.memory_space<vmem>>, vector<1x8x128xf32>,
    return
  }
  func.func @transform_0(%arg0: i32, %arg1: memref<2xi32, #tpu.memory_space<smem>>) -> (i32, i32, i32) {
    %c0_i32 = arith.constant 0 : i32
    %c0_i32_0 = arith.constant 0 : i32
    %c0_i32_1 = arith.constant 0 : i32
    return %arg0, %c0_i32, %c0_i32_0 : i32, i32, i32
  }
  func.func @transform_1(%arg0: i32, %arg1: memref<2xi32, #tpu.memory_space<smem>>) -> (i32, i32, i32) {
    %c0_i32 = arith.constant 0 : i32
    %c0_i32_0 = arith.constant 0 : i32
    %c0_i32_1 = arith.constant 0 : i32
    return %arg0, %c0_i32, %c0_i32_0 : i32, i32, i32
  }
  func.func @transform_2(%arg0: i32, %arg1: memref<2xi32, #tpu.memory_space<smem>>) -> (i32, i32, i32) {
    %c0_i32 = arith.constant 0 : i32
    %c0_i32_0 = arith.constant 0 : i32
    %c0_i32_1 = arith.constant 0 : i32
    %c0_i32_2 = arith.constant 0 : i32
    return %c0_i32, %c0_i32_0, %c0_i32_1 : i32, i32, i32
  }
  func.func @transform_3(%arg0: i32, %arg1: memref<2xi32, #tpu.memory_space<smem>>) -> (i32, i32, i32) {
    %c0_i32 = arith.constant 0 : i32
    %c0_i32_0 = arith.constant 0 : i32
    %c0_i32_1 = arith.constant 0 : i32
    %c0_i32_2 = arith.constant 0 : i32
    return %c0_i32, %c0_i32_0, %c0_i32_1 : i32, i32, i32
  }
  func.func @transform_4(%arg0: i32, %arg1: memref<2xi32, #tpu.memory_space<smem>>) -> (i32, i32) {
    %c0_i32 = arith.constant 0 : i32
    %c0_i32_0 = arith.constant 0 : i32
    %c0_i32_1 = arith.constant 0 : i32
    return %c0_i32, %c0_i32_0 : i32, i32
  }
  func.func @transform_5(%arg0: i32, %arg1: memref<2xi32, #tpu.memory_space<smem>>) -> (i32, i32) {
    %c0_i32 = arith.constant 0 : i32
    %c0_i32_0 = arith.constant 0 : i32
    %c0_i32_1 = arith.constant 0 : i32
    return %c0_i32, %c0_i32_0 : i32, i32
  }
  func.func @transform_6(%arg0: i32, %arg1: memref<2xi32, #tpu.memory_space<smem>>) -> (i32, i32, i32) {
    %c0_i32 = arith.constant 0 : i32
    %c0_i32_0 = arith.constant 0 : i32
    %c0_i32_1 = arith.constant 0 : i32
    return %arg0, %c0_i32, %c0_i32_0 : i32, i32, i32
  }
}

</mosaic_0001>

<llo_original>
// kernel: mul.10
$region0: #{mul.10}
  #allocation0 [shape = 's32[1]{0}', space=sflag, size = 0x4, scoped, tag = 'scoped memory for mul.10']
  %s0 = inlined_call_operand.vmem [shape: f32[2,50], index: 0, kind: input, shape index: {}]
  %s1 = inlined_call_operand.vmem [shape: f32[2,50,32], index: 1, kind: output, shape index: {}]
  // Predicated region
  $region2: #{mul.10} parent=0 // pred_check
    _
  $region3: #{mul.10} parent=0 // pred_check_branch
    %3 = sbr.rel (0) target = $region5
  $region4: #{mul.10} parent=0 // pred_region
    _
  $region5: #{mul.10} parent=0 // pred_fallthru
    _
  %v4 = vld [vmem:[%s0] ss:$0 sm:$0xff]
  %v5 = vlaneseq
  %v6 = vshrl.u32 %v5, 7
  %8 = vset.pattern.permute.xlu0 %v6
  %9 = vperm.xlu0 %8, %v4
  %v10 = vpop.permute.xlu0 %9
  %11 = vst [vmem:[%s1] sm:$0xff] %v10
  %s12 = scalar_lea.vmem %s0, 1
  %v13 = vld [vmem:[%s12] ss:$0 sm:$0xff]
  %v14 = vlaneseq
  %v15 = vshrl.u32 %v14, 7
  %17 = vset.pattern.permute.xlu0 %v15
  %18 = vperm.xlu0 %17, %v13
  %v19 = vpop.permute.xlu0 %18
  %s20 = scalar_lea.vmem %s1, 56
  %21 = vst [vmem:[%s20] sm:$0xff] %v19
  %v22 = vld [vmem:[%s0] ss:$0 sm:$0xff]
  %v23 = vlaneseq
  %v24 = vshrl.u32 %v23, 7
  %v25 = vadd.s32 %v24, 8
  %26 = vset.pattern.permute.xlu0 %v25
  %27 = vperm.xlu0 %26, %v22
  %v28 = vpop.permute.xlu0 %27
  %s29 = scalar_lea.vmem %s1, 8
  %30 = vst [vmem:[%s29] sm:$0xff] %v28
  %s31 = scalar_lea.vmem %s0, 1
  %v32 = vld [vmem:[%s31] ss:$0 sm:$0xff]
  %v33 = vlaneseq
  %v34 = vshrl.u32 %v33, 7
  %v35 = vadd.s32 %v34, 8
  %36 = vset.pattern.permute.xlu0 %v35
  %37 = vperm.xlu0 %36, %v32
  %v38 = vpop.permute.xlu0 %37
  %s39 = scalar_lea.vmem %s1, 64
  %40 = vst [vmem:[%s39] sm:$0xff] %v38
  %v41 = vld [vmem:[%s0] ss:$0 sm:$0xff]
  %v42 = vlaneseq
  %v43 = vshrl.u32 %v42, 7
  %v44 = vadd.s32 %v43, 16
  %45 = vset.pattern.permute.xlu0 %v44
  %46 = vperm.xlu0 %45, %v41
  %v47 = vpop.permute.xlu0 %46
  %s48 = scalar_lea.vmem %s1, 16
  %49 = vst [vmem:[%s48] sm:$0xff] %v47
  %s50 = scalar_lea.vmem %s0, 1
  %v51 = vld [vmem:[%s50] ss:$0 sm:$0xff]
  %v52 = vlaneseq
  %v53 = vshrl.u32 %v52, 7
  %v54 = vadd.s32 %v53, 16
  %55 = vset.pattern.permute.xlu0 %v54
  %56 = vperm.xlu0 %55, %v51
  %v57 = vpop.permute.xlu0 %56
  %s58 = scalar_lea.vmem %s1, 72
  %59 = vst [vmem:[%s58] sm:$0xff] %v57
  %v60 = vld [vmem:[%s0] ss:$0 sm:$0xff]
  %v61 = vlaneseq
  %v62 = vshrl.u32 %v61, 7
  %v63 = vadd.s32 %v62, 24
  %64 = vset.pattern.permute.xlu0 %v63
  %65 = vperm.xlu0 %64, %v60
  %v66 = vpop.permute.xlu0 %65
  %s67 = scalar_lea.vmem %s1, 24
  %68 = vst [vmem:[%s67] sm:$0xff] %v66
  %s69 = scalar_lea.vmem %s0, 1
  %v70 = vld [vmem:[%s69] ss:$0 sm:$0xff]
  %v71 = vlaneseq
  %v72 = vshrl.u32 %v71, 7
  %v73 = vadd.s32 %v72, 24
  %74 = vset.pattern.permute.xlu0 %v73
  %75 = vperm.xlu0 %74, %v70
  %v76 = vpop.permute.xlu0 %75
  %s77 = scalar_lea.vmem %s1, 80
  %78 = vst [vmem:[%s77] sm:$0xff] %v76
  %v79 = vld [vmem:[%s0] ss:$0 sm:$0xff]
  %v80 = vlaneseq
  %v81 = vshrl.u32 %v80, 7
  %v82 = vadd.s32 %v81, 32
  %83 = vset.pattern.permute.xlu0 %v82
  %84 = vperm.xlu0 %83, %v79
  %v85 = vpop.permute.xlu0 %84
  %s86 = scalar_lea.vmem %s1, 32
  %87 = vst [vmem:[%s86] sm:$0xff] %v85
  %s88 = scalar_lea.vmem %s0, 1
  %v89 = vld [vmem:[%s88] ss:$0 sm:$0xff]
  %v90 = vlaneseq
  %v91 = vshrl.u32 %v90, 7
  %v92 = vadd.s32 %v91, 32
  %93 = vset.pattern.permute.xlu0 %v92
  %94 = vperm.xlu0 %93, %v89
  %v95 = vpop.permute.xlu0 %94
  %s96 = scalar_lea.vmem %s1, 88
  %97 = vst [vmem:[%s96] sm:$0xff] %v95
  %v98 = vld [vmem:[%s0] ss:$0 sm:$0xff]
  %v99 = vlaneseq
  %v100 = vshrl.u32 %v99, 7
  %v101 = vadd.s32 %v100, 40
  %102 = vset.pattern.permute.xlu0 %v101
  %103 = vperm.xlu0 %102, %v98
  %v104 = vpop.permute.xlu0 %103
  %s105 = scalar_lea.vmem %s1, 40
  %106 = vst [vmem:[%s105] sm:$0xff] %v104
  %s107 = scalar_lea.vmem %s0, 1
  %v108 = vld [vmem:[%s107] ss:$0 sm:$0xff]
  %v109 = vlaneseq
  %v110 = vshrl.u32 %v109, 7
  %v111 = vadd.s32 %v110, 40
  %112 = vset.pattern.permute.xlu0 %v111
  %113 = vperm.xlu0 %112, %v108
  %v114 = vpop.permute.xlu0 %113
  %s115 = scalar_lea.vmem %s1, 96
  %116 = vst [vmem:[%s115] sm:$0xff] %v114
  %v117 = vld [vmem:[%s0] ss:$0 sm:$0xff]
  %v118 = vlaneseq
  %v119 = vshrl.u32 %v118, 7
  %v120 = vadd.s32 %v119, 48
  %121 = vset.pattern.permute.xlu0 %v120
  %122 = vperm.xlu0 %121, %v117
  %v123 = vpop.permute.xlu0 %122
  %s124 = scalar_lea.vmem %s1, 48
  %125 = vst [vmem:[%s124] sm:$0xff] %v123
  %s126 = scalar_lea.vmem %s0, 1
  %v127 = vld [vmem:[%s126] ss:$0 sm:$0xff]
  %v128 = vlaneseq
  %v129 = vshrl.u32 %v128, 7
  %v130 = vadd.s32 %v129, 48
  %131 = vset.pattern.permute.xlu0 %v130
  %132 = vperm.xlu0 %131, %v127
  %v133 = vpop.permute.xlu0 %132
  %s134 = scalar_lea.vmem %s1, 104
  %135 = vst [vmem:[%s134] sm:$0xff] %v133

// kernel: sasrec_forward.1
$region0: #{sasrec_forward.1}
  #allocation0 [shape = 'u32[]', space=smem, size = 0x4, offset = 0x4, fixed_abs, tag = 'smem constant byte address 0x4 - core index']
  #allocation1 [shape = 'u32[72,128]{1,0:T(1,128)}', space=vmem, size = 0x9000, scoped, tag = 'internal scratch']
  #allocation2 [shape = 's32[1]{0}', space=sflag, size = 0x4, scoped, tag = 'scoped memory for sasrec_forward.1']
  #allocation3 [shape = 'u8[512]{0}', space=smem, size = 0x200, scoped, tag = 'prefetched SMEM operand 0']
  %s0 = inlined_call_operand.vmem [shape: s32[2], index: 0, kind: input, shape index: {}]
  %s1 = inlined_call_operand.vmem [shape: f32[2,64,32], index: 1, kind: input, shape index: {}]
  %s2 = inlined_call_operand.vmem [shape: f32[2,64,32], index: 2, kind: input, shape index: {}]
  %s3 = inlined_call_operand.vmem [shape: bf16[2,32,256], index: 3, kind: input, shape index: {}]
  %s4 = inlined_call_operand.vmem [shape: f32[2,10,32], index: 4, kind: input, shape index: {}]
  %s5 = inlined_call_operand.vmem [shape: f32[2,32], index: 5, kind: input, shape index: {}]
  %s6 = inlined_call_operand.vmem [shape: f32[32,128], index: 6, kind: input, shape index: {}]
  %s7 = inlined_call_operand.vmem [shape: f32[2,8,128], index: 7, kind: output, shape index: {}]
  %s8 = sld [smem:[#allocation0]]
  $region57: #{sasrec_forward.1} parent=0
    _
  %s10 = ssub.s32 1, %s8
  %s11 = scalar_select 0, %s10, %s8
  %s13 = sshll.u32 %s0, 4
  %s14 = int_to_ptr.vmem [resolvable:$true] %s13
  %16 = dma.vmem_to_smem %s14, 16, [#allocation3], [#allocation2]
  %18 = dma.done [#allocation2], 16
  %19 = sfence
  loop: start=0, step=1, limit=4
  $region2: #{sasrec_forward.1} parent=0 // loop_pre_header
    _
  $region3: #{sasrec_forward.1} parent=0 // loop_header
    %s21 = sphi 0, %s25
    %p22 = scmp.ge.s32.totalorder %s21, 4
    %s31 = sphi 0, %s33
    %s34 = sphi 0, %s31
    %s35 = sphi 0, %s34
    %s51 = sphi 0, %s35
    %s57 = sphi 0, %s59
    %s60 = sphi 0, %s57
    %s61 = sphi 0, %s60
    %s77 = sphi 0, %s61
    %s81 = sphi 0, %s81
    %s83 = sphi 0, %s81
    %s84 = sphi 0, %s83
    %s98 = sphi 0, %s84
    %s102 = sphi 0, %s102
    %s104 = sphi 0, %s102
    %s105 = sphi 0, %s104
    %s119 = sphi 0, %s105
    %s123 = sphi 0, %s123
    %s125 = sphi 0, %s123
    %s126 = sphi 0, %s125
    %s140 = sphi 0, %s126
    %s144 = sphi 0, %s144
    %s146 = sphi 0, %s144
    %s147 = sphi 0, %s146
    %s161 = sphi 0, %s147
    %s167 = sphi 0, %s169
    %s170 = sphi 0, %s167
    %s171 = sphi 0, %s170
    %s187 = sphi 0, %s171
  $region4: #{sasrec_forward.1} parent=0 // loop_header_branch
    %24 = sbr.rel (%p22) target = $region8
  $region5: #{sasrec_forward.1} parent=0 // loop_body
    %s26 = ssub.s32 %s21, 1
    %s27 = ssub.s32 %s21, 2
    %s28 = sadd.s32 %s21, 1
    %s29 = ssub.s32 %s21, %s28
    %p30 = scmp.eq.s32.totalorder %s29, 0
    %s32 = sadd.s32 %s31, 1
    %s33 = scalar_select %p30, %s31, %s32
    %p36 = pneg %p30
    %p37 = scmp.eq.s32.totalorder %s21, 1
    %p38 = por %p36, %p37
    %p39 = scmp.ne.s32.totalorder %s31, %s34
    %p40 = scmp.eq.s32.totalorder %s21, 0
    %p41 = por %p39, %p40
    %p42 = scmp.ne.s32.totalorder %s31, %s34
    %p43 = scmp.eq.s32.totalorder %s26, 1
    %p44 = por %p42, %p43
    %p45 = scmp.ne.s32.totalorder %s34, %s35
    %p46 = scmp.eq.s32.totalorder %s26, 0
    %p47 = por %p45, %p46
    %p48 = scmp.ne.s32.totalorder %s34, %s35
    %p49 = scmp.eq.s32.totalorder %s27, 1
    %p50 = por %p48, %p49
    %p52 = scmp.ne.s32.totalorder %s35, %s51
    %p53 = scmp.eq.s32.totalorder %s27, 0
    %p54 = por %p52, %p53
    %s55 = ssub.s32 %s21, %s28
    %p56 = scmp.eq.s32.totalorder %s55, 0
    %s58 = sadd.s32 %s57, 1
    %s59 = scalar_select %p56, %s57, %s58
    %p62 = pneg %p56
    %p63 = scmp.eq.s32.totalorder %s21, 1
    %p64 = por %p62, %p63
    %p65 = scmp.ne.s32.totalorder %s57, %s60
    %p66 = scmp.eq.s32.totalorder %s21, 0
    %p67 = por %p65, %p66
    %p68 = scmp.ne.s32.totalorder %s57, %s60
    %p69 = scmp.eq.s32.totalorder %s26, 1
    %p70 = por %p68, %p69
    %p71 = scmp.ne.s32.totalorder %s60, %s61
    %p72 = scmp.eq.s32.totalorder %s26, 0
    %p73 = por %p71, %p72
    %p74 = scmp.ne.s32.totalorder %s60, %s61
    %p75 = scmp.eq.s32.totalorder %s27, 1
    %p76 = por %p74, %p75
    %p78 = scmp.ne.s32.totalorder %s61, %s77
    %p79 = scmp.eq.s32.totalorder %s27, 0
    %p80 = por %p78, %p79
    %s82 = sadd.s32 %s81, 1
    %p85 = scmp.eq.s32.totalorder %s21, 1
    %p86 = scmp.ne.s32.totalorder %s81, %s83
    %p87 = scmp.eq.s32.totalorder %s21, 0
    %p88 = por %p86, %p87
    %p89 = scmp.ne.s32.totalorder %s81, %s83
    %p90 = scmp.eq.s32.totalorder %s26, 1
    %p91 = por %p89, %p90
    %p92 = scmp.ne.s32.totalorder %s83, %s84
    %p93 = scmp.eq.s32.totalorder %s26, 0
    %p94 = por %p92, %p93
    %p95 = scmp.ne.s32.totalorder %s83, %s84
    %p96 = scmp.eq.s32.totalorder %s27, 1
    %p97 = por %p95, %p96
    %p99 = scmp.ne.s32.totalorder %s84, %s98
    %p100 = scmp.eq.s32.totalorder %s27, 0
    %p101 = por %p99, %p100
    %s103 = sadd.s32 %s102, 1
    %p106 = scmp.eq.s32.totalorder %s21, 1
    %p107 = scmp.ne.s32.totalorder %s102, %s104
    %p108 = scmp.eq.s32.totalorder %s21, 0
    %p109 = por %p107, %p108
    %p110 = scmp.ne.s32.totalorder %s102, %s104
    %p111 = scmp.eq.s32.totalorder %s26, 1
    %p112 = por %p110, %p111
    %p113 = scmp.ne.s32.totalorder %s104, %s105
    %p114 = scmp.eq.s32.totalorder %s26, 0
    %p115 = por %p113, %p114
    %p116 = scmp.ne.s32.totalorder %s104, %s105
    %p117 = scmp.eq.s32.totalorder %s27, 1
    %p118 = por %p116, %p117
    %p120 = scmp.ne.s32.totalorder %s105, %s119
    %p121 = scmp.eq.s32.totalorder %s27, 0
    %p122 = por %p120, %p121
    %s124 = sadd.s32 %s123, 1
    %p127 = scmp.eq.s32.totalorder %s21, 1
    %p128 = scmp.ne.s32.totalorder %s123, %s125
    %p129 = scmp.eq.s32.totalorder %s21, 0
    %p130 = por %p128, %p129
    %p131 = scmp.ne.s32.totalorder %s123, %s125
    %p132 = scmp.eq.s32.totalorder %s26, 1
    %p133 = por %p131, %p132
    %p134 = scmp.ne.s32.totalorder %s125, %s126
    %p135 = scmp.eq.s32.totalorder %s26, 0
    %p136 = por %p134, %p135
    %p137 = scmp.ne.s32.totalorder %s125, %s126
    %p138 = scmp.eq.s32.totalorder %s27, 1
    %p139 = por %p137, %p138
    %p141 = scmp.ne.s32.totalorder %s126, %s140
    %p142 = scmp.eq.s32.totalorder %s27, 0
    %p143 = por %p141, %p142
    %s145 = sadd.s32 %s144, 1
    %p148 = scmp.eq.s32.totalorder %s21, 1
    %p149 = scmp.ne.s32.totalorder %s144, %s146
    %p150 = scmp.eq.s32.totalorder %s21, 0
    %p151 = por %p149, %p150
    %p152 = scmp.ne.s32.totalorder %s144, %s146
    %p153 = scmp.eq.s32.totalorder %s26, 1
    %p154 = por %p152, %p153
    %p155 = scmp.ne.s32.totalorder %s146, %s147
    %p156 = scmp.eq.s32.totalorder %s26, 0
    %p157 = por %p155, %p156
    %p158 = scmp.ne.s32.totalorder %s146, %s147
    %p159 = scmp.eq.s32.totalorder %s27, 1
    %p160 = por %p158, %p159
    %p162 = scmp.ne.s32.totalorder %s147, %s161
    %p163 = scmp.eq.s32.totalorder %s27, 0
    %p164 = por %p162, %p163
    %s165 = ssub.s32 %s21, %s28
    %p166 = scmp.eq.s32.totalorder %s165, 0
    %s168 = sadd.s32 %s167, 1
    %s169 = scalar_select %p166, %s167, %s168
    %p172 = pneg %p166
    %p173 = scmp.eq.s32.totalorder %s21, 1
    %p174 = por %p172, %p173
    %p175 = scmp.ne.s32.totalorder %s167, %s170
    %p176 = scmp.eq.s32.totalorder %s21, 0
    %p177 = por %p175, %p176
    %p178 = scmp.ne.s32.totalorder %s167, %s170
    %p179 = scmp.eq.s32.totalorder %s26, 1
    %p180 = por %p178, %p179
    %p181 = scmp.ne.s32.totalorder %s170, %s171
    %p182 = scmp.eq.s32.totalorder %s26, 0
    %p183 = por %p181, %p182
    %p184 = scmp.ne.s32.totalorder %s170, %s171
    %p185 = scmp.eq.s32.totalorder %s27, 1
    %p186 = por %p184, %p185
    %p188 = scmp.ne.s32.totalorder %s171, %s187
    %p189 = scmp.eq.s32.totalorder %s27, 0
    %p190 = por %p188, %p189
    %p191 = scmp.le.s32.totalorder 1, %s21
    %p192 = scmp.lt.s32.totalorder %s21, 3
    %p193 = pnand %p191, %p192
    %p194 = pneg %p193
    // Predicated region
    $region9: #{sasrec_forward.1} parent=5 // pred_check
      _
    $region10: #{sasrec_forward.1} parent=5 // pred_check_branch
      %196 = sbr.rel (%p193) target = $region12
    $region11: #{sasrec_forward.1} parent=5 // pred_region
      %s197 = ssub.s32 %s21, 1
      // Predicated region
      $region13: #{sasrec_forward.1} parent=11 // pred_check
        %p198 = pneg %p94
      $region14: #{sasrec_forward.1} parent=11 // pred_check_branch
        %200 = sbr.rel (%p198) target = $region16
      $region15: #{sasrec_forward.1} parent=11 // pred_region
        _
      $region16: #{sasrec_forward.1} parent=11 // pred_fallthru
        _
      // Predicated region
      $region17: #{sasrec_forward.1} parent=11 // pred_check
        %p201 = pneg %p115
      $region18: #{sasrec_forward.1} parent=11 // pred_check_branch
        %203 = sbr.rel (%p201) target = $region20
      $region19: #{sasrec_forward.1} parent=11 // pred_region
        _
      $region20: #{sasrec_forward.1} parent=11 // pred_fallthru
        _
      // Predicated region
      $region21: #{sasrec_forward.1} parent=11 // pred_check
        %p204 = pneg %p136
      $region22: #{sasrec_forward.1} parent=11 // pred_check_branch
        %206 = sbr.rel (%p204) target = $region24
      $region23: #{sasrec_forward.1} parent=11 // pred_region
        _
      $region24: #{sasrec_forward.1} parent=11 // pred_fallthru
        _
      // Predicated region
      $region25: #{sasrec_forward.1} parent=11 // pred_check
        %p207 = pneg %p157
      $region26: #{sasrec_forward.1} parent=11 // pred_check_branch
        %209 = sbr.rel (%p207) target = $region28
      $region27: #{sasrec_forward.1} parent=11 // pred_region
        _
      $region28: #{sasrec_forward.1} parent=11 // pred_fallthru
        _
    $region12: #{sasrec_forward.1} parent=5 // pred_fallthru
      _
    %p210 = scmp.lt.s32.totalorder %s21, 2
    // Predicated region
    $region29: #{sasrec_forward.1} parent=5 // pred_check
      %p211 = pneg %p210
    $region30: #{sasrec_forward.1} parent=5 // pred_check_branch
      %213 = sbr.rel (%p211) target = $region32
    $region31: #{sasrec_forward.1} parent=5 // pred_region
      // Predicated region
      $region33: #{sasrec_forward.1} parent=31 // pred_check
        %p214 = pneg %p41
      $region34: #{sasrec_forward.1} parent=31 // pred_check_branch
        %216 = sbr.rel (%p214) target = $region36
      $region35: #{sasrec_forward.1} parent=31 // pred_region
        %p217 = scmp.lt.s32.totalorder %s21, 1
        %s218 = scalar_select %p217, %s21, 1
        %s219 = smul.addr %s218, 8
        %s220 = smul.addr %s219, 8
        %s221 = scalar_lea.vmem %s1, %s220
      $region36: #{sasrec_forward.1} parent=31 // pred_fallthru
        _
      // Predicated region
      $region37: #{sasrec_forward.1} parent=31 // pred_check
        %p222 = pneg %p67
      $region38: #{sasrec_forward.1} parent=31 // pred_check_branch
        %224 = sbr.rel (%p222) target = $region40
      $region39: #{sasrec_forward.1} parent=31 // pred_region
        %p225 = scmp.lt.s32.totalorder %s21, 1
        %s226 = scalar_select %p225, %s21, 1
        %s227 = smul.addr %s226, 8
        %s228 = smul.addr %s227, 8
        %s229 = scalar_lea.vmem %s2, %s228
      $region40: #{sasrec_forward.1} parent=31 // pred_fallthru
        _
    $region32: #{sasrec_forward.1} parent=5 // pred_fallthru
      _
    %p230 = scmp.le.s32.totalorder 1, %s21
    %p231 = scmp.lt.s32.totalorder %s21, 3
    %p232 = pnand %p230, %p231
    %p233 = pneg %p232
    // Predicated region
    $region41: #{sasrec_forward.1} parent=5 // pred_check
      _
    $region42: #{sasrec_forward.1} parent=5 // pred_check_branch
      %235 = sbr.rel (%p232) target = $region44
    $region43: #{sasrec_forward.1} parent=5 // pred_region
      %s236 = ssub.s32 %s21, 1
      %p237 = scmp.lt.s32.totalorder %s26, 1
      %s238 = scalar_select %p237, %s26, 1
      %s239 = smul.addr %s238, 8
      %s240 = smul.addr %s239, 8
      %s241 = scalar_lea.vmem %s1, %s240
      %p242 = pneg %p47
      %p243 = pneg %p44
      %p244 = scmp.lt.s32.totalorder %s26, 1
      %s245 = scalar_select %p244, %s26, 1
      %s246 = smul.addr %s245, 8
      %s247 = smul.addr %s246, 8
      %s248 = scalar_lea.vmem %s2, %s247
      %p249 = pneg %p73
      %p250 = pneg %p70
      %p251 = pneg %p94
      %p252 = pneg %p91
      %p253 = pneg %p115
      %p254 = pneg %p112
      %p255 = pneg %p136
      %p256 = pneg %p133
      %p257 = pneg %p157
      %p258 = pneg %p154
      %p259 = pneg %p183
      %p260 = pneg %p180
      %p261 = scmp.lt.s32.totalorder %s26, 1
      %s262 = scalar_select %p261, %s26, 1
      %s263 = smul.addr %s262, 8
      %s264 = scalar_lea.vmem %s7, %s263
      %p265 = scmp.lt.s32.totalorder %s26, 1
      %s266 = scalar_select %p265, %s26, 1
      %s267 = smul.addr %s266, 8
      %s268 = smul.addr %s267, 8
      %s269 = scalar_lea.vmem %s1, %s268
      %p270 = scmp.lt.s32.totalorder %s26, 1
      %s271 = scalar_select %p270, %s26, 1
      %s272 = smul.addr %s271, 8
      %s273 = smul.addr %s272, 8
      %s274 = scalar_lea.vmem %s2, %s273
      %p275 = scmp.lt.s32.totalorder %s26, 1
      %s276 = scalar_select %p275, %s26, 1
      %s277 = smul.addr %s276, 8
      %s278 = scalar_lea.vmem %s7, %s277
      %v280 = vld [vmem:[%s269] sm:$0xff]
      %v281 = vld [vmem:[%s269 + $0x8] sm:$0xff]
      %v282 = vld [vmem:[%s269 + $0x10] sm:$0xff]
      %v283 = vld [vmem:[%s269 + $0x18] sm:$0xff]
      %v284 = vld [vmem:[%s269 + $0x20] sm:$0xff]
      %v285 = vld [vmem:[%s269 + $0x28] sm:$0xff]
      %v286 = vld [vmem:[%s269 + $0x30] sm:$0xff]
      %v287 = vld [vmem:[%s269 + $0x38] sm:$0xff]
      %v288 = vld [vmem:[%s274] sm:$0xff]
      %v289 = vld [vmem:[%s274 + $0x8] sm:$0xff]
      %v290 = vld [vmem:[%s274 + $0x10] sm:$0xff]
      %v291 = vld [vmem:[%s274 + $0x18] sm:$0xff]
      %v292 = vld [vmem:[%s274 + $0x20] sm:$0xff]
      %v293 = vld [vmem:[%s274 + $0x28] sm:$0xff]
      %v294 = vld [vmem:[%s274 + $0x30] sm:$0xff]
      %v295 = vld [vmem:[%s274 + $0x38] sm:$0xff]
      %v296 = vlaneseq
      %v297 = vshrl.u32 %v296, 7
      %v298 = vadd.s32 %v297, 8
      %v299 = vadd.s32 %v297, 16
      %v300 = vadd.s32 %v297, 24
      %v301 = vadd.s32 %v297, 32
      %v302 = vadd.s32 %v297, 40
      %v303 = vadd.s32 %v297, 48
      %v304 = vadd.s32 %v297, 56
      %v305 = vlaneseq
      %v306 = vand.u32 %v305, 127
      %vm307 = vcmp.gt.s32.totalorder %v306, %v297
      %vm308 = vcmp.gt.s32.totalorder %v306, %v298
      %vm309 = vcmp.gt.s32.totalorder %v306, %v299
      %vm310 = vcmp.gt.s32.totalorder %v306, %v300
      %vm311 = vcmp.gt.s32.totalorder %v306, %v301
      %vm312 = vcmp.gt.s32.totalorder %v306, %v302
      %vm313 = vcmp.gt.s32.totalorder %v306, %v303
      %vm314 = vcmp.gt.s32.totalorder %v306, %v304
      %v315 = vsel %vm307, -1e+09, 0.0
      %v316 = vsel %vm308, -1e+09, 0.0
      %v317 = vsel %vm309, -1e+09, 0.0
      %v318 = vsel %vm310, -1e+09, 0.0
      %v319 = vsel %vm311, -1e+09, 0.0
      %v320 = vsel %vm312, -1e+09, 0.0
      %v321 = vsel %vm313, -1e+09, 0.0
      %v322 = vsel %vm314, -1e+09, 0.0
      %v323 = vld [vmem:[%s3] sm:$0xff]
      %v324 = vld [vmem:[%s3 + $0x8] sm:$0xff]
      %v325 = vld [vmem:[%s3 + $0x10] sm:$0xff]
      %v326 = vld [vmem:[%s3 + $0x18] sm:$0xff]
      %v327 = vld [vmem:[%s4] sm:$0xff]
      %v328 = vld [vmem:[%s4 + $0x8] sm:$0x3]
      %vm329 = vcmask 261120
      %v330 = vsel %vm329, %v280, 0.0
      %331 = vadd.xlane.f32.xlu0 %v330
      %v332 = vpop.xlane.xlu0 %331
      %v333 = vsel %vm329, %v281, 0.0
      %334 = vadd.xlane.f32.xlu0 %v333
      %v335 = vpop.xlane.xlu0 %334
      %v336 = vsel %vm329, %v282, 0.0
      %337 = vadd.xlane.f32.xlu0 %v336
      %v338 = vpop.xlane.xlu0 %337
      %v339 = vsel %vm329, %v283, 0.0
      %340 = vadd.xlane.f32.xlu0 %v339
      %v341 = vpop.xlane.xlu0 %340
      %v342 = vsel %vm329, %v284, 0.0
      %343 = vadd.xlane.f32.xlu0 %v342
      %v344 = vpop.xlane.xlu0 %343
      %v345 = vsel %vm329, %v285, 0.0
      %346 = vadd.xlane.f32.xlu0 %v345
      %v347 = vpop.xlane.xlu0 %346
      %v348 = vsel %vm329, %v286, 0.0
      %349 = vadd.xlane.f32.xlu0 %v348
      %v350 = vpop.xlane.xlu0 %349
      %v351 = vsel %vm329, %v287, 0.0
      %352 = vadd.xlane.f32.xlu0 %v351
      %v353 = vpop.xlane.xlu0 %352
      %v354 = vrcp.pop 32.0
      %v355 = vmul.f32 32.0, %v354
      %v356 = vsub.f32 1.0, %v355
      %v357 = vmul.f32 %v354, %v356
      %v358 = vadd.f32 %v354, %v357
      %vm359 = vweird.f32 %v354
      %v360 = vsel %vm359, %v354, %v358
      %v361 = vmul.f32 %v332, %v360
      %v362 = vmul.f32 %v335, %v360
      %v363 = vmul.f32 %v338, %v360
      %v364 = vmul.f32 %v341, %v360
      %v365 = vmul.f32 %v344, %v360
      %v366 = vmul.f32 %v347, %v360
      %v367 = vmul.f32 %v350, %v360
      %v368 = vmul.f32 %v353, %v360
      %v369 = vsub.f32 %v280, %v361
      %v370 = vsub.f32 %v281, %v362
      %v371 = vsub.f32 %v282, %v363
      %v372 = vsub.f32 %v283, %v364
      %v373 = vsub.f32 %v284, %v365
      %v374 = vsub.f32 %v285, %v366
      %v375 = vsub.f32 %v286, %v367
      %v376 = vsub.f32 %v287, %v368
      %v377 = vmul.f32 %v369, %v369
      %v378 = vmul.f32 %v370, %v370
      %v379 = vmul.f32 %v371, %v371
      %v380 = vmul.f32 %v372, %v372
      %v381 = vmul.f32 %v373, %v373
      %v382 = vmul.f32 %v374, %v374
      %v383 = vmul.f32 %v375, %v375
      %v384 = vmul.f32 %v376, %v376
      %v385 = vsel %vm329, %v377, 0.0
      %386 = vadd.xlane.f32.xlu0 %v385
      %v387 = vpop.xlane.xlu0 %386
      %v388 = vsel %vm329, %v378, 0.0
      %389 = vadd.xlane.f32.xlu0 %v388
      %v390 = vpop.xlane.xlu0 %389
      %v391 = vsel %vm329, %v379, 0.0
      %392 = vadd.xlane.f32.xlu0 %v391
      %v393 = vpop.xlane.xlu0 %392
      %v394 = vsel %vm329, %v380, 0.0
      %395 = vadd.xlane.f32.xlu0 %v394
      %v396 = vpop.xlane.xlu0 %395
      %v397 = vsel %vm329, %v381, 0.0
      %398 = vadd.xlane.f32.xlu0 %v397
      %v399 = vpop.xlane.xlu0 %398
      %v400 = vsel %vm329, %v382, 0.0
      %401 = vadd.xlane.f32.xlu0 %v400
      %v402 = vpop.xlane.xlu0 %401
      %v403 = vsel %vm329, %v383, 0.0
      %404 = vadd.xlane.f32.xlu0 %v403
      %v405 = vpop.xlane.xlu0 %404
      %v406 = vsel %vm329, %v384, 0.0
      %407 = vadd.xlane.f32.xlu0 %v406
      %v408 = vpop.xlane.xlu0 %407
      %v409 = vmul.f32 %v387, %v360
      %v410 = vmul.f32 %v390, %v360
      %v411 = vmul.f32 %v393, %v360
      %v412 = vmul.f32 %v396, %v360
      %v413 = vmul.f32 %v399, %v360
      %v414 = vmul.f32 %v402, %v360
      %v415 = vmul.f32 %v405, %v360
      %v416 = vmul.f32 %v408, %v360
      %v417 = vadd.f32 %v409, 1e-08
      %v418 = vadd.f32 %v410, 1e-08
      %v419 = vadd.f32 %v411, 1e-08
      %v420 = vadd.f32 %v412, 1e-08
      %v421 = vadd.f32 %v413, 1e-08
      %v422 = vadd.f32 %v414, 1e-08
      %v423 = vadd.f32 %v415, 1e-08
      %v424 = vadd.f32 %v416, 1e-08
      %v425 = vrsqrt.pop %v417
      %v426 = vmul.f32 %v425, %v417
      %v427 = vmul.f32 %v426, %v425
      %v428 = vmul.f32 0.5, %v427
      %v429 = vsub.f32 1.5, %v428
      %v430 = vmul.f32 %v425, %v429
      %vm431 = vweird.f32 %v417
      %vm432 = vweird.f32 %v425
      %vm433 = vmor %vm431, %vm432
      %v434 = vsel %vm433, %v425, %v430
      %v435 = vrsqrt.pop %v418
      %v436 = vmul.f32 %v435, %v418
      %v437 = vmul.f32 %v436, %v435
      %v438 = vmul.f32 0.5, %v437
      %v439 = vsub.f32 1.5, %v438
      %v440 = vmul.f32 %v435, %v439
      %vm441 = vweird.f32 %v418
      %vm442 = vweird.f32 %v435
      %vm443 = vmor %vm441, %vm442
      %v444 = vsel %vm443, %v435, %v440
      %v445 = vrsqrt.pop %v419
      %v446 = vmul.f32 %v445, %v419
      %v447 = vmul.f32 %v446, %v445
      %v448 = vmul.f32 0.5, %v447
      %v449 = vsub.f32 1.5, %v448
      %v450 = vmul.f32 %v445, %v449
      %vm451 = vweird.f32 %v419
      %vm452 = vweird.f32 %v445
      %vm453 = vmor %vm451, %vm452
      %v454 = vsel %vm453, %v445, %v450
      %v455 = vrsqrt.pop %v420
      %v456 = vmul.f32 %v455, %v420
      %v457 = vmul.f32 %v456, %v455
      %v458 = vmul.f32 0.5, %v457
      %v459 = vsub.f32 1.5, %v458
      %v460 = vmul.f32 %v455, %v459
      %vm461 = vweird.f32 %v420
      %vm462 = vweird.f32 %v455
      %vm463 = vmor %vm461, %vm462
      %v464 = vsel %vm463, %v455, %v460
      %v465 = vrsqrt.pop %v421
      %v466 = vmul.f32 %v465, %v421
      %v467 = vmul.f32 %v466, %v465
      %v468 = vmul.f32 0.5, %v467
      %v469 = vsub.f32 1.5, %v468
      %v470 = vmul.f32 %v465, %v469
      %vm471 = vweird.f32 %v421
      %vm472 = vweird.f32 %v465
      %vm473 = vmor %vm471, %vm472
      %v474 = vsel %vm473, %v465, %v470
      %v475 = vrsqrt.pop %v422
      %v476 = vmul.f32 %v475, %v422
      %v477 = vmul.f32 %v476, %v475
      %v478 = vmul.f32 0.5, %v477
      %v479 = vsub.f32 1.5, %v478
      %v480 = vmul.f32 %v475, %v479
      %vm481 = vweird.f32 %v422
      %vm482 = vweird.f32 %v475
      %vm483 = vmor %vm481, %vm482
      %v484 = vsel %vm483, %v475, %v480
      %v485 = vrsqrt.pop %v423
      %v486 = vmul.f32 %v485, %v423
      %v487 = vmul.f32 %v486, %v485
      %v488 = vmul.f32 0.5, %v487
      %v489 = vsub.f32 1.5, %v488
      %v490 = vmul.f32 %v485, %v489
      %vm491 = vweird.f32 %v423
      %vm492 = vweird.f32 %v485
      %vm493 = vmor %vm491, %vm492
      %v494 = vsel %vm493, %v485, %v490
      %v495 = vrsqrt.pop %v424
      %v496 = vmul.f32 %v495, %v424
      %v497 = vmul.f32 %v496, %v495
      %v498 = vmul.f32 0.5, %v497
      %v499 = vsub.f32 1.5, %v498
      %v500 = vmul.f32 %v495, %v499
      %vm501 = vweird.f32 %v424
      %vm502 = vweird.f32 %v495
      %vm503 = vmor %vm501, %vm502
      %v504 = vsel %vm503, %v495, %v500
      %v505 = vmul.f32 %v369, %v434
      %v506 = vmul.f32 %v370, %v444
      %v507 = vmul.f32 %v371, %v454
      %v508 = vmul.f32 %v372, %v464
      %v509 = vmul.f32 %v373, %v474
      %v510 = vmul.f32 %v374, %v484
      %v511 = vmul.f32 %v375, %v494
      %v512 = vmul.f32 %v376, %v504
      %v513 = vperm.slane %v327, 0
      %v514 = vmul.f32 %v505, %v513
      %v515 = vmul.f32 %v506, %v513
      %v516 = vmul.f32 %v507, %v513
      %v517 = vmul.f32 %v508, %v513
      %v518 = vmul.f32 %v509, %v513
      %v519 = vmul.f32 %v510, %v513
      %v520 = vmul.f32 %v511, %v513
      %v521 = vmul.f32 %v512, %v513
      %v522 = vperm.slane %v327, 1
      %v523 = vadd.f32 %v514, %v522
      %v524 = vadd.f32 %v515, %v522
      %v525 = vadd.f32 %v516, %v522
      %v526 = vadd.f32 %v517, %v522
      %v527 = vadd.f32 %v518, %v522
      %v528 = vadd.f32 %v519, %v522
      %v529 = vadd.f32 %v520, %v522
      %v530 = vadd.f32 %v521, %v522
      %v531 = vpack.c.bf16 %v281, %v280
      %v532 = vpack.c.bf16 %v283, %v282
      %v533 = vpack.c.bf16 %v285, %v284
      %v534 = vpack.c.bf16 %v287, %v286
      %v535 = vpack.c.bf16 %v524, %v523
      %v536 = vpack.c.bf16 %v526, %v525
      %v537 = vpack.c.bf16 %v528, %v527
      %v538 = vpack.c.bf16 %v530, %v529
      %v539 = vperm.slane %v327, 2
      %v544 = vunpack.c.l.b16 %v323
      %v545 = vunpack.c.l.b16 %v324
      %v546 = vunpack.c.l.b16 %v325
      %v547 = vunpack.c.l.b16 %v326
      %v548 = vpack.c.b16 %v545, %v544
      %v549 = vpack.c.b16 %v547, %v546
      %v553 = vsel %vm329, %v535, 0
      %v556 = vsel %vm329, %v536, 0
      %v559 = vsel %vm329, %v537, 0
      %v562 = vsel %vm329, %v538, 0
      %564 = vmatpush.bf16.msra.mxu0 0
      %565 = vmatpush.bf16.msra.mxu0 0
      %566 = vmatpush.bf16.msra.mxu0 0
      %567 = vmatpush.bf16.msra.mxu0 0
      %568 = vmatpush.bf16.msra.mxu0 0
      %569 = vmatpush.bf16.msra.mxu0 0
      %570 = vmatpush.bf16.msra.mxu0 %v549
      %571 = vmatpush.bf16.msra.mxu0 %v548
      %572 = vmatmul.bf16.gmra.mxu0 %v553
      %v573 = vpop.f32.mrf.mxu0
      %v574 = vadd.f32 %v539, %v573
      %v575 = vpop.f32.mrf.mxu0
      %v576 = vadd.f32 %v539, %v575
      %577 = vmatmul.bf16.gmra.mxu0 %v556
      %v578 = vpop.f32.mrf.mxu0
      %v579 = vadd.f32 %v539, %v578
      %v580 = vpop.f32.mrf.mxu0
      %v581 = vadd.f32 %v539, %v580
      %582 = vmatmul.bf16.gmra.mxu0 %v559
      %v583 = vpop.f32.mrf.mxu0
      %v584 = vadd.f32 %v539, %v583
      %v585 = vpop.f32.mrf.mxu0
      %v586 = vadd.f32 %v539, %v585
      %587 = vmatmul.bf16.gmra.mxu0 %v562
      %v588 = vpop.f32.mrf.mxu0
      %v589 = vadd.f32 %v539, %v588
      %v590 = vpop.f32.mrf.mxu0
      %v591 = vadd.f32 %v539, %v590
      %592 = vdwg.mxu0
      %v593 = vpack.c.bf16 %v574, %v574
      %v594 = vpack.c.bf16 %v576, %v576
      %v595 = vpack.c.bf16 %v579, %v579
      %v596 = vpack.c.bf16 %v581, %v581
      %v597 = vpack.c.bf16 %v584, %v584
      %v598 = vpack.c.bf16 %v586, %v586
      %v599 = vpack.c.bf16 %v589, %v589
      %v600 = vpack.c.bf16 %v591, %v591
      %601 = vrot.lane.b32.xlu0 %v548, 96
      %v602 = vpop.permute.xlu0 %601
      %603 = vrot.lane.b32.xlu0 %v549, 96
      %v604 = vpop.permute.xlu0 %603
      %v608 = vsel %vm329, %v531, 0
      %v611 = vsel %vm329, %v532, 0
      %v614 = vsel %vm329, %v533, 0
      %v617 = vsel %vm329, %v534, 0
      %619 = vmatpush.bf16.msra.mxu0 0
      %620 = vmatpush.bf16.msra.mxu0 0
      %621 = vmatpush.bf16.msra.mxu0 0
      %622 = vmatpush.bf16.msra.mxu0 0
      %623 = vmatpush.bf16.msra.mxu0 0
      %624 = vmatpush.bf16.msra.mxu0 0
      %625 = vmatpush.bf16.msra.mxu0 %v604
      %626 = vmatpush.bf16.msra.mxu0 %v602
      %627 = vmatmul.bf16.gmra.mxu0 %v608
      %v628 = vpop.f32.mrf.mxu0
      %v629 = vadd.f32 0.0, %v628
      %v630 = vpop.f32.mrf.mxu0
      %v631 = vadd.f32 0.0, %v630
      %632 = vmatmul.bf16.gmra.mxu0 %v611
      %v633 = vpop.f32.mrf.mxu0
      %v634 = vadd.f32 0.0, %v633
      %v635 = vpop.f32.mrf.mxu0
      %v636 = vadd.f32 0.0, %v635
      %637 = vmatmul.bf16.gmra.mxu0 %v614
      %v638 = vpop.f32.mrf.mxu0
      %v639 = vadd.f32 0.0, %v638
      %v640 = vpop.f32.mrf.mxu0
      %v641 = vadd.f32 0.0, %v640
      %642 = vmatmul.bf16.gmra.mxu0 %v617
      %v643 = vpop.f32.mrf.mxu0
      %v644 = vadd.f32 0.0, %v643
      %v645 = vpop.f32.mrf.mxu0
      %v646 = vadd.f32 0.0, %v645
      %647 = vdwg.mxu0
      %v648 = vperm.slane %v327, 3
      %v649 = vadd.f32 %v629, %v648
      %v650 = vadd.f32 %v631, %v648
      %v651 = vadd.f32 %v634, %v648
      %v652 = vadd.f32 %v636, %v648
      %v653 = vadd.f32 %v639, %v648
      %v654 = vadd.f32 %v641, %v648
      %v655 = vadd.f32 %v644, %v648
      %v656 = vadd.f32 %v646, %v648
      %v657 = vpack.c.bf16 %v649, %v649
      %v658 = vpack.c.bf16 %v650, %v650
      %v659 = vpack.c.bf16 %v651, %v651
      %v660 = vpack.c.bf16 %v652, %v652
      %v661 = vpack.c.bf16 %v653, %v653
      %v662 = vpack.c.bf16 %v654, %v654
      %v663 = vpack.c.bf16 %v655, %v655
      %v664 = vpack.c.bf16 %v656, %v656
      %v665 = vperm.slane %v327, 4
      %667 = vrot.lane.b32.xlu0 %v665, 32
      %v668 = vpop.permute.xlu0 %667
      %v670 = vadd.f32 %v629, %v668
      %v671 = vadd.f32 %v631, %v668
      %v672 = vadd.f32 %v634, %v668
      %v673 = vadd.f32 %v636, %v668
      %v674 = vadd.f32 %v639, %v668
      %v675 = vadd.f32 %v641, %v668
      %v676 = vadd.f32 %v644, %v668
      %v677 = vadd.f32 %v646, %v668
      %v678 = vpack.c.bf16 %v670, %v670
      %v679 = vpack.c.bf16 %v671, %v671
      %v680 = vpack.c.bf16 %v672, %v672
      %v681 = vpack.c.bf16 %v673, %v673
      %v682 = vpack.c.bf16 %v674, %v674
      %v683 = vpack.c.bf16 %v675, %v675
      %v684 = vpack.c.bf16 %v676, %v676
      %v685 = vpack.c.bf16 %v677, %v677
      %v694 = vunpack.c.l.b16 %v593
      %v695 = vunpack.c.l.b16 %v594
      %v696 = vunpack.c.l.b16 %v595
      %v697 = vunpack.c.l.b16 %v596
      %v698 = vunpack.c.l.b16 %v597
      %v699 = vunpack.c.l.b16 %v598
      %v700 = vunpack.c.l.b16 %v599
      %v701 = vunpack.c.l.b16 %v600
      %v702 = vpack.c.b16 %v695, %v694
      %v703 = vpack.c.b16 %v697, %v696
      %v704 = vpack.c.b16 %v699, %v698
      %v705 = vpack.c.b16 %v701, %v700
      %v714 = vunpack.c.l.b16 %v657
      %v715 = vunpack.c.l.b16 %v658
      %v716 = vunpack.c.l.b16 %v659
      %v717 = vunpack.c.l.b16 %v660
      %v718 = vunpack.c.l.b16 %v661
      %v719 = vunpack.c.l.b16 %v662
      %v720 = vunpack.c.l.b16 %v663
      %v721 = vunpack.c.l.b16 %v664
      %v722 = vpack.c.b16 %v715, %v714
      %v723 = vpack.c.b16 %v717, %v716
      %v724 = vpack.c.b16 %v719, %v718
      %v725 = vpack.c.b16 %v721, %v720
      %vm726 = vcmask 130048
      %v728 = vsel %vm726, %v702, 0
      %v731 = vsel %vm726, %v703, 0
      %v734 = vsel %vm726, %v704, 0
      %v737 = vsel %vm726, %v705, 0
      %v740 = vsel %vm726, %v722, 0
      %v743 = vsel %vm726, %v723, 0
      %v746 = vsel %vm726, %v724, 0
      %v749 = vsel %vm726, %v725, 0
      %751 = vmatpush.bf16.xpose.msra.mxu0 0
      %752 = vmatpush.bf16.xpose.msra.mxu0 0
      %753 = vmatpush.bf16.xpose.msra.mxu0 0
      %754 = vmatpush.bf16.xpose.msra.mxu0 0
      %755 = vmatpush.bf16.xpose.msra.mxu0 %v749
      %756 = vmatpush.bf16.xpose.msra.mxu0 %v746
      %757 = vmatpush.bf16.xpose.msra.mxu0 %v743
      %758 = vmatpush.bf16.xpose.msra.mxu0 %v740
      %759 = vmatmul.bf16.gmra.mxu0 %v728
      %v760 = vpop.f32.mrf.mxu0
      %v761 = vadd.f32 0.0, %v760
      %v762 = vpop.f32.mrf.mxu0
      %v763 = vadd.f32 0.0, %v762
      %764 = vmatmul.bf16.gmra.mxu0 %v731
      %v765 = vpop.f32.mrf.mxu0
      %v766 = vadd.f32 0.0, %v765
      %v767 = vpop.f32.mrf.mxu0
      %v768 = vadd.f32 0.0, %v767
      %769 = vmatmul.bf16.gmra.mxu0 %v734
      %v770 = vpop.f32.mrf.mxu0
      %v771 = vadd.f32 0.0, %v770
      %v772 = vpop.f32.mrf.mxu0
      %v773 = vadd.f32 0.0, %v772
      %774 = vmatmul.bf16.gmra.mxu0 %v737
      %v775 = vpop.f32.mrf.mxu0
      %v776 = vadd.f32 0.0, %v775
      %v777 = vpop.f32.mrf.mxu0
      %v778 = vadd.f32 0.0, %v777
      %779 = vdwg.mxu0
      %v780 = vmul.f32 %v761, 0.25
      %v781 = vmul.f32 %v763, 0.25
      %v782 = vmul.f32 %v766, 0.25
      %v783 = vmul.f32 %v768, 0.25
      %v784 = vmul.f32 %v771, 0.25
      %v785 = vmul.f32 %v773, 0.25
      %v786 = vmul.f32 %v776, 0.25
      %v787 = vmul.f32 %v778, 0.25
      %v788 = vadd.f32 %v780, %v315
      %v789 = vadd.f32 %v781, %v316
      %v790 = vadd.f32 %v782, %v317
      %v791 = vadd.f32 %v783, %v318
      %v792 = vadd.f32 %v784, %v319
      %v793 = vadd.f32 %v785, %v320
      %v794 = vadd.f32 %v786, %v321
      %v795 = vadd.f32 %v787, %v322
      %vm796 = vcmask 523264
      %v797 = vsel %vm796, %v788, -inf
      %798 = vmax.xlane.f32.xlu0 %v797
      %v799 = vpop.xlane.xlu0 %798
      %v800 = vsel %vm796, %v789, -inf
      %801 = vmax.xlane.f32.xlu0 %v800
      %v802 = vpop.xlane.xlu0 %801
      %v803 = vsel %vm796, %v790, -inf
      %804 = vmax.xlane.f32.xlu0 %v803
      %v805 = vpop.xlane.xlu0 %804
      %v806 = vsel %vm796, %v791, -inf
      %807 = vmax.xlane.f32.xlu0 %v806
      %v808 = vpop.xlane.xlu0 %807
      %v809 = vsel %vm796, %v792, -inf
      %810 = vmax.xlane.f32.xlu0 %v809
      %v811 = vpop.xlane.xlu0 %810
      %v812 = vsel %vm796, %v793, -inf
      %813 = vmax.xlane.f32.xlu0 %v812
      %v814 = vpop.xlane.xlu0 %813
      %v815 = vsel %vm796, %v794, -inf
      %816 = vmax.xlane.f32.xlu0 %v815
      %v817 = vpop.xlane.xlu0 %816
      %v818 = vsel %vm796, %v795, -inf
      %819 = vmax.xlane.f32.xlu0 %v818
      %v820 = vpop.xlane.xlu0 %819
      %v821 = vsub.f32 %v788, %v799
      %v822 = vsub.f32 %v789, %v802
      %v823 = vsub.f32 %v790, %v805
      %v824 = vsub.f32 %v791, %v808
      %v825 = vsub.f32 %v792, %v811
      %v826 = vsub.f32 %v793, %v814
      %v827 = vsub.f32 %v794, %v817
      %v828 = vsub.f32 %v795, %v820
      %v829 = vmul.f32 %v821, 1.442695
      %v830 = vpow.pop %v829
      %v831 = vmul.f32 %v822, 1.442695
      %v832 = vpow.pop %v831
      %v833 = vmul.f32 %v823, 1.442695
      %v834 = vpow.pop %v833
      %v835 = vmul.f32 %v824, 1.442695
      %v836 = vpow.pop %v835
      %v837 = vmul.f32 %v825, 1.442695
      %v838 = vpow.pop %v837
      %v839 = vmul.f32 %v826, 1.442695
      %v840 = vpow.pop %v839
      %v841 = vmul.f32 %v827, 1.442695
      %v842 = vpow.pop %v841
      %v843 = vmul.f32 %v828, 1.442695
      %v844 = vpow.pop %v843
      %v845 = vsel %vm796, %v830, 0.0
      %846 = vadd.xlane.f32.xlu0 %v845
      %v847 = vpop.xlane.xlu0 %846
      %v848 = vsel %vm796, %v832, 0.0
      %849 = vadd.xlane.f32.xlu0 %v848
      %v850 = vpop.xlane.xlu0 %849
      %v851 = vsel %vm796, %v834, 0.0
      %852 = vadd.xlane.f32.xlu0 %v851
      %v853 = vpop.xlane.xlu0 %852
      %v854 = vsel %vm796, %v836, 0.0
      %855 = vadd.xlane.f32.xlu0 %v854
      %v856 = vpop.xlane.xlu0 %855
      %v857 = vsel %vm796, %v838, 0.0
      %858 = vadd.xlane.f32.xlu0 %v857
      %v859 = vpop.xlane.xlu0 %858
      %v860 = vsel %vm796, %v840, 0.0
      %861 = vadd.xlane.f32.xlu0 %v860
      %v862 = vpop.xlane.xlu0 %861
      %v863 = vsel %vm796, %v842, 0.0
      %864 = vadd.xlane.f32.xlu0 %v863
      %v865 = vpop.xlane.xlu0 %864
      %v866 = vsel %vm796, %v844, 0.0
      %867 = vadd.xlane.f32.xlu0 %v866
      %v868 = vpop.xlane.xlu0 %867
      %v869 = vrcp.pop %v847
      %v870 = vmul.f32 %v847, %v869
      %v871 = vsub.f32 1.0, %v870
      %v872 = vmul.f32 %v869, %v871
      %v873 = vadd.f32 %v869, %v872
      %vm874 = vweird.f32 %v847
      %vm875 = vweird.f32 %v869
      %vm876 = vmor %vm874, %vm875
      %v877 = vsel %vm876, %v869, %v873
      %v878 = vand.u32 2147483647, %v847
      %vm879 = vcmp.eq.f32.partialorder %v878, 8.507059e+37
      %v880 = vand.u32 %v847, 2147483648
      %v881 = vor.u32 1.1754944e-38, %v880
      %v882 = vsel %vm879, %v881, %v877
      %v883 = vmul.f32 %v830, %v882
      %v884 = vrcp.pop %v850
      %v885 = vmul.f32 %v850, %v884
      %v886 = vsub.f32 1.0, %v885
      %v887 = vmul.f32 %v884, %v886
      %v888 = vadd.f32 %v884, %v887
      %vm889 = vweird.f32 %v850
      %vm890 = vweird.f32 %v884
      %vm891 = vmor %vm889, %vm890
      %v892 = vsel %vm891, %v884, %v888
      %v893 = vand.u32 2147483647, %v850
      %vm894 = vcmp.eq.f32.partialorder %v893, 8.507059e+37
      %v895 = vand.u32 %v850, 2147483648
      %v896 = vor.u32 1.1754944e-38, %v895
      %v897 = vsel %vm894, %v896, %v892
      %v898 = vmul.f32 %v832, %v897
      %v899 = vrcp.pop %v853
      %v900 = vmul.f32 %v853, %v899
      %v901 = vsub.f32 1.0, %v900
      %v902 = vmul.f32 %v899, %v901
      %v903 = vadd.f32 %v899, %v902
      %vm904 = vweird.f32 %v853
      %vm905 = vweird.f32 %v899
      %vm906 = vmor %vm904, %vm905
      %v907 = vsel %vm906, %v899, %v903
      %v908 = vand.u32 2147483647, %v853
      %vm909 = vcmp.eq.f32.partialorder %v908, 8.507059e+37
      %v910 = vand.u32 %v853, 2147483648
      %v911 = vor.u32 1.1754944e-38, %v910
      %v912 = vsel %vm909, %v911, %v907
      %v913 = vmul.f32 %v834, %v912
      %v914 = vrcp.pop %v856
      %v915 = vmul.f32 %v856, %v914
      %v916 = vsub.f32 1.0, %v915
      %v917 = vmul.f32 %v914, %v916
      %v918 = vadd.f32 %v914, %v917
      %vm919 = vweird.f32 %v856
      %vm920 = vweird.f32 %v914
      %vm921 = vmor %vm919, %vm920
      %v922 = vsel %vm921, %v914, %v918
      %v923 = vand.u32 2147483647, %v856
      %vm924 = vcmp.eq.f32.partialorder %v923, 8.507059e+37
      %v925 = vand.u32 %v856, 2147483648
      %v926 = vor.u32 1.1754944e-38, %v925
      %v927 = vsel %vm924, %v926, %v922
      %v928 = vmul.f32 %v836, %v927
      %v929 = vrcp.pop %v859
      %v930 = vmul.f32 %v859, %v929
      %v931 = vsub.f32 1.0, %v930
      %v932 = vmul.f32 %v929, %v931
      %v933 = vadd.f32 %v929, %v932
      %vm934 = vweird.f32 %v859
      %vm935 = vweird.f32 %v929
      %vm936 = vmor %vm934, %vm935
      %v937 = vsel %vm936, %v929, %v933
      %v938 = vand.u32 2147483647, %v859
      %vm939 = vcmp.eq.f32.partialorder %v938, 8.507059e+37
      %v940 = vand.u32 %v859, 2147483648
      %v941 = vor.u32 1.1754944e-38, %v940
      %v942 = vsel %vm939, %v941, %v937
      %v943 = vmul.f32 %v838, %v942
      %v944 = vrcp.pop %v862
      %v945 = vmul.f32 %v862, %v944
      %v946 = vsub.f32 1.0, %v945
      %v947 = vmul.f32 %v944, %v946
      %v948 = vadd.f32 %v944, %v947
      %vm949 = vweird.f32 %v862
      %vm950 = vweird.f32 %v944
      %vm951 = vmor %vm949, %vm950
      %v952 = vsel %vm951, %v944, %v948
      %v953 = vand.u32 2147483647, %v862
      %vm954 = vcmp.eq.f32.partialorder %v953, 8.507059e+37
      %v955 = vand.u32 %v862, 2147483648
      %v956 = vor.u32 1.1754944e-38, %v955
      %v957 = vsel %vm954, %v956, %v952
      %v958 = vmul.f32 %v840, %v957
      %v959 = vrcp.pop %v865
      %v960 = vmul.f32 %v865, %v959
      %v961 = vsub.f32 1.0, %v960
      %v962 = vmul.f32 %v959, %v961
      %v963 = vadd.f32 %v959, %v962
      %vm964 = vweird.f32 %v865
      %vm965 = vweird.f32 %v959
      %vm966 = vmor %vm964, %vm965
      %v967 = vsel %vm966, %v959, %v963
      %v968 = vand.u32 2147483647, %v865
      %vm969 = vcmp.eq.f32.partialorder %v968, 8.507059e+37
      %v970 = vand.u32 %v865, 2147483648
      %v971 = vor.u32 1.1754944e-38, %v970
      %v972 = vsel %vm969, %v971, %v967
      %v973 = vmul.f32 %v842, %v972
      %v974 = vrcp.pop %v868
      %v975 = vmul.f32 %v868, %v974
      %v976 = vsub.f32 1.0, %v975
      %v977 = vmul.f32 %v974, %v976
      %v978 = vadd.f32 %v974, %v977
      %vm979 = vweird.f32 %v868
      %vm980 = vweird.f32 %v974
      %vm981 = vmor %vm979, %vm980
      %v982 = vsel %vm981, %v974, %v978
      %v983 = vand.u32 2147483647, %v868
      %vm984 = vcmp.eq.f32.partialorder %v983, 8.507059e+37
      %v985 = vand.u32 %v868, 2147483648
      %v986 = vor.u32 1.1754944e-38, %v985
      %v987 = vsel %vm984, %v986, %v982
      %v988 = vmul.f32 %v844, %v987
      %v989 = vpack.c.bf16 %v898, %v883
      %v990 = vpack.c.bf16 %v928, %v913
      %v991 = vpack.c.bf16 %v958, %v943
      %v992 = vpack.c.bf16 %v988, %v973
      %v1001 = vunpack.c.l.b16 %v678
      %v1002 = vunpack.c.l.b16 %v679
      %v1003 = vunpack.c.l.b16 %v680
      %v1004 = vunpack.c.l.b16 %v681
      %v1005 = vunpack.c.l.b16 %v682
      %v1006 = vunpack.c.l.b16 %v683
      %v1007 = vunpack.c.l.b16 %v684
      %v1008 = vunpack.c.l.b16 %v685
      %v1009 = vpack.c.b16 %v1002, %v1001
      %v1010 = vpack.c.b16 %v1004, %v1003
      %v1011 = vpack.c.b16 %v1006, %v1005
      %v1012 = vpack.c.b16 %v1008, %v1007
      %1013 = vrot.lane.b32.xlu0 %v1009, 96
      %v1014 = vpop.permute.xlu0 %1013
      %1015 = vrot.lane.b32.xlu0 %v1010, 96
      %v1016 = vpop.permute.xlu0 %1015
      %1017 = vrot.lane.b32.xlu0 %v1011, 96
      %v1018 = vpop.permute.xlu0 %1017
      %1019 = vrot.lane.b32.xlu0 %v1012, 96
      %v1020 = vpop.permute.xlu0 %1019
      %v1026 = vsel %vm796, %v989, 0
      %v1029 = vsel %vm796, %v990, 0
      %v1032 = vsel %vm796, %v991, 0
      %v1035 = vsel %vm796, %v992, 0
      %1037 = vmatpush.bf16.msra.mxu0 0
      %1038 = vmatpush.bf16.msra.mxu0 0
      %1039 = vmatpush.bf16.msra.mxu0 0
      %1040 = vmatpush.bf16.msra.mxu0 0
      %1041 = vmatpush.bf16.msra.mxu0 %v1020
      %1042 = vmatpush.bf16.msra.mxu0 %v1018
      %1043 = vmatpush.bf16.msra.mxu0 %v1016
      %1044 = vmatpush.bf16.msra.mxu0 %v1014
      %1045 = vmatmul.bf16.gmra.mxu0 %v1026
      %v1046 = vpop.f32.mrf.mxu0
      %v1047 = vadd.f32 0.0, %v1046
      %v1048 = vpop.f32.mrf.mxu0
      %v1049 = vadd.f32 0.0, %v1048
      %1050 = vmatmul.bf16.gmra.mxu0 %v1029
      %v1051 = vpop.f32.mrf.mxu0
      %v1052 = vadd.f32 0.0, %v1051
      %v1053 = vpop.f32.mrf.mxu0
      %v1054 = vadd.f32 0.0, %v1053
      %1055 = vmatmul.bf16.gmra.mxu0 %v1032
      %v1056 = vpop.f32.mrf.mxu0
      %v1057 = vadd.f32 0.0, %v1056
      %v1058 = vpop.f32.mrf.mxu0
      %v1059 = vadd.f32 0.0, %v1058
      %1060 = vmatmul.bf16.gmra.mxu0 %v1035
      %v1061 = vpop.f32.mrf.mxu0
      %v1062 = vadd.f32 0.0, %v1061
      %v1063 = vpop.f32.mrf.mxu0
      %v1064 = vadd.f32 0.0, %v1063
      %1065 = vdwg.mxu0
      %1066 = vrot.lane.b32.xlu0 %v702, 112
      %v1067 = vpop.permute.xlu0 %1066
      %1068 = vrot.lane.b32.xlu0 %v703, 112
      %v1069 = vpop.permute.xlu0 %1068
      %1070 = vrot.lane.b32.xlu0 %v704, 112
      %v1071 = vpop.permute.xlu0 %1070
      %1072 = vrot.lane.b32.xlu0 %v705, 112
      %v1073 = vpop.permute.xlu0 %1072
      %1074 = vrot.lane.b32.xlu0 %v722, 112
      %v1075 = vpop.permute.xlu0 %1074
      %1076 = vrot.lane.b32.xlu0 %v723, 112
      %v1077 = vpop.permute.xlu0 %1076
      %1078 = vrot.lane.b32.xlu0 %v724, 112
      %v1079 = vpop.permute.xlu0 %1078
      %1080 = vrot.lane.b32.xlu0 %v725, 112
      %v1081 = vpop.permute.xlu0 %1080
      %v1083 = vsel %vm726, %v1067, 0
      %v1086 = vsel %vm726, %v1069, 0
      %v1089 = vsel %vm726, %v1071, 0
      %v1092 = vsel %vm726, %v1073, 0
      %v1095 = vsel %vm726, %v1075, 0
      %v1098 = vsel %vm726, %v1077, 0
      %v1101 = vsel %vm726, %v1079, 0
      %v1104 = vsel %vm726, %v1081, 0
      %1106 = vmatpush.bf16.xpose.msra.mxu0 0
      %1107 = vmatpush.bf16.xpose.msra.mxu0 0
      %1108 = vmatpush.bf16.xpose.msra.mxu0 0
      %1109 = vmatpush.bf16.xpose.msra.mxu0 0
      %1110 = vmatpush.bf16.xpose.msra.mxu0 %v1104
      %1111 = vmatpush.bf16.xpose.msra.mxu0 %v1101
      %1112 = vmatpush.bf16.xpose.msra.mxu0 %v1098
      %1113 = vmatpush.bf16.xpose.msra.mxu0 %v1095
      %1114 = vmatmul.bf16.gmra.mxu0 %v1083
      %v1115 = vpop.f32.mrf.mxu0
      %v1116 = vadd.f32 0.0, %v1115
      %v1117 = vpop.f32.mrf.mxu0
      %v1118 = vadd.f32 0.0, %v1117
      %1119 = vmatmul.bf16.gmra.mxu0 %v1086
      %v1120 = vpop.f32.mrf.mxu0
      %v1121 = vadd.f32 0.0, %v1120
      %v1122 = vpop.f32.mrf.mxu0
      %v1123 = vadd.f32 0.0, %v1122
      %1124 = vmatmul.bf16.gmra.mxu0 %v1089
      %v1125 = vpop.f32.mrf.mxu0
      %v1126 = vadd.f32 0.0, %v1125
      %v1127 = vpop.f32.mrf.mxu0
      %v1128 = vadd.f32 0.0, %v1127
      %1129 = vmatmul.bf16.gmra.mxu0 %v1092
      %v1130 = vpop.f32.mrf.mxu0
      %v1131 = vadd.f32 0.0, %v1130
      %v1132 = vpop.f32.mrf.mxu0
      %v1133 = vadd.f32 0.0, %v1132
      %1134 = vdwg.mxu0
      %v1135 = vmul.f32 %v1116, 0.25
      %v1136 = vmul.f32 %v1118, 0.25
      %v1137 = vmul.f32 %v1121, 0.25
      %v1138 = vmul.f32 %v1123, 0.25
      %v1139 = vmul.f32 %v1126, 0.25
      %v1140 = vmul.f32 %v1128, 0.25
      %v1141 = vmul.f32 %v1131, 0.25
      %v1142 = vmul.f32 %v1133, 0.25
      %v1143 = vadd.f32 %v1135, %v315
      %v1144 = vadd.f32 %v1136, %v316
      %v1145 = vadd.f32 %v1137, %v317
      %v1146 = vadd.f32 %v1138, %v318
      %v1147 = vadd.f32 %v1139, %v319
      %v1148 = vadd.f32 %v1140, %v320
      %v1149 = vadd.f32 %v1141, %v321
      %v1150 = vadd.f32 %v1142, %v322
      %v1151 = vsel %vm796, %v1143, -inf
      %1152 = vmax.xlane.f32.xlu0 %v1151
      %v1153 = vpop.xlane.xlu0 %1152
      %v1154 = vsel %vm796, %v1144, -inf
      %1155 = vmax.xlane.f32.xlu0 %v1154
      %v1156 = vpop.xlane.xlu0 %1155
      %v1157 = vsel %vm796, %v1145, -inf
      %1158 = vmax.xlane.f32.xlu0 %v1157
      %v1159 = vpop.xlane.xlu0 %1158
      %v1160 = vsel %vm796, %v1146, -inf
      %1161 = vmax.xlane.f32.xlu0 %v1160
      %v1162 = vpop.xlane.xlu0 %1161
      %v1163 = vsel %vm796, %v1147, -inf
      %1164 = vmax.xlane.f32.xlu0 %v1163
      %v1165 = vpop.xlane.xlu0 %1164
      %v1166 = vsel %vm796, %v1148, -inf
      %1167 = vmax.xlane.f32.xlu0 %v1166
      %v1168 = vpop.xlane.xlu0 %1167
      %v1169 = vsel %vm796, %v1149, -inf
      %1170 = vmax.xlane.f32.xlu0 %v1169
      %v1171 = vpop.xlane.xlu0 %1170
      %v1172 = vsel %vm796, %v1150, -inf
      %1173 = vmax.xlane.f32.xlu0 %v1172
      %v1174 = vpop.xlane.xlu0 %1173
      %v1175 = vsub.f32 %v1143, %v1153
      %v1176 = vsub.f32 %v1144, %v1156
      %v1177 = vsub.f32 %v1145, %v1159
      %v1178 = vsub.f32 %v1146, %v1162
      %v1179 = vsub.f32 %v1147, %v1165
      %v1180 = vsub.f32 %v1148, %v1168
      %v1181 = vsub.f32 %v1149, %v1171
      %v1182 = vsub.f32 %v1150, %v1174
      %v1183 = vmul.f32 %v1175, 1.442695
      %v1184 = vpow.pop %v1183
      %v1185 = vmul.f32 %v1176, 1.442695
      %v1186 = vpow.pop %v1185
      %v1187 = vmul.f32 %v1177, 1.442695
      %v1188 = vpow.pop %v1187
      %v1189 = vmul.f32 %v1178, 1.442695
      %v1190 = vpow.pop %v1189
      %v1191 = vmul.f32 %v1179, 1.442695
      %v1192 = vpow.pop %v1191
      %v1193 = vmul.f32 %v1180, 1.442695
      %v1194 = vpow.pop %v1193
      %v1195 = vmul.f32 %v1181, 1.442695
      %v1196 = vpow.pop %v1195
      %v1197 = vmul.f32 %v1182, 1.442695
      %v1198 = vpow.pop %v1197
      %v1199 = vsel %vm796, %v1184, 0.0
      %1200 = vadd.xlane.f32.xlu0 %v1199
      %v1201 = vpop.xlane.xlu0 %1200
      %v1202 = vsel %vm796, %v1186, 0.0
      %1203 = vadd.xlane.f32.xlu0 %v1202
      %v1204 = vpop.xlane.xlu0 %1203
      %v1205 = vsel %vm796, %v1188, 0.0
      %1206 = vadd.xlane.f32.xlu0 %v1205
      %v1207 = vpop.xlane.xlu0 %1206
      %v1208 = vsel %vm796, %v1190, 0.0
      %1209 = vadd.xlane.f32.xlu0 %v1208
      %v1210 = vpop.xlane.xlu0 %1209
      %v1211 = vsel %vm796, %v1192, 0.0
      %1212 = vadd.xlane.f32.xlu0 %v1211
      %v1213 = vpop.xlane.xlu0 %1212
      %v1214 = vsel %vm796, %v1194, 0.0
      %1215 = vadd.xlane.f32.xlu0 %v1214
      %v1216 = vpop.xlane.xlu0 %1215
      %v1217 = vsel %vm796, %v1196, 0.0
      %1218 = vadd.xlane.f32.xlu0 %v1217
      %v1219 = vpop.xlane.xlu0 %1218
      %v1220 = vsel %vm796, %v1198, 0.0
      %1221 = vadd.xlane.f32.xlu0 %v1220
      %v1222 = vpop.xlane.xlu0 %1221
      %v1223 = vrcp.pop %v1201
      %v1224 = vmul.f32 %v1201, %v1223
      %v1225 = vsub.f32 1.0, %v1224
      %v1226 = vmul.f32 %v1223, %v1225
      %v1227 = vadd.f32 %v1223, %v1226
      %vm1228 = vweird.f32 %v1201
      %vm1229 = vweird.f32 %v1223
      %vm1230 = vmor %vm1228, %vm1229
      %v1231 = vsel %vm1230, %v1223, %v1227
      %v1232 = vand.u32 2147483647, %v1201
      %vm1233 = vcmp.eq.f32.partialorder %v1232, 8.507059e+37
      %v1234 = vand.u32 %v1201, 2147483648
      %v1235 = vor.u32 1.1754944e-38, %v1234
      %v1236 = vsel %vm1233, %v1235, %v1231
      %v1237 = vmul.f32 %v1184, %v1236
      %v1238 = vrcp.pop %v1204
      %v1239 = vmul.f32 %v1204, %v1238
      %v1240 = vsub.f32 1.0, %v1239
      %v1241 = vmul.f32 %v1238, %v1240
      %v1242 = vadd.f32 %v1238, %v1241
      %vm1243 = vweird.f32 %v1204
      %vm1244 = vweird.f32 %v1238
      %vm1245 = vmor %vm1243, %vm1244
      %v1246 = vsel %vm1245, %v1238, %v1242
      %v1247 = vand.u32 2147483647, %v1204
      %vm1248 = vcmp.eq.f32.partialorder %v1247, 8.507059e+37
      %v1249 = vand.u32 %v1204, 2147483648
      %v1250 = vor.u32 1.1754944e-38, %v1249
      %v1251 = vsel %vm1248, %v1250, %v1246
      %v1252 = vmul.f32 %v1186, %v1251
      %v1253 = vrcp.pop %v1207
      %v1254 = vmul.f32 %v1207, %v1253
      %v1255 = vsub.f32 1.0, %v1254
      %v1256 = vmul.f32 %v1253, %v1255
      %v1257 = vadd.f32 %v1253, %v1256
      %vm1258 = vweird.f32 %v1207
      %vm1259 = vweird.f32 %v1253
      %vm1260 = vmor %vm1258, %vm1259
      %v1261 = vsel %vm1260, %v1253, %v1257
      %v1262 = vand.u32 2147483647, %v1207
      %vm1263 = vcmp.eq.f32.partialorder %v1262, 8.507059e+37
      %v1264 = vand.u32 %v1207, 2147483648
      %v1265 = vor.u32 1.1754944e-38, %v1264
      %v1266 = vsel %vm1263, %v1265, %v1261
      %v1267 = vmul.f32 %v1188, %v1266
      %v1268 = vrcp.pop %v1210
      %v1269 = vmul.f32 %v1210, %v1268
      %v1270 = vsub.f32 1.0, %v1269
      %v1271 = vmul.f32 %v1268, %v1270
      %v1272 = vadd.f32 %v1268, %v1271
      %vm1273 = vweird.f32 %v1210
      %vm1274 = vweird.f32 %v1268
      %vm1275 = vmor %vm1273, %vm1274
      %v1276 = vsel %vm1275, %v1268, %v1272
      %v1277 = vand.u32 2147483647, %v1210
      %vm1278 = vcmp.eq.f32.partialorder %v1277, 8.507059e+37
      %v1279 = vand.u32 %v1210, 2147483648
      %v1280 = vor.u32 1.1754944e-38, %v1279
      %v1281 = vsel %vm1278, %v1280, %v1276
      %v1282 = vmul.f32 %v1190, %v1281
      %v1283 = vrcp.pop %v1213
      %v1284 = vmul.f32 %v1213, %v1283
      %v1285 = vsub.f32 1.0, %v1284
      %v1286 = vmul.f32 %v1283, %v1285
      %v1287 = vadd.f32 %v1283, %v1286
      %vm1288 = vweird.f32 %v1213
      %vm1289 = vweird.f32 %v1283
      %vm1290 = vmor %vm1288, %vm1289
      %v1291 = vsel %vm1290, %v1283, %v1287
      %v1292 = vand.u32 2147483647, %v1213
      %vm1293 = vcmp.eq.f32.partialorder %v1292, 8.507059e+37
      %v1294 = vand.u32 %v1213, 2147483648
      %v1295 = vor.u32 1.1754944e-38, %v1294
      %v1296 = vsel %vm1293, %v1295, %v1291
      %v1297 = vmul.f32 %v1192, %v1296
      %v1298 = vrcp.pop %v1216
      %v1299 = vmul.f32 %v1216, %v1298
      %v1300 = vsub.f32 1.0, %v1299
      %v1301 = vmul.f32 %v1298, %v1300
      %v1302 = vadd.f32 %v1298, %v1301
      %vm1303 = vweird.f32 %v1216
      %vm1304 = vweird.f32 %v1298
      %vm1305 = vmor %vm1303, %vm1304
      %v1306 = vsel %vm1305, %v1298, %v1302
      %v1307 = vand.u32 2147483647, %v1216
      %vm1308 = vcmp.eq.f32.partialorder %v1307, 8.507059e+37
      %v1309 = vand.u32 %v1216, 2147483648
      %v1310 = vor.u32 1.1754944e-38, %v1309
      %v1311 = vsel %vm1308, %v1310, %v1306
      %v1312 = vmul.f32 %v1194, %v1311
      %v1313 = vrcp.pop %v1219
      %v1314 = vmul.f32 %v1219, %v1313
      %v1315 = vsub.f32 1.0, %v1314
      %v1316 = vmul.f32 %v1313, %v1315
      %v1317 = vadd.f32 %v1313, %v1316
      %vm1318 = vweird.f32 %v1219
      %vm1319 = vweird.f32 %v1313
      %vm1320 = vmor %vm1318, %vm1319
      %v1321 = vsel %vm1320, %v1313, %v1317
      %v1322 = vand.u32 2147483647, %v1219
      %vm1323 = vcmp.eq.f32.partialorder %v1322, 8.507059e+37
      %v1324 = vand.u32 %v1219, 2147483648
      %v1325 = vor.u32 1.1754944e-38, %v1324
      %v1326 = vsel %vm1323, %v1325, %v1321
      %v1327 = vmul.f32 %v1196, %v1326
      %v1328 = vrcp.pop %v1222
      %v1329 = vmul.f32 %v1222, %v1328
      %v1330 = vsub.f32 1.0, %v1329
      %v1331 = vmul.f32 %v1328, %v1330
      %v1332 = vadd.f32 %v1328, %v1331
      %vm1333 = vweird.f32 %v1222
      %vm1334 = vweird.f32 %v1328
      %vm1335 = vmor %vm1333, %vm1334
      %v1336 = vsel %vm1335, %v1328, %v1332
      %v1337 = vand.u32 2147483647, %v1222
      %vm1338 = vcmp.eq.f32.partialorder %v1337, 8.507059e+37
      %v1339 = vand.u32 %v1222, 2147483648
      %v1340 = vor.u32 1.1754944e-38, %v1339
      %v1341 = vsel %vm1338, %v1340, %v1336
      %v1342 = vmul.f32 %v1198, %v1341
      %v1343 = vpack.c.bf16 %v1252, %v1237
      %v1344 = vpack.c.bf16 %v1282, %v1267
      %v1345 = vpack.c.bf16 %v1312, %v1297
      %v1346 = vpack.c.bf16 %v1342, %v1327
      %1347 = vrot.lane.b32.xlu0 %v1009, 80
      %v1348 = vpop.permute.xlu0 %1347
      %1349 = vrot.lane.b32.xlu0 %v1010, 80
      %v1350 = vpop.permute.xlu0 %1349
      %1351 = vrot.lane.b32.xlu0 %v1011, 80
      %v1352 = vpop.permute.xlu0 %1351
      %1353 = vrot.lane.b32.xlu0 %v1012, 80
      %v1354 = vpop.permute.xlu0 %1353
      %v1360 = vsel %vm796, %v1343, 0
      %v1363 = vsel %vm796, %v1344, 0
      %v1366 = vsel %vm796, %v1345, 0
      %v1369 = vsel %vm796, %v1346, 0
      %1371 = vmatpush.bf16.msra.mxu0 0
      %1372 = vmatpush.bf16.msra.mxu0 0
      %1373 = vmatpush.bf16.msra.mxu0 0
      %1374 = vmatpush.bf16.msra.mxu0 0
      %1375 = vmatpush.bf16.msra.mxu0 %v1354
      %1376 = vmatpush.bf16.msra.mxu0 %v1352
      %1377 = vmatpush.bf16.msra.mxu0 %v1350
      %1378 = vmatpush.bf16.msra.mxu0 %v1348
      %1379 = vmatmul.bf16.gmra.mxu0 %v1360
      %v1380 = vpop.f32.mrf.mxu0
      %v1381 = vadd.f32 0.0, %v1380
      %v1382 = vpop.f32.mrf.mxu0
      %v1383 = vadd.f32 0.0, %v1382
      %1384 = vmatmul.bf16.gmra.mxu0 %v1363
      %v1385 = vpop.f32.mrf.mxu0
      %v1386 = vadd.f32 0.0, %v1385
      %v1387 = vpop.f32.mrf.mxu0
      %v1388 = vadd.f32 0.0, %v1387
      %1389 = vmatmul.bf16.gmra.mxu0 %v1366
      %v1390 = vpop.f32.mrf.mxu0
      %v1391 = vadd.f32 0.0, %v1390
      %v1392 = vpop.f32.mrf.mxu0
      %v1393 = vadd.f32 0.0, %v1392
      %1394 = vmatmul.bf16.gmra.mxu0 %v1369
      %v1395 = vpop.f32.mrf.mxu0
      %v1396 = vadd.f32 0.0, %v1395
      %v1397 = vpop.f32.mrf.mxu0
      %v1398 = vadd.f32 0.0, %v1397
      %1399 = vdwg.mxu0
      %1408 = vrot.lane.b32.xlu0 %v1381, 16
      %v1409 = vpop.permute.xlu0 %1408
      %1410 = vrot.lane.b32.xlu0 %v1383, 16
      %v1411 = vpop.permute.xlu0 %1410
      %1412 = vrot.lane.b32.xlu0 %v1386, 16
      %v1413 = vpop.permute.xlu0 %1412
      %1414 = vrot.lane.b32.xlu0 %v1388, 16
      %v1415 = vpop.permute.xlu0 %1414
      %1416 = vrot.lane.b32.xlu0 %v1391, 16
      %v1417 = vpop.permute.xlu0 %1416
      %1418 = vrot.lane.b32.xlu0 %v1393, 16
      %v1419 = vpop.permute.xlu0 %1418
      %1420 = vrot.lane.b32.xlu0 %v1396, 16
      %v1421 = vpop.permute.xlu0 %1420
      %1422 = vrot.lane.b32.xlu0 %v1398, 16
      %v1423 = vpop.permute.xlu0 %1422
      %v1432 = vsel %vm726, %v1047, %v1409
      %v1433 = vsel %vm726, %v1049, %v1411
      %v1434 = vsel %vm726, %v1052, %v1413
      %v1435 = vsel %vm726, %v1054, %v1415
      %v1436 = vsel %vm726, %v1057, %v1417
      %v1437 = vsel %vm726, %v1059, %v1419
      %v1438 = vsel %vm726, %v1062, %v1421
      %v1439 = vsel %vm726, %v1064, %v1423
      %v1440 = vpack.c.bf16 %v1433, %v1432
      %v1441 = vpack.c.bf16 %v1435, %v1434
      %v1442 = vpack.c.bf16 %v1437, %v1436
      %v1443 = vpack.c.bf16 %v1439, %v1438
      %v1444 = vperm.slane %v327, 5
      %1445 = vrot.lane.b32.xlu0 %v548, 32
      %v1446 = vpop.permute.xlu0 %1445
      %1447 = vrot.lane.b32.xlu0 %v549, 32
      %v1448 = vpop.permute.xlu0 %1447
      %v1452 = vsel %vm329, %v1440, 0
      %v1455 = vsel %vm329, %v1441, 0
      %v1458 = vsel %vm329, %v1442, 0
      %v1461 = vsel %vm329, %v1443, 0
      %1463 = vmatpush.bf16.msra.mxu0 0
      %1464 = vmatpush.bf16.msra.mxu0 0
      %1465 = vmatpush.bf16.msra.mxu0 0
      %1466 = vmatpush.bf16.msra.mxu0 0
      %1467 = vmatpush.bf16.msra.mxu0 0
      %1468 = vmatpush.bf16.msra.mxu0 0
      %1469 = vmatpush.bf16.msra.mxu0 %v1448
      %1470 = vmatpush.bf16.msra.mxu0 %v1446
      %1471 = vmatmul.bf16.gmra.mxu0 %v1452
      %v1472 = vpop.f32.mrf.mxu0
      %v1473 = vadd.f32 %v1444, %v1472
      %v1474 = vpop.f32.mrf.mxu0
      %v1475 = vadd.f32 %v1444, %v1474
      %1476 = vmatmul.bf16.gmra.mxu0 %v1455
      %v1477 = vpop.f32.mrf.mxu0
      %v1478 = vadd.f32 %v1444, %v1477
      %v1479 = vpop.f32.mrf.mxu0
      %v1480 = vadd.f32 %v1444, %v1479
      %1481 = vmatmul.bf16.gmra.mxu0 %v1458
      %v1482 = vpop.f32.mrf.mxu0
      %v1483 = vadd.f32 %v1444, %v1482
      %v1484 = vpop.f32.mrf.mxu0
      %v1485 = vadd.f32 %v1444, %v1484
      %1486 = vmatmul.bf16.gmra.mxu0 %v1461
      %v1487 = vpop.f32.mrf.mxu0
      %v1488 = vadd.f32 %v1444, %v1487
      %v1489 = vpop.f32.mrf.mxu0
      %v1490 = vadd.f32 %v1444, %v1489
      %1491 = vdwg.mxu0
      %v1492 = vadd.f32 %v523, %v1473
      %v1493 = vadd.f32 %v524, %v1475
      %v1494 = vadd.f32 %v525, %v1478
      %v1495 = vadd.f32 %v526, %v1480
      %v1496 = vadd.f32 %v527, %v1483
      %v1497 = vadd.f32 %v528, %v1485
      %v1498 = vadd.f32 %v529, %v1488
      %v1499 = vadd.f32 %v530, %v1490
      %v1500 = vsel %vm329, %v1492, 0.0
      %1501 = vadd.xlane.f32.xlu0 %v1500
      %v1502 = vpop.xlane.xlu0 %1501
      %v1503 = vsel %vm329, %v1493, 0.0
      %1504 = vadd.xlane.f32.xlu0 %v1503
      %v1505 = vpop.xlane.xlu0 %1504
      %v1506 = vsel %vm329, %v1494, 0.0
      %1507 = vadd.xlane.f32.xlu0 %v1506
      %v1508 = vpop.xlane.xlu0 %1507
      %v1509 = vsel %vm329, %v1495, 0.0
      %1510 = vadd.xlane.f32.xlu0 %v1509
      %v1511 = vpop.xlane.xlu0 %1510
      %v1512 = vsel %vm329, %v1496, 0.0
      %1513 = vadd.xlane.f32.xlu0 %v1512
      %v1514 = vpop.xlane.xlu0 %1513
      %v1515 = vsel %vm329, %v1497, 0.0
      %1516 = vadd.xlane.f32.xlu0 %v1515
      %v1517 = vpop.xlane.xlu0 %1516
      %v1518 = vsel %vm329, %v1498, 0.0
      %1519 = vadd.xlane.f32.xlu0 %v1518
      %v1520 = vpop.xlane.xlu0 %1519
      %v1521 = vsel %vm329, %v1499, 0.0
      %1522 = vadd.xlane.f32.xlu0 %v1521
      %v1523 = vpop.xlane.xlu0 %1522
      %v1524 = vmul.f32 %v1502, %v360
      %v1525 = vmul.f32 %v1505, %v360
      %v1526 = vmul.f32 %v1508, %v360
      %v1527 = vmul.f32 %v1511, %v360
      %v1528 = vmul.f32 %v1514, %v360
      %v1529 = vmul.f32 %v1517, %v360
      %v1530 = vmul.f32 %v1520, %v360
      %v1531 = vmul.f32 %v1523, %v360
      %v1532 = vsub.f32 %v1492, %v1524
      %v1533 = vsub.f32 %v1493, %v1525
      %v1534 = vsub.f32 %v1494, %v1526
      %v1535 = vsub.f32 %v1495, %v1527
      %v1536 = vsub.f32 %v1496, %v1528
      %v1537 = vsub.f32 %v1497, %v1529
      %v1538 = vsub.f32 %v1498, %v1530
      %v1539 = vsub.f32 %v1499, %v1531
      %v1540 = vmul.f32 %v1532, %v1532
      %v1541 = vmul.f32 %v1533, %v1533
      %v1542 = vmul.f32 %v1534, %v1534
      %v1543 = vmul.f32 %v1535, %v1535
      %v1544 = vmul.f32 %v1536, %v1536
      %v1545 = vmul.f32 %v1537, %v1537
      %v1546 = vmul.f32 %v1538, %v1538
      %v1547 = vmul.f32 %v1539, %v1539
      %v1548 = vsel %vm329, %v1540, 0.0
      %1549 = vadd.xlane.f32.xlu0 %v1548
      %v1550 = vpop.xlane.xlu0 %1549
      %v1551 = vsel %vm329, %v1541, 0.0
      %1552 = vadd.xlane.f32.xlu0 %v1551
      %v1553 = vpop.xlane.xlu0 %1552
      %v1554 = vsel %vm329, %v1542, 0.0
      %1555 = vadd.xlane.f32.xlu0 %v1554
      %v1556 = vpop.xlane.xlu0 %1555
      %v1557 = vsel %vm329, %v1543, 0.0
      %1558 = vadd.xlane.f32.xlu0 %v1557
      %v1559 = vpop.xlane.xlu0 %1558
      %v1560 = vsel %vm329, %v1544, 0.0
      %1561 = vadd.xlane.f32.xlu0 %v1560
      %v1562 = vpop.xlane.xlu0 %1561
      %v1563 = vsel %vm329, %v1545, 0.0
      %1564 = vadd.xlane.f32.xlu0 %v1563
      %v1565 = vpop.xlane.xlu0 %1564
      %v1566 = vsel %vm329, %v1546, 0.0
      %1567 = vadd.xlane.f32.xlu0 %v1566
      %v1568 = vpop.xlane.xlu0 %1567
      %v1569 = vsel %vm329, %v1547, 0.0
      %1570 = vadd.xlane.f32.xlu0 %v1569
      %v1571 = vpop.xlane.xlu0 %1570
      %v1572 = vmul.f32 %v1550, %v360
      %v1573 = vmul.f32 %v1553, %v360
      %v1574 = vmul.f32 %v1556, %v360
      %v1575 = vmul.f32 %v1559, %v360
      %v1576 = vmul.f32 %v1562, %v360
      %v1577 = vmul.f32 %v1565, %v360
      %v1578 = vmul.f32 %v1568, %v360
      %v1579 = vmul.f32 %v1571, %v360
      %v1580 = vadd.f32 %v1572, 1e-08
      %v1581 = vadd.f32 %v1573, 1e-08
      %v1582 = vadd.f32 %v1574, 1e-08
      %v1583 = vadd.f32 %v1575, 1e-08
      %v1584 = vadd.f32 %v1576, 1e-08
      %v1585 = vadd.f32 %v1577, 1e-08
      %v1586 = vadd.f32 %v1578, 1e-08
      %v1587 = vadd.f32 %v1579, 1e-08
      %v1588 = vrsqrt.pop %v1580
      %v1589 = vmul.f32 %v1588, %v1580
      %v1590 = vmul.f32 %v1589, %v1588
      %v1591 = vmul.f32 0.5, %v1590
      %v1592 = vsub.f32 1.5, %v1591
      %v1593 = vmul.f32 %v1588, %v1592
      %vm1594 = vweird.f32 %v1580
      %vm1595 = vweird.f32 %v1588
      %vm1596 = vmor %vm1594, %vm1595
      %v1597 = vsel %vm1596, %v1588, %v1593
      %v1598 = vrsqrt.pop %v1581
      %v1599 = vmul.f32 %v1598, %v1581
      %v1600 = vmul.f32 %v1599, %v1598
      %v1601 = vmul.f32 0.5, %v1600
      %v1602 = vsub.f32 1.5, %v1601
      %v1603 = vmul.f32 %v1598, %v1602
      %vm1604 = vweird.f32 %v1581
      %vm1605 = vweird.f32 %v1598
      %vm1606 = vmor %vm1604, %vm1605
      %v1607 = vsel %vm1606, %v1598, %v1603
      %v1608 = vrsqrt.pop %v1582
      %v1609 = vmul.f32 %v1608, %v1582
      %v1610 = vmul.f32 %v1609, %v1608
      %v1611 = vmul.f32 0.5, %v1610
      %v1612 = vsub.f32 1.5, %v1611
      %v1613 = vmul.f32 %v1608, %v1612
      %vm1614 = vweird.f32 %v1582
      %vm1615 = vweird.f32 %v1608
      %vm1616 = vmor %vm1614, %vm1615
      %v1617 = vsel %vm1616, %v1608, %v1613
      %v1618 = vrsqrt.pop %v1583
      %v1619 = vmul.f32 %v1618, %v1583
      %v1620 = vmul.f32 %v1619, %v1618
      %v1621 = vmul.f32 0.5, %v1620
      %v1622 = vsub.f32 1.5, %v1621
      %v1623 = vmul.f32 %v1618, %v1622
      %vm1624 = vweird.f32 %v1583
      %vm1625 = vweird.f32 %v1618
      %vm1626 = vmor %vm1624, %vm1625
      %v1627 = vsel %vm1626, %v1618, %v1623
      %v1628 = vrsqrt.pop %v1584
      %v1629 = vmul.f32 %v1628, %v1584
      %v1630 = vmul.f32 %v1629, %v1628
      %v1631 = vmul.f32 0.5, %v1630
      %v1632 = vsub.f32 1.5, %v1631
      %v1633 = vmul.f32 %v1628, %v1632
      %vm1634 = vweird.f32 %v1584
      %vm1635 = vweird.f32 %v1628
      %vm1636 = vmor %vm1634, %vm1635
      %v1637 = vsel %vm1636, %v1628, %v1633
      %v1638 = vrsqrt.pop %v1585
      %v1639 = vmul.f32 %v1638, %v1585
      %v1640 = vmul.f32 %v1639, %v1638
      %v1641 = vmul.f32 0.5, %v1640
      %v1642 = vsub.f32 1.5, %v1641
      %v1643 = vmul.f32 %v1638, %v1642
      %vm1644 = vweird.f32 %v1585
      %vm1645 = vweird.f32 %v1638
      %vm1646 = vmor %vm1644, %vm1645
      %v1647 = vsel %vm1646, %v1638, %v1643
      %v1648 = vrsqrt.pop %v1586
      %v1649 = vmul.f32 %v1648, %v1586
      %v1650 = vmul.f32 %v1649, %v1648
      %v1651 = vmul.f32 0.5, %v1650
      %v1652 = vsub.f32 1.5, %v1651
      %v1653 = vmul.f32 %v1648, %v1652
      %vm1654 = vweird.f32 %v1586
      %vm1655 = vweird.f32 %v1648
      %vm1656 = vmor %vm1654, %vm1655
      %v1657 = vsel %vm1656, %v1648, %v1653
      %v1658 = vrsqrt.pop %v1587
      %v1659 = vmul.f32 %v1658, %v1587
      %v1660 = vmul.f32 %v1659, %v1658
      %v1661 = vmul.f32 0.5, %v1660
      %v1662 = vsub.f32 1.5, %v1661
      %v1663 = vmul.f32 %v1658, %v1662
      %vm1664 = vweird.f32 %v1587
      %vm1665 = vweird.f32 %v1658
      %vm1666 = vmor %vm1664, %vm1665
      %v1667 = vsel %vm1666, %v1658, %v1663
      %v1668 = vmul.f32 %v1532, %v1597
      %v1669 = vmul.f32 %v1533, %v1607
      %v1670 = vmul.f32 %v1534, %v1617
      %v1671 = vmul.f32 %v1535, %v1627
      %v1672 = vmul.f32 %v1536, %v1637
      %v1673 = vmul.f32 %v1537, %v1647
      %v1674 = vmul.f32 %v1538, %v1657
      %v1675 = vmul.f32 %v1539, %v1667
      %v1676 = vperm.slane %v327, 6
      %v1677 = vmul.f32 %v1668, %v1676
      %v1678 = vmul.f32 %v1669, %v1676
      %v1679 = vmul.f32 %v1670, %v1676
      %v1680 = vmul.f32 %v1671, %v1676
      %v1681 = vmul.f32 %v1672, %v1676
      %v1682 = vmul.f32 %v1673, %v1676
      %v1683 = vmul.f32 %v1674, %v1676
      %v1684 = vmul.f32 %v1675, %v1676
      %v1685 = vperm.slane %v327, 7
      %v1686 = vadd.f32 %v1677, %v1685
      %v1687 = vadd.f32 %v1678, %v1685
      %v1688 = vadd.f32 %v1679, %v1685
      %v1689 = vadd.f32 %v1680, %v1685
      %v1690 = vadd.f32 %v1681, %v1685
      %v1691 = vadd.f32 %v1682, %v1685
      %v1692 = vadd.f32 %v1683, %v1685
      %v1693 = vadd.f32 %v1684, %v1685
      %v1694 = vpack.c.bf16 %v1687, %v1686
      %v1695 = vpack.c.bf16 %v1689, %v1688
      %v1696 = vpack.c.bf16 %v1691, %v1690
      %v1697 = vpack.c.bf16 %v1693, %v1692
      %v1698 = vperm.slane %v328, 0
      %v1699 = vunpack.c.h.b16 %v323
      %v1700 = vunpack.c.h.b16 %v324
      %v1701 = vunpack.c.h.b16 %v325
      %v1702 = vunpack.c.h.b16 %v326
      %v1703 = vpack.c.b16 %v1700, %v1699
      %v1704 = vpack.c.b16 %v1702, %v1701
      %v1708 = vsel %vm329, %v1694, 0
      %v1711 = vsel %vm329, %v1695, 0
      %v1714 = vsel %vm329, %v1696, 0
      %v1717 = vsel %vm329, %v1697, 0
      %1719 = vmatpush.bf16.msra.mxu0 0
      %1720 = vmatpush.bf16.msra.mxu0 0
      %1721 = vmatpush.bf16.msra.mxu0 0
      %1722 = vmatpush.bf16.msra.mxu0 0
      %1723 = vmatpush.bf16.msra.mxu0 0
      %1724 = vmatpush.bf16.msra.mxu0 0
      %1725 = vmatpush.bf16.msra.mxu0 %v1704
      %1726 = vmatpush.bf16.msra.mxu0 %v1703
      %1727 = vmatmul.bf16.gmra.mxu0 %v1708
      %v1728 = vpop.f32.mrf.mxu0
      %v1729 = vadd.f32 %v1698, %v1728
      %v1730 = vpop.f32.mrf.mxu0
      %v1731 = vadd.f32 %v1698, %v1730
      %1732 = vmatmul.bf16.gmra.mxu0 %v1711
      %v1733 = vpop.f32.mrf.mxu0
      %v1734 = vadd.f32 %v1698, %v1733
      %v1735 = vpop.f32.mrf.mxu0
      %v1736 = vadd.f32 %v1698, %v1735
      %1737 = vmatmul.bf16.gmra.mxu0 %v1714
      %v1738 = vpop.f32.mrf.mxu0
      %v1739 = vadd.f32 %v1698, %v1738
      %v1740 = vpop.f32.mrf.mxu0
      %v1741 = vadd.f32 %v1698, %v1740
      %1742 = vmatmul.bf16.gmra.mxu0 %v1717
      %v1743 = vpop.f32.mrf.mxu0
      %v1744 = vadd.f32 %v1698, %v1743
      %v1745 = vpop.f32.mrf.mxu0
      %v1746 = vadd.f32 %v1698, %v1745
      %1747 = vdwg.mxu0
      %v1748 = vmax.f32 %v1729, 0.0
      %v1749 = vmax.f32 %v1731, 0.0
      %v1750 = vmax.f32 %v1734, 0.0
      %v1751 = vmax.f32 %v1736, 0.0
      %v1752 = vmax.f32 %v1739, 0.0
      %v1753 = vmax.f32 %v1741, 0.0
      %v1754 = vmax.f32 %v1744, 0.0
      %v1755 = vmax.f32 %v1746, 0.0
      %v1756 = vpack.c.bf16 %v1749, %v1748
      %v1757 = vpack.c.bf16 %v1751, %v1750
      %v1758 = vpack.c.bf16 %v1753, %v1752
      %v1759 = vpack.c.bf16 %v1755, %v1754
      %v1760 = vperm.slane %v328, 1
      %1761 = vrot.lane.b32.xlu0 %v1703, 96
      %v1762 = vpop.permute.xlu0 %1761
      %1763 = vrot.lane.b32.xlu0 %v1704, 96
      %v1764 = vpop.permute.xlu0 %1763
      %v1768 = vsel %vm329, %v1756, 0
      %v1771 = vsel %vm329, %v1757, 0
      %v1774 = vsel %vm329, %v1758, 0
      %v1777 = vsel %vm329, %v1759, 0
      %1779 = vmatpush.bf16.msra.mxu0 0
      %1780 = vmatpush.bf16.msra.mxu0 0
      %1781 = vmatpush.bf16.msra.mxu0 0
      %1782 = vmatpush.bf16.msra.mxu0 0
      %1783 = vmatpush.bf16.msra.mxu0 0
      %1784 = vmatpush.bf16.msra.mxu0 0
      %1785 = vmatpush.bf16.msra.mxu0 %v1764
      %1786 = vmatpush.bf16.msra.mxu0 %v1762
      %1787 = vmatmul.bf16.gmra.mxu0 %v1768
      %v1788 = vpop.f32.mrf.mxu0
      %v1789 = vadd.f32 %v1760, %v1788
      %v1790 = vpop.f32.mrf.mxu0
      %v1791 = vadd.f32 %v1760, %v1790
      %1792 = vmatmul.bf16.gmra.mxu0 %v1771
      %v1793 = vpop.f32.mrf.mxu0
      %v1794 = vadd.f32 %v1760, %v1793
      %v1795 = vpop.f32.mrf.mxu0
      %v1796 = vadd.f32 %v1760, %v1795
      %1797 = vmatmul.bf16.gmra.mxu0 %v1774
      %v1798 = vpop.f32.mrf.mxu0
      %v1799 = vadd.f32 %v1760, %v1798
      %v1800 = vpop.f32.mrf.mxu0
      %v1801 = vadd.f32 %v1760, %v1800
      %1802 = vmatmul.bf16.gmra.mxu0 %v1777
      %v1803 = vpop.f32.mrf.mxu0
      %v1804 = vadd.f32 %v1760, %v1803
      %v1805 = vpop.f32.mrf.mxu0
      %v1806 = vadd.f32 %v1760, %v1805
      %1807 = vdwg.mxu0
      %v1808 = vadd.f32 %v1789, %v1686
      %v1809 = vadd.f32 %v1791, %v1687
      %v1810 = vadd.f32 %v1794, %v1688
      %v1811 = vadd.f32 %v1796, %v1689
      %v1812 = vadd.f32 %v1799, %v1690
      %v1813 = vadd.f32 %v1801, %v1691
      %v1814 = vadd.f32 %v1804, %v1692
      %v1815 = vadd.f32 %v1806, %v1693
      %v1816 = vmul.f32 %v1808, %v288
      %v1817 = vmul.f32 %v1809, %v289
      %v1818 = vmul.f32 %v1810, %v290
      %v1819 = vmul.f32 %v1811, %v291
      %v1820 = vmul.f32 %v1812, %v292
      %v1821 = vmul.f32 %v1813, %v293
      %v1822 = vmul.f32 %v1814, %v294
      %v1823 = vmul.f32 %v1815, %v295
      %s1824 = scalar_lea.vmem %s3, 32
      %v1825 = vld [vmem:[%s1824] sm:$0xff]
      %v1826 = vld [vmem:[%s1824 + $0x8] sm:$0xff]
      %v1827 = vld [vmem:[%s1824 + $0x10] sm:$0xff]
      %v1828 = vld [vmem:[%s1824 + $0x18] sm:$0xff]
      %s1829 = scalar_lea.vmem %s4, 16
      %v1830 = vld [vmem:[%s1829] sm:$0xff]
      %v1831 = vld [vmem:[%s1829 + $0x8] sm:$0x3]
      %v1832 = vsel %vm329, %v1816, 0.0
      %1833 = vadd.xlane.f32.xlu0 %v1832
      %v1834 = vpop.xlane.xlu0 %1833
      %v1835 = vsel %vm329, %v1817, 0.0
      %1836 = vadd.xlane.f32.xlu0 %v1835
      %v1837 = vpop.xlane.xlu0 %1836
      %v1838 = vsel %vm329, %v1818, 0.0
      %1839 = vadd.xlane.f32.xlu0 %v1838
      %v1840 = vpop.xlane.xlu0 %1839
      %v1841 = vsel %vm329, %v1819, 0.0
      %1842 = vadd.xlane.f32.xlu0 %v1841
      %v1843 = vpop.xlane.xlu0 %1842
      %v1844 = vsel %vm329, %v1820, 0.0
      %1845 = vadd.xlane.f32.xlu0 %v1844
      %v1846 = vpop.xlane.xlu0 %1845
      %v1847 = vsel %vm329, %v1821, 0.0
      %1848 = vadd.xlane.f32.xlu0 %v1847
      %v1849 = vpop.xlane.xlu0 %1848
      %v1850 = vsel %vm329, %v1822, 0.0
      %1851 = vadd.xlane.f32.xlu0 %v1850
      %v1852 = vpop.xlane.xlu0 %1851
      %v1853 = vsel %vm329, %v1823, 0.0
      %1854 = vadd.xlane.f32.xlu0 %v1853
      %v1855 = vpop.xlane.xlu0 %1854
      %v1856 = vmul.f32 %v1834, %v360
      %v1857 = vmul.f32 %v1837, %v360
      %v1858 = vmul.f32 %v1840, %v360
      %v1859 = vmul.f32 %v1843, %v360
      %v1860 = vmul.f32 %v1846, %v360
      %v1861 = vmul.f32 %v1849, %v360
      %v1862 = vmul.f32 %v1852, %v360
      %v1863 = vmul.f32 %v1855, %v360
      %v1864 = vsub.f32 %v1816, %v1856
      %v1865 = vsub.f32 %v1817, %v1857
      %v1866 = vsub.f32 %v1818, %v1858
      %v1867 = vsub.f32 %v1819, %v1859
      %v1868 = vsub.f32 %v1820, %v1860
      %v1869 = vsub.f32 %v1821, %v1861
      %v1870 = vsub.f32 %v1822, %v1862
      %v1871 = vsub.f32 %v1823, %v1863
      %v1872 = vmul.f32 %v1864, %v1864
      %v1873 = vmul.f32 %v1865, %v1865
      %v1874 = vmul.f32 %v1866, %v1866
      %v1875 = vmul.f32 %v1867, %v1867
      %v1876 = vmul.f32 %v1868, %v1868
      %v1877 = vmul.f32 %v1869, %v1869
      %v1878 = vmul.f32 %v1870, %v1870
      %v1879 = vmul.f32 %v1871, %v1871
      %v1880 = vsel %vm329, %v1872, 0.0
      %1881 = vadd.xlane.f32.xlu0 %v1880
      %v1882 = vpop.xlane.xlu0 %1881
      %v1883 = vsel %vm329, %v1873, 0.0
      %1884 = vadd.xlane.f32.xlu0 %v1883
      %v1885 = vpop.xlane.xlu0 %1884
      %v1886 = vsel %vm329, %v1874, 0.0
      %1887 = vadd.xlane.f32.xlu0 %v1886
      %v1888 = vpop.xlane.xlu0 %1887
      %v1889 = vsel %vm329, %v1875, 0.0
      %1890 = vadd.xlane.f32.xlu0 %v1889
      %v1891 = vpop.xlane.xlu0 %1890
      %v1892 = vsel %vm329, %v1876, 0.0
      %1893 = vadd.xlane.f32.xlu0 %v1892
      %v1894 = vpop.xlane.xlu0 %1893
      %v1895 = vsel %vm329, %v1877, 0.0
      %1896 = vadd.xlane.f32.xlu0 %v1895
      %v1897 = vpop.xlane.xlu0 %1896
      %v1898 = vsel %vm329, %v1878, 0.0
      %1899 = vadd.xlane.f32.xlu0 %v1898
      %v1900 = vpop.xlane.xlu0 %1899
      %v1901 = vsel %vm329, %v1879, 0.0
      %1902 = vadd.xlane.f32.xlu0 %v1901
      %v1903 = vpop.xlane.xlu0 %1902
      %v1904 = vmul.f32 %v1882, %v360
      %v1905 = vmul.f32 %v1885, %v360
      %v1906 = vmul.f32 %v1888, %v360
      %v1907 = vmul.f32 %v1891, %v360
      %v1908 = vmul.f32 %v1894, %v360
      %v1909 = vmul.f32 %v1897, %v360
      %v1910 = vmul.f32 %v1900, %v360
      %v1911 = vmul.f32 %v1903, %v360
      %v1912 = vadd.f32 %v1904, 1e-08
      %v1913 = vadd.f32 %v1905, 1e-08
      %v1914 = vadd.f32 %v1906, 1e-08
      %v1915 = vadd.f32 %v1907, 1e-08
      %v1916 = vadd.f32 %v1908, 1e-08
      %v1917 = vadd.f32 %v1909, 1e-08
      %v1918 = vadd.f32 %v1910, 1e-08
      %v1919 = vadd.f32 %v1911, 1e-08
      %v1920 = vrsqrt.pop %v1912
      %v1921 = vmul.f32 %v1920, %v1912
      %v1922 = vmul.f32 %v1921, %v1920
      %v1923 = vmul.f32 0.5, %v1922
      %v1924 = vsub.f32 1.5, %v1923
      %v1925 = vmul.f32 %v1920, %v1924
      %vm1926 = vweird.f32 %v1912
      %vm1927 = vweird.f32 %v1920
      %vm1928 = vmor %vm1926, %vm1927
      %v1929 = vsel %vm1928, %v1920, %v1925
      %v1930 = vrsqrt.pop %v1913
      %v1931 = vmul.f32 %v1930, %v1913
      %v1932 = vmul.f32 %v1931, %v1930
      %v1933 = vmul.f32 0.5, %v1932
      %v1934 = vsub.f32 1.5, %v1933
      %v1935 = vmul.f32 %v1930, %v1934
      %vm1936 = vweird.f32 %v1913
      %vm1937 = vweird.f32 %v1930
      %vm1938 = vmor %vm1936, %vm1937
      %v1939 = vsel %vm1938, %v1930, %v1935
      %v1940 = vrsqrt.pop %v1914
      %v1941 = vmul.f32 %v1940, %v1914
      %v1942 = vmul.f32 %v1941, %v1940
      %v1943 = vmul.f32 0.5, %v1942
      %v1944 = vsub.f32 1.5, %v1943
      %v1945 = vmul.f32 %v1940, %v1944
      %vm1946 = vweird.f32 %v1914
      %vm1947 = vweird.f32 %v1940
      %vm1948 = vmor %vm1946, %vm1947
      %v1949 = vsel %vm1948, %v1940, %v1945
      %v1950 = vrsqrt.pop %v1915
      %v1951 = vmul.f32 %v1950, %v1915
      %v1952 = vmul.f32 %v1951, %v1950
      %v1953 = vmul.f32 0.5, %v1952
      %v1954 = vsub.f32 1.5, %v1953
      %v1955 = vmul.f32 %v1950, %v1954
      %vm1956 = vweird.f32 %v1915
      %vm1957 = vweird.f32 %v1950
      %vm1958 = vmor %vm1956, %vm1957
      %v1959 = vsel %vm1958, %v1950, %v1955
      %v1960 = vrsqrt.pop %v1916
      %v1961 = vmul.f32 %v1960, %v1916
      %v1962 = vmul.f32 %v1961, %v1960
      %v1963 = vmul.f32 0.5, %v1962
      %v1964 = vsub.f32 1.5, %v1963
      %v1965 = vmul.f32 %v1960, %v1964
      %vm1966 = vweird.f32 %v1916
      %vm1967 = vweird.f32 %v1960
      %vm1968 = vmor %vm1966, %vm1967
      %v1969 = vsel %vm1968, %v1960, %v1965
      %v1970 = vrsqrt.pop %v1917
      %v1971 = vmul.f32 %v1970, %v1917
      %v1972 = vmul.f32 %v1971, %v1970
      %v1973 = vmul.f32 0.5, %v1972
      %v1974 = vsub.f32 1.5, %v1973
      %v1975 = vmul.f32 %v1970, %v1974
      %vm1976 = vweird.f32 %v1917
      %vm1977 = vweird.f32 %v1970
      %vm1978 = vmor %vm1976, %vm1977
      %v1979 = vsel %vm1978, %v1970, %v1975
      %v1980 = vrsqrt.pop %v1918
      %v1981 = vmul.f32 %v1980, %v1918
      %v1982 = vmul.f32 %v1981, %v1980
      %v1983 = vmul.f32 0.5, %v1982
      %v1984 = vsub.f32 1.5, %v1983
      %v1985 = vmul.f32 %v1980, %v1984
      %vm1986 = vweird.f32 %v1918
      %vm1987 = vweird.f32 %v1980
      %vm1988 = vmor %vm1986, %vm1987
      %v1989 = vsel %vm1988, %v1980, %v1985
      %v1990 = vrsqrt.pop %v1919
      %v1991 = vmul.f32 %v1990, %v1919
      %v1992 = vmul.f32 %v1991, %v1990
      %v1993 = vmul.f32 0.5, %v1992
      %v1994 = vsub.f32 1.5, %v1993
      %v1995 = vmul.f32 %v1990, %v1994
      %vm1996 = vweird.f32 %v1919
      %vm1997 = vweird.f32 %v1990
      %vm1998 = vmor %vm1996, %vm1997
      %v1999 = vsel %vm1998, %v1990, %v1995
      %v2000 = vmul.f32 %v1864, %v1929
      %v2001 = vmul.f32 %v1865, %v1939
      %v2002 = vmul.f32 %v1866, %v1949
      %v2003 = vmul.f32 %v1867, %v1959
      %v2004 = vmul.f32 %v1868, %v1969
      %v2005 = vmul.f32 %v1869, %v1979
      %v2006 = vmul.f32 %v1870, %v1989
      %v2007 = vmul.f32 %v1871, %v1999
      %v2008 = vperm.slane %v1830, 0
      %v2009 = vmul.f32 %v2000, %v2008
      %v2010 = vmul.f32 %v2001, %v2008
      %v2011 = vmul.f32 %v2002, %v2008
      %v2012 = vmul.f32 %v2003, %v2008
      %v2013 = vmul.f32 %v2004, %v2008
      %v2014 = vmul.f32 %v2005, %v2008
      %v2015 = vmul.f32 %v2006, %v2008
      %v2016 = vmul.f32 %v2007, %v2008
      %v2017 = vperm.slane %v1830, 1
      %v2018 = vadd.f32 %v2009, %v2017
      %v2019 = vadd.f32 %v2010, %v2017
      %v2020 = vadd.f32 %v2011, %v2017
      %v2021 = vadd.f32 %v2012, %v2017
      %v2022 = vadd.f32 %v2013, %v2017
      %v2023 = vadd.f32 %v2014, %v2017
      %v2024 = vadd.f32 %v2015, %v2017
      %v2025 = vadd.f32 %v2016, %v2017
      %v2026 = vpack.c.bf16 %v1817, %v1816
      %v2027 = vpack.c.bf16 %v1819, %v1818
      %v2028 = vpack.c.bf16 %v1821, %v1820
      %v2029 = vpack.c.bf16 %v1823, %v1822
      %v2030 = vpack.c.bf16 %v2019, %v2018
      %v2031 = vpack.c.bf16 %v2021, %v2020
      %v2032 = vpack.c.bf16 %v2023, %v2022
      %v2033 = vpack.c.bf16 %v2025, %v2024
      %v2034 = vperm.slane %v1830, 2
      %v2039 = vunpack.c.l.b16 %v1825
      %v2040 = vunpack.c.l.b16 %v1826
      %v2041 = vunpack.c.l.b16 %v1827
      %v2042 = vunpack.c.l.b16 %v1828
      %v2043 = vpack.c.b16 %v2040, %v2039
      %v2044 = vpack.c.b16 %v2042, %v2041
      %v2048 = vsel %vm329, %v2030, 0
      %v2051 = vsel %vm329, %v2031, 0
      %v2054 = vsel %vm329, %v2032, 0
      %v2057 = vsel %vm329, %v2033, 0
      %2059 = vmatpush.bf16.msra.mxu0 0
      %2060 = vmatpush.bf16.msra.mxu0 0
      %2061 = vmatpush.bf16.msra.mxu0 0
      %2062 = vmatpush.bf16.msra.mxu0 0
      %2063 = vmatpush.bf16.msra.mxu0 0
      %2064 = vmatpush.bf16.msra.mxu0 0
      %2065 = vmatpush.bf16.msra.mxu0 %v2044
      %2066 = vmatpush.bf16.msra.mxu0 %v2043
      %2067 = vmatmul.bf16.gmra.mxu0 %v2048
      %v2068 = vpop.f32.mrf.mxu0
      %v2069 = vadd.f32 %v2034, %v2068
      %v2070 = vpop.f32.mrf.mxu0
      %v2071 = vadd.f32 %v2034, %v2070
      %2072 = vmatmul.bf16.gmra.mxu0 %v2051
      %v2073 = vpop.f32.mrf.mxu0
      %v2074 = vadd.f32 %v2034, %v2073
      %v2075 = vpop.f32.mrf.mxu0
      %v2076 = vadd.f32 %v2034, %v2075
      %2077 = vmatmul.bf16.gmra.mxu0 %v2054
      %v2078 = vpop.f32.mrf.mxu0
      %v2079 = vadd.f32 %v2034, %v2078
      %v2080 = vpop.f32.mrf.mxu0
      %v2081 = vadd.f32 %v2034, %v2080
      %2082 = vmatmul.bf16.gmra.mxu0 %v2057
      %v2083 = vpop.f32.mrf.mxu0
      %v2084 = vadd.f32 %v2034, %v2083
      %v2085 = vpop.f32.mrf.mxu0
      %v2086 = vadd.f32 %v2034, %v2085
      %2087 = vdwg.mxu0
      %v2088 = vpack.c.bf16 %v2069, %v2069
      %v2089 = vpack.c.bf16 %v2071, %v2071
      %v2090 = vpack.c.bf16 %v2074, %v2074
      %v2091 = vpack.c.bf16 %v2076, %v2076
      %v2092 = vpack.c.bf16 %v2079, %v2079
      %v2093 = vpack.c.bf16 %v2081, %v2081
      %v2094 = vpack.c.bf16 %v2084, %v2084
      %v2095 = vpack.c.bf16 %v2086, %v2086
      %2096 = vrot.lane.b32.xlu0 %v2043, 96
      %v2097 = vpop.permute.xlu0 %2096
      %2098 = vrot.lane.b32.xlu0 %v2044, 96
      %v2099 = vpop.permute.xlu0 %2098
      %v2103 = vsel %vm329, %v2026, 0
      %v2106 = vsel %vm329, %v2027, 0
      %v2109 = vsel %vm329, %v2028, 0
      %v2112 = vsel %vm329, %v2029, 0
      %2114 = vmatpush.bf16.msra.mxu0 0
      %2115 = vmatpush.bf16.msra.mxu0 0
      %2116 = vmatpush.bf16.msra.mxu0 0
      %2117 = vmatpush.bf16.msra.mxu0 0
      %2118 = vmatpush.bf16.msra.mxu0 0
      %2119 = vmatpush.bf16.msra.mxu0 0
      %2120 = vmatpush.bf16.msra.mxu0 %v2099
      %2121 = vmatpush.bf16.msra.mxu0 %v2097
      %2122 = vmatmul.bf16.gmra.mxu0 %v2103
      %v2123 = vpop.f32.mrf.mxu0
      %v2124 = vadd.f32 0.0, %v2123
      %v2125 = vpop.f32.mrf.mxu0
      %v2126 = vadd.f32 0.0, %v2125
      %2127 = vmatmul.bf16.gmra.mxu0 %v2106
      %v2128 = vpop.f32.mrf.mxu0
      %v2129 = vadd.f32 0.0, %v2128
      %v2130 = vpop.f32.mrf.mxu0
      %v2131 = vadd.f32 0.0, %v2130
      %2132 = vmatmul.bf16.gmra.mxu0 %v2109
      %v2133 = vpop.f32.mrf.mxu0
      %v2134 = vadd.f32 0.0, %v2133
      %v2135 = vpop.f32.mrf.mxu0
      %v2136 = vadd.f32 0.0, %v2135
      %2137 = vmatmul.bf16.gmra.mxu0 %v2112
      %v2138 = vpop.f32.mrf.mxu0
      %v2139 = vadd.f32 0.0, %v2138
      %v2140 = vpop.f32.mrf.mxu0
      %v2141 = vadd.f32 0.0, %v2140
      %2142 = vdwg.mxu0
      %v2143 = vperm.slane %v1830, 3
      %v2144 = vadd.f32 %v2124, %v2143
      %v2145 = vadd.f32 %v2126, %v2143
      %v2146 = vadd.f32 %v2129, %v2143
      %v2147 = vadd.f32 %v2131, %v2143
      %v2148 = vadd.f32 %v2134, %v2143
      %v2149 = vadd.f32 %v2136, %v2143
      %v2150 = vadd.f32 %v2139, %v2143
      %v2151 = vadd.f32 %v2141, %v2143
      %v2152 = vpack.c.bf16 %v2144, %v2144
      %v2153 = vpack.c.bf16 %v2145, %v2145
      %v2154 = vpack.c.bf16 %v2146, %v2146
      %v2155 = vpack.c.bf16 %v2147, %v2147
      %v2156 = vpack.c.bf16 %v2148, %v2148
      %v2157 = vpack.c.bf16 %v2149, %v2149
      %v2158 = vpack.c.bf16 %v2150, %v2150
      %v2159 = vpack.c.bf16 %v2151, %v2151
      %v2160 = vperm.slane %v1830, 4
      %2162 = vrot.lane.b32.xlu0 %v2160, 32
      %v2163 = vpop.permute.xlu0 %2162
      %v2165 = vadd.f32 %v2124, %v2163
      %v2166 = vadd.f32 %v2126, %v2163
      %v2167 = vadd.f32 %v2129, %v2163
      %v2168 = vadd.f32 %v2131, %v2163
      %v2169 = vadd.f32 %v2134, %v2163
      %v2170 = vadd.f32 %v2136, %v2163
      %v2171 = vadd.f32 %v2139, %v2163
      %v2172 = vadd.f32 %v2141, %v2163
      %v2173 = vpack.c.bf16 %v2165, %v2165
      %v2174 = vpack.c.bf16 %v2166, %v2166
      %v2175 = vpack.c.bf16 %v2167, %v2167
      %v2176 = vpack.c.bf16 %v2168, %v2168
      %v2177 = vpack.c.bf16 %v2169, %v2169
      %v2178 = vpack.c.bf16 %v2170, %v2170
      %v2179 = vpack.c.bf16 %v2171, %v2171
      %v2180 = vpack.c.bf16 %v2172, %v2172
      %v2189 = vunpack.c.l.b16 %v2088
      %v2190 = vunpack.c.l.b16 %v2089
      %v2191 = vunpack.c.l.b16 %v2090
      %v2192 = vunpack.c.l.b16 %v2091
      %v2193 = vunpack.c.l.b16 %v2092
      %v2194 = vunpack.c.l.b16 %v2093
      %v2195 = vunpack.c.l.b16 %v2094
      %v2196 = vunpack.c.l.b16 %v2095
      %v2197 = vpack.c.b16 %v2190, %v2189
      %v2198 = vpack.c.b16 %v2192, %v2191
      %v2199 = vpack.c.b16 %v2194, %v2193
      %v2200 = vpack.c.b16 %v2196, %v2195
      %v2209 = vunpack.c.l.b16 %v2152
      %v2210 = vunpack.c.l.b16 %v2153
      %v2211 = vunpack.c.l.b16 %v2154
      %v2212 = vunpack.c.l.b16 %v2155
      %v2213 = vunpack.c.l.b16 %v2156
      %v2214 = vunpack.c.l.b16 %v2157
      %v2215 = vunpack.c.l.b16 %v2158
      %v2216 = vunpack.c.l.b16 %v2159
      %v2217 = vpack.c.b16 %v2210, %v2209
      %v2218 = vpack.c.b16 %v2212, %v2211
      %v2219 = vpack.c.b16 %v2214, %v2213
      %v2220 = vpack.c.b16 %v2216, %v2215
      %v2222 = vsel %vm726, %v2197, 0
      %v2225 = vsel %vm726, %v2198, 0
      %v2228 = vsel %vm726, %v2199, 0
      %v2231 = vsel %vm726, %v2200, 0
      %v2234 = vsel %vm726, %v2217, 0
      %v2237 = vsel %vm726, %v2218, 0
      %v2240 = vsel %vm726, %v2219, 0
      %v2243 = vsel %vm726, %v2220, 0
      %2245 = vmatpush.bf16.xpose.msra.mxu0 0
      %2246 = vmatpush.bf16.xpose.msra.mxu0 0
      %2247 = vmatpush.bf16.xpose.msra.mxu0 0
      %2248 = vmatpush.bf16.xpose.msra.mxu0 0
      %2249 = vmatpush.bf16.xpose.msra.mxu0 %v2243
      %2250 = vmatpush.bf16.xpose.msra.mxu0 %v2240
      %2251 = vmatpush.bf16.xpose.msra.mxu0 %v2237
      %2252 = vmatpush.bf16.xpose.msra.mxu0 %v2234
      %2253 = vmatmul.bf16.gmra.mxu0 %v2222
      %v2254 = vpop.f32.mrf.mxu0
      %v2255 = vadd.f32 0.0, %v2254
      %v2256 = vpop.f32.mrf.mxu0
      %v2257 = vadd.f32 0.0, %v2256
      %2258 = vmatmul.bf16.gmra.mxu0 %v2225
      %v2259 = vpop.f32.mrf.mxu0
      %v2260 = vadd.f32 0.0, %v2259
      %v2261 = vpop.f32.mrf.mxu0
      %v2262 = vadd.f32 0.0, %v2261
      %2263 = vmatmul.bf16.gmra.mxu0 %v2228
      %v2264 = vpop.f32.mrf.mxu0
      %v2265 = vadd.f32 0.0, %v2264
      %v2266 = vpop.f32.mrf.mxu0
      %v2267 = vadd.f32 0.0, %v2266
      %2268 = vmatmul.bf16.gmra.mxu0 %v2231
      %v2269 = vpop.f32.mrf.mxu0
      %v2270 = vadd.f32 0.0, %v2269
      %v2271 = vpop.f32.mrf.mxu0
      %v2272 = vadd.f32 0.0, %v2271
      %2273 = vdwg.mxu0
      %v2274 = vmul.f32 %v2255, 0.25
      %v2275 = vmul.f32 %v2257, 0.25
      %v2276 = vmul.f32 %v2260, 0.25
      %v2277 = vmul.f32 %v2262, 0.25
      %v2278 = vmul.f32 %v2265, 0.25
      %v2279 = vmul.f32 %v2267, 0.25
      %v2280 = vmul.f32 %v2270, 0.25
      %v2281 = vmul.f32 %v2272, 0.25
      %v2282 = vadd.f32 %v2274, %v315
      %v2283 = vadd.f32 %v2275, %v316
      %v2284 = vadd.f32 %v2276, %v317
      %v2285 = vadd.f32 %v2277, %v318
      %v2286 = vadd.f32 %v2278, %v319
      %v2287 = vadd.f32 %v2279, %v320
      %v2288 = vadd.f32 %v2280, %v321
      %v2289 = vadd.f32 %v2281, %v322
      %v2290 = vsel %vm796, %v2282, -inf
      %2291 = vmax.xlane.f32.xlu0 %v2290
      %v2292 = vpop.xlane.xlu0 %2291
      %v2293 = vsel %vm796, %v2283, -inf
      %2294 = vmax.xlane.f32.xlu0 %v2293
      %v2295 = vpop.xlane.xlu0 %2294
      %v2296 = vsel %vm796, %v2284, -inf
      %2297 = vmax.xlane.f32.xlu0 %v2296
      %v2298 = vpop.xlane.xlu0 %2297
      %v2299 = vsel %vm796, %v2285, -inf
      %2300 = vmax.xlane.f32.xlu0 %v2299
      %v2301 = vpop.xlane.xlu0 %2300
      %v2302 = vsel %vm796, %v2286, -inf
      %2303 = vmax.xlane.f32.xlu0 %v2302
      %v2304 = vpop.xlane.xlu0 %2303
      %v2305 = vsel %vm796, %v2287, -inf
      %2306 = vmax.xlane.f32.xlu0 %v2305
      %v2307 = vpop.xlane.xlu0 %2306
      %v2308 = vsel %vm796, %v2288, -inf
      %2309 = vmax.xlane.f32.xlu0 %v2308
      %v2310 = vpop.xlane.xlu0 %2309
      %v2311 = vsel %vm796, %v2289, -inf
      %2312 = vmax.xlane.f32.xlu0 %v2311
      %v2313 = vpop.xlane.xlu0 %2312
      %v2314 = vsub.f32 %v2282, %v2292
      %v2315 = vsub.f32 %v2283, %v2295
      %v2316 = vsub.f32 %v2284, %v2298
      %v2317 = vsub.f32 %v2285, %v2301
      %v2318 = vsub.f32 %v2286, %v2304
      %v2319 = vsub.f32 %v2287, %v2307
      %v2320 = vsub.f32 %v2288, %v2310
      %v2321 = vsub.f32 %v2289, %v2313
      %v2322 = vmul.f32 %v2314, 1.442695
      %v2323 = vpow.pop %v2322
      %v2324 = vmul.f32 %v2315, 1.442695
      %v2325 = vpow.pop %v2324
      %v2326 = vmul.f32 %v2316, 1.442695
      %v2327 = vpow.pop %v2326
      %v2328 = vmul.f32 %v2317, 1.442695
      %v2329 = vpow.pop %v2328
      %v2330 = vmul.f32 %v2318, 1.442695
      %v2331 = vpow.pop %v2330
      %v2332 = vmul.f32 %v2319, 1.442695
      %v2333 = vpow.pop %v2332
      %v2334 = vmul.f32 %v2320, 1.442695
      %v2335 = vpow.pop %v2334
      %v2336 = vmul.f32 %v2321, 1.442695
      %v2337 = vpow.pop %v2336
      %v2338 = vsel %vm796, %v2323, 0.0
      %2339 = vadd.xlane.f32.xlu0 %v2338
      %v2340 = vpop.xlane.xlu0 %2339
      %v2341 = vsel %vm796, %v2325, 0.0
      %2342 = vadd.xlane.f32.xlu0 %v2341
      %v2343 = vpop.xlane.xlu0 %2342
      %v2344 = vsel %vm796, %v2327, 0.0
      %2345 = vadd.xlane.f32.xlu0 %v2344
      %v2346 = vpop.xlane.xlu0 %2345
      %v2347 = vsel %vm796, %v2329, 0.0
      %2348 = vadd.xlane.f32.xlu0 %v2347
      %v2349 = vpop.xlane.xlu0 %2348
      %v2350 = vsel %vm796, %v2331, 0.0
      %2351 = vadd.xlane.f32.xlu0 %v2350
      %v2352 = vpop.xlane.xlu0 %2351
      %v2353 = vsel %vm796, %v2333, 0.0
      %2354 = vadd.xlane.f32.xlu0 %v2353
      %v2355 = vpop.xlane.xlu0 %2354
      %v2356 = vsel %vm796, %v2335, 0.0
      %2357 = vadd.xlane.f32.xlu0 %v2356
      %v2358 = vpop.xlane.xlu0 %2357
      %v2359 = vsel %vm796, %v2337, 0.0
      %2360 = vadd.xlane.f32.xlu0 %v2359
      %v2361 = vpop.xlane.xlu0 %2360
      %v2362 = vrcp.pop %v2340
      %v2363 = vmul.f32 %v2340, %v2362
      %v2364 = vsub.f32 1.0, %v2363
      %v2365 = vmul.f32 %v2362, %v2364
      %v2366 = vadd.f32 %v2362, %v2365
      %vm2367 = vweird.f32 %v2340
      %vm2368 = vweird.f32 %v2362
      %vm2369 = vmor %vm2367, %vm2368
      %v2370 = vsel %vm2369, %v2362, %v2366
      %v2371 = vand.u32 2147483647, %v2340
      %vm2372 = vcmp.eq.f32.partialorder %v2371, 8.507059e+37
      %v2373 = vand.u32 %v2340, 2147483648
      %v2374 = vor.u32 1.1754944e-38, %v2373
      %v2375 = vsel %vm2372, %v2374, %v2370
      %v2376 = vmul.f32 %v2323, %v2375
      %v2377 = vrcp.pop %v2343
      %v2378 = vmul.f32 %v2343, %v2377
      %v2379 = vsub.f32 1.0, %v2378
      %v2380 = vmul.f32 %v2377, %v2379
      %v2381 = vadd.f32 %v2377, %v2380
      %vm2382 = vweird.f32 %v2343
      %vm2383 = vweird.f32 %v2377
      %vm2384 = vmor %vm2382, %vm2383
      %v2385 = vsel %vm2384, %v2377, %v2381
      %v2386 = vand.u32 2147483647, %v2343
      %vm2387 = vcmp.eq.f32.partialorder %v2386, 8.507059e+37
      %v2388 = vand.u32 %v2343, 2147483648
      %v2389 = vor.u32 1.1754944e-38, %v2388
      %v2390 = vsel %vm2387, %v2389, %v2385
      %v2391 = vmul.f32 %v2325, %v2390
      %v2392 = vrcp.pop %v2346
      %v2393 = vmul.f32 %v2346, %v2392
      %v2394 = vsub.f32 1.0, %v2393
      %v2395 = vmul.f32 %v2392, %v2394
      %v2396 = vadd.f32 %v2392, %v2395
      %vm2397 = vweird.f32 %v2346
      %vm2398 = vweird.f32 %v2392
      %vm2399 = vmor %vm2397, %vm2398
      %v2400 = vsel %vm2399, %v2392, %v2396
      %v2401 = vand.u32 2147483647, %v2346
      %vm2402 = vcmp.eq.f32.partialorder %v2401, 8.507059e+37
      %v2403 = vand.u32 %v2346, 2147483648
      %v2404 = vor.u32 1.1754944e-38, %v2403
      %v2405 = vsel %vm2402, %v2404, %v2400
      %v2406 = vmul.f32 %v2327, %v2405
      %v2407 = vrcp.pop %v2349
      %v2408 = vmul.f32 %v2349, %v2407
      %v2409 = vsub.f32 1.0, %v2408
      %v2410 = vmul.f32 %v2407, %v2409
      %v2411 = vadd.f32 %v2407, %v2410
      %vm2412 = vweird.f32 %v2349
      %vm2413 = vweird.f32 %v2407
      %vm2414 = vmor %vm2412, %vm2413
      %v2415 = vsel %vm2414, %v2407, %v2411
      %v2416 = vand.u32 2147483647, %v2349
      %vm2417 = vcmp.eq.f32.partialorder %v2416, 8.507059e+37
      %v2418 = vand.u32 %v2349, 2147483648
      %v2419 = vor.u32 1.1754944e-38, %v2418
      %v2420 = vsel %vm2417, %v2419, %v2415
      %v2421 = vmul.f32 %v2329, %v2420
      %v2422 = vrcp.pop %v2352
      %v2423 = vmul.f32 %v2352, %v2422
      %v2424 = vsub.f32 1.0, %v2423
      %v2425 = vmul.f32 %v2422, %v2424
      %v2426 = vadd.f32 %v2422, %v2425
      %vm2427 = vweird.f32 %v2352
      %vm2428 = vweird.f32 %v2422
      %vm2429 = vmor %vm2427, %vm2428
      %v2430 = vsel %vm2429, %v2422, %v2426
      %v2431 = vand.u32 2147483647, %v2352
      %vm2432 = vcmp.eq.f32.partialorder %v2431, 8.507059e+37
      %v2433 = vand.u32 %v2352, 2147483648
      %v2434 = vor.u32 1.1754944e-38, %v2433
      %v2435 = vsel %vm2432, %v2434, %v2430
      %v2436 = vmul.f32 %v2331, %v2435
      %v2437 = vrcp.pop %v2355
      %v2438 = vmul.f32 %v2355, %v2437
      %v2439 = vsub.f32 1.0, %v2438
      %v2440 = vmul.f32 %v2437, %v2439
      %v2441 = vadd.f32 %v2437, %v2440
      %vm2442 = vweird.f32 %v2355
      %vm2443 = vweird.f32 %v2437
      %vm2444 = vmor %vm2442, %vm2443
      %v2445 = vsel %vm2444, %v2437, %v2441
      %v2446 = vand.u32 2147483647, %v2355
      %vm2447 = vcmp.eq.f32.partialorder %v2446, 8.507059e+37
      %v2448 = vand.u32 %v2355, 2147483648
      %v2449 = vor.u32 1.1754944e-38, %v2448
      %v2450 = vsel %vm2447, %v2449, %v2445
      %v2451 = vmul.f32 %v2333, %v2450
      %v2452 = vrcp.pop %v2358
      %v2453 = vmul.f32 %v2358, %v2452
      %v2454 = vsub.f32 1.0, %v2453
      %v2455 = vmul.f32 %v2452, %v2454
      %v2456 = vadd.f32 %v2452, %v2455
      %vm2457 = vweird.f32 %v2358
      %vm2458 = vweird.f32 %v2452
      %vm2459 = vmor %vm2457, %vm2458
      %v2460 = vsel %vm2459, %v2452, %v2456
      %v2461 = vand.u32 2147483647, %v2358
      %vm2462 = vcmp.eq.f32.partialorder %v2461, 8.507059e+37
      %v2463 = vand.u32 %v2358, 2147483648
      %v2464 = vor.u32 1.1754944e-38, %v2463
      %v2465 = vsel %vm2462, %v2464, %v2460
      %v2466 = vmul.f32 %v2335, %v2465
      %v2467 = vrcp.pop %v2361
      %v2468 = vmul.f32 %v2361, %v2467
      %v2469 = vsub.f32 1.0, %v2468
      %v2470 = vmul.f32 %v2467, %v2469
      %v2471 = vadd.f32 %v2467, %v2470
      %vm2472 = vweird.f32 %v2361
      %vm2473 = vweird.f32 %v2467
      %vm2474 = vmor %vm2472, %vm2473
      %v2475 = vsel %vm2474, %v2467, %v2471
      %v2476 = vand.u32 2147483647, %v2361
      %vm2477 = vcmp.eq.f32.partialorder %v2476, 8.507059e+37
      %v2478 = vand.u32 %v2361, 2147483648
      %v2479 = vor.u32 1.1754944e-38, %v2478
      %v2480 = vsel %vm2477, %v2479, %v2475
      %v2481 = vmul.f32 %v2337, %v2480
      %v2482 = vpack.c.bf16 %v2391, %v2376
      %v2483 = vpack.c.bf16 %v2421, %v2406
      %v2484 = vpack.c.bf16 %v2451, %v2436
      %v2485 = vpack.c.bf16 %v2481, %v2466
      %v2494 = vunpack.c.l.b16 %v2173
      %v2495 = vunpack.c.l.b16 %v2174
      %v2496 = vunpack.c.l.b16 %v2175
      %v2497 = vunpack.c.l.b16 %v2176
      %v2498 = vunpack.c.l.b16 %v2177
      %v2499 = vunpack.c.l.b16 %v2178
      %v2500 = vunpack.c.l.b16 %v2179
      %v2501 = vunpack.c.l.b16 %v2180
      %v2502 = vpack.c.b16 %v2495, %v2494
      %v2503 = vpack.c.b16 %v2497, %v2496
      %v2504 = vpack.c.b16 %v2499, %v2498
      %v2505 = vpack.c.b16 %v2501, %v2500
      %2506 = vrot.lane.b32.xlu0 %v2502, 96
      %v2507 = vpop.permute.xlu0 %2506
      %2508 = vrot.lane.b32.xlu0 %v2503, 96
      %v2509 = vpop.permute.xlu0 %2508
      %2510 = vrot.lane.b32.xlu0 %v2504, 96
      %v2511 = vpop.permute.xlu0 %2510
      %2512 = vrot.lane.b32.xlu0 %v2505, 96
      %v2513 = vpop.permute.xlu0 %2512
      %v2519 = vsel %vm796, %v2482, 0
      %v2522 = vsel %vm796, %v2483, 0
      %v2525 = vsel %vm796, %v2484, 0
      %v2528 = vsel %vm796, %v2485, 0
      %2530 = vmatpush.bf16.msra.mxu0 0
      %2531 = vmatpush.bf16.msra.mxu0 0
      %2532 = vmatpush.bf16.msra.mxu0 0
      %2533 = vmatpush.bf16.msra.mxu0 0
      %2534 = vmatpush.bf16.msra.mxu0 %v2513
      %2535 = vmatpush.bf16.msra.mxu0 %v2511
      %2536 = vmatpush.bf16.msra.mxu0 %v2509
      %2537 = vmatpush.bf16.msra.mxu0 %v2507
      %2538 = vmatmul.bf16.gmra.mxu0 %v2519
      %v2539 = vpop.f32.mrf.mxu0
      %v2540 = vadd.f32 0.0, %v2539
      %v2541 = vpop.f32.mrf.mxu0
      %v2542 = vadd.f32 0.0, %v2541
      %2543 = vmatmul.bf16.gmra.mxu0 %v2522
      %v2544 = vpop.f32.mrf.mxu0
      %v2545 = vadd.f32 0.0, %v2544
      %v2546 = vpop.f32.mrf.mxu0
      %v2547 = vadd.f32 0.0, %v2546
      %2548 = vmatmul.bf16.gmra.mxu0 %v2525
      %v2549 = vpop.f32.mrf.mxu0
      %v2550 = vadd.f32 0.0, %v2549
      %v2551 = vpop.f32.mrf.mxu0
      %v2552 = vadd.f32 0.0, %v2551
      %2553 = vmatmul.bf16.gmra.mxu0 %v2528
      %v2554 = vpop.f32.mrf.mxu0
      %v2555 = vadd.f32 0.0, %v2554
      %v2556 = vpop.f32.mrf.mxu0
      %v2557 = vadd.f32 0.0, %v2556
      %2558 = vdwg.mxu0
      %2559 = vrot.lane.b32.xlu0 %v2197, 112
      %v2560 = vpop.permute.xlu0 %2559
      %2561 = vrot.lane.b32.xlu0 %v2198, 112
      %v2562 = vpop.permute.xlu0 %2561
      %2563 = vrot.lane.b32.xlu0 %v2199, 112
      %v2564 = vpop.permute.xlu0 %2563
      %2565 = vrot.lane.b32.xlu0 %v2200, 112
      %v2566 = vpop.permute.xlu0 %2565
      %2567 = vrot.lane.b32.xlu0 %v2217, 112
      %v2568 = vpop.permute.xlu0 %2567
      %2569 = vrot.lane.b32.xlu0 %v2218, 112
      %v2570 = vpop.permute.xlu0 %2569
      %2571 = vrot.lane.b32.xlu0 %v2219, 112
      %v2572 = vpop.permute.xlu0 %2571
      %2573 = vrot.lane.b32.xlu0 %v2220, 112
      %v2574 = vpop.permute.xlu0 %2573
      %v2576 = vsel %vm726, %v2560, 0
      %v2579 = vsel %vm726, %v2562, 0
      %v2582 = vsel %vm726, %v2564, 0
      %v2585 = vsel %vm726, %v2566, 0
      %v2588 = vsel %vm726, %v2568, 0
      %v2591 = vsel %vm726, %v2570, 0
      %v2594 = vsel %vm726, %v2572, 0
      %v2597 = vsel %vm726, %v2574, 0
      %2599 = vmatpush.bf16.xpose.msra.mxu0 0
      %2600 = vmatpush.bf16.xpose.msra.mxu0 0
      %2601 = vmatpush.bf16.xpose.msra.mxu0 0
      %2602 = vmatpush.bf16.xpose.msra.mxu0 0
      %2603 = vmatpush.bf16.xpose.msra.mxu0 %v2597
      %2604 = vmatpush.bf16.xpose.msra.mxu0 %v2594
      %2605 = vmatpush.bf16.xpose.msra.mxu0 %v2591
      %2606 = vmatpush.bf16.xpose.msra.mxu0 %v2588
      %2607 = vmatmul.bf16.gmra.mxu0 %v2576
      %v2608 = vpop.f32.mrf.mxu0
      %v2609 = vadd.f32 0.0, %v2608
      %v2610 = vpop.f32.mrf.mxu0
      %v2611 = vadd.f32 0.0, %v2610
      %2612 = vmatmul.bf16.gmra.mxu0 %v2579
      %v2613 = vpop.f32.mrf.mxu0
      %v2614 = vadd.f32 0.0, %v2613
      %v2615 = vpop.f32.mrf.mxu0
      %v2616 = vadd.f32 0.0, %v2615
      %2617 = vmatmul.bf16.gmra.mxu0 %v2582
      %v2618 = vpop.f32.mrf.mxu0
      %v2619 = vadd.f32 0.0, %v2618
      %v2620 = vpop.f32.mrf.mxu0
      %v2621 = vadd.f32 0.0, %v2620
      %2622 = vmatmul.bf16.gmra.mxu0 %v2585
      %v2623 = vpop.f32.mrf.mxu0
      %v2624 = vadd.f32 0.0, %v2623
      %v2625 = vpop.f32.mrf.mxu0
      %v2626 = vadd.f32 0.0, %v2625
      %2627 = vdwg.mxu0
      %v2628 = vmul.f32 %v2609, 0.25
      %v2629 = vmul.f32 %v2611, 0.25
      %v2630 = vmul.f32 %v2614, 0.25
      %v2631 = vmul.f32 %v2616, 0.25
      %v2632 = vmul.f32 %v2619, 0.25
      %v2633 = vmul.f32 %v2621, 0.25
      %v2634 = vmul.f32 %v2624, 0.25
      %v2635 = vmul.f32 %v2626, 0.25
      %v2636 = vadd.f32 %v2628, %v315
      %v2637 = vadd.f32 %v2629, %v316
      %v2638 = vadd.f32 %v2630, %v317
      %v2639 = vadd.f32 %v2631, %v318
      %v2640 = vadd.f32 %v2632, %v319
      %v2641 = vadd.f32 %v2633, %v320
      %v2642 = vadd.f32 %v2634, %v321
      %v2643 = vadd.f32 %v2635, %v322
      %v2644 = vsel %vm796, %v2636, -inf
      %2645 = vmax.xlane.f32.xlu0 %v2644
      %v2646 = vpop.xlane.xlu0 %2645
      %v2647 = vsel %vm796, %v2637, -inf
      %2648 = vmax.xlane.f32.xlu0 %v2647
      %v2649 = vpop.xlane.xlu0 %2648
      %v2650 = vsel %vm796, %v2638, -inf
      %2651 = vmax.xlane.f32.xlu0 %v2650
      %v2652 = vpop.xlane.xlu0 %2651
      %v2653 = vsel %vm796, %v2639, -inf
      %2654 = vmax.xlane.f32.xlu0 %v2653
      %v2655 = vpop.xlane.xlu0 %2654
      %v2656 = vsel %vm796, %v2640, -inf
      %2657 = vmax.xlane.f32.xlu0 %v2656
      %v2658 = vpop.xlane.xlu0 %2657
      %v2659 = vsel %vm796, %v2641, -inf
      %2660 = vmax.xlane.f32.xlu0 %v2659
      %v2661 = vpop.xlane.xlu0 %2660
      %v2662 = vsel %vm796, %v2642, -inf
      %2663 = vmax.xlane.f32.xlu0 %v2662
      %v2664 = vpop.xlane.xlu0 %2663
      %v2665 = vsel %vm796, %v2643, -inf
      %2666 = vmax.xlane.f32.xlu0 %v2665
      %v2667 = vpop.xlane.xlu0 %2666
      %v2668 = vsub.f32 %v2636, %v2646
      %v2669 = vsub.f32 %v2637, %v2649
      %v2670 = vsub.f32 %v2638, %v2652
      %v2671 = vsub.f32 %v2639, %v2655
      %v2672 = vsub.f32 %v2640, %v2658
      %v2673 = vsub.f32 %v2641, %v2661
      %v2674 = vsub.f32 %v2642, %v2664
      %v2675 = vsub.f32 %v2643, %v2667
      %v2676 = vmul.f32 %v2668, 1.442695
      %v2677 = vpow.pop %v2676
      %v2678 = vmul.f32 %v2669, 1.442695
      %v2679 = vpow.pop %v2678
      %v2680 = vmul.f32 %v2670, 1.442695
      %v2681 = vpow.pop %v2680
      %v2682 = vmul.f32 %v2671, 1.442695
      %v2683 = vpow.pop %v2682
      %v2684 = vmul.f32 %v2672, 1.442695
      %v2685 = vpow.pop %v2684
      %v2686 = vmul.f32 %v2673, 1.442695
      %v2687 = vpow.pop %v2686
      %v2688 = vmul.f32 %v2674, 1.442695
      %v2689 = vpow.pop %v2688
      %v2690 = vmul.f32 %v2675, 1.442695
      %v2691 = vpow.pop %v2690
      %v2692 = vsel %vm796, %v2677, 0.0
      %2693 = vadd.xlane.f32.xlu0 %v2692
      %v2694 = vpop.xlane.xlu0 %2693
      %v2695 = vsel %vm796, %v2679, 0.0
      %2696 = vadd.xlane.f32.xlu0 %v2695
      %v2697 = vpop.xlane.xlu0 %2696
      %v2698 = vsel %vm796, %v2681, 0.0
      %2699 = vadd.xlane.f32.xlu0 %v2698
      %v2700 = vpop.xlane.xlu0 %2699
      %v2701 = vsel %vm796, %v2683, 0.0
      %2702 = vadd.xlane.f32.xlu0 %v2701
      %v2703 = vpop.xlane.xlu0 %2702
      %v2704 = vsel %vm796, %v2685, 0.0
      %2705 = vadd.xlane.f32.xlu0 %v2704
      %v2706 = vpop.xlane.xlu0 %2705
      %v2707 = vsel %vm796, %v2687, 0.0
      %2708 = vadd.xlane.f32.xlu0 %v2707
      %v2709 = vpop.xlane.xlu0 %2708
      %v2710 = vsel %vm796, %v2689, 0.0
      %2711 = vadd.xlane.f32.xlu0 %v2710
      %v2712 = vpop.xlane.xlu0 %2711
      %v2713 = vsel %vm796, %v2691, 0.0
      %2714 = vadd.xlane.f32.xlu0 %v2713
      %v2715 = vpop.xlane.xlu0 %2714
      %v2716 = vrcp.pop %v2694
      %v2717 = vmul.f32 %v2694, %v2716
      %v2718 = vsub.f32 1.0, %v2717
      %v2719 = vmul.f32 %v2716, %v2718
      %v2720 = vadd.f32 %v2716, %v2719
      %vm2721 = vweird.f32 %v2694
      %vm2722 = vweird.f32 %v2716
      %vm2723 = vmor %vm2721, %vm2722
      %v2724 = vsel %vm2723, %v2716, %v2720
      %v2725 = vand.u32 2147483647, %v2694
      %vm2726 = vcmp.eq.f32.partialorder %v2725, 8.507059e+37
      %v2727 = vand.u32 %v2694, 2147483648
      %v2728 = vor.u32 1.1754944e-38, %v2727
      %v2729 = vsel %vm2726, %v2728, %v2724
      %v2730 = vmul.f32 %v2677, %v2729
      %v2731 = vrcp.pop %v2697
      %v2732 = vmul.f32 %v2697, %v2731
      %v2733 = vsub.f32 1.0, %v2732
      %v2734 = vmul.f32 %v2731, %v2733
      %v2735 = vadd.f32 %v2731, %v2734
      %vm2736 = vweird.f32 %v2697
      %vm2737 = vweird.f32 %v2731
      %vm2738 = vmor %vm2736, %vm2737
      %v2739 = vsel %vm2738, %v2731, %v2735
      %v2740 = vand.u32 2147483647, %v2697
      %vm2741 = vcmp.eq.f32.partialorder %v2740, 8.507059e+37
      %v2742 = vand.u32 %v2697, 2147483648
      %v2743 = vor.u32 1.1754944e-38, %v2742
      %v2744 = vsel %vm2741, %v2743, %v2739
      %v2745 = vmul.f32 %v2679, %v2744
      %v2746 = vrcp.pop %v2700
      %v2747 = vmul.f32 %v2700, %v2746
      %v2748 = vsub.f32 1.0, %v2747
      %v2749 = vmul.f32 %v2746, %v2748
      %v2750 = vadd.f32 %v2746, %v2749
      %vm2751 = vweird.f32 %v2700
      %vm2752 = vweird.f32 %v2746
      %vm2753 = vmor %vm2751, %vm2752
      %v2754 = vsel %vm2753, %v2746, %v2750
      %v2755 = vand.u32 2147483647, %v2700
      %vm2756 = vcmp.eq.f32.partialorder %v2755, 8.507059e+37
      %v2757 = vand.u32 %v2700, 2147483648
      %v2758 = vor.u32 1.1754944e-38, %v2757
      %v2759 = vsel %vm2756, %v2758, %v2754
      %v2760 = vmul.f32 %v2681, %v2759
      %v2761 = vrcp.pop %v2703
      %v2762 = vmul.f32 %v2703, %v2761
      %v2763 = vsub.f32 1.0, %v2762
      %v2764 = vmul.f32 %v2761, %v2763
      %v2765 = vadd.f32 %v2761, %v2764
      %vm2766 = vweird.f32 %v2703
      %vm2767 = vweird.f32 %v2761
      %vm2768 = vmor %vm2766, %vm2767
      %v2769 = vsel %vm2768, %v2761, %v2765
      %v2770 = vand.u32 2147483647, %v2703
      %vm2771 = vcmp.eq.f32.partialorder %v2770, 8.507059e+37
      %v2772 = vand.u32 %v2703, 2147483648
      %v2773 = vor.u32 1.1754944e-38, %v2772
      %v2774 = vsel %vm2771, %v2773, %v2769
      %v2775 = vmul.f32 %v2683, %v2774
      %v2776 = vrcp.pop %v2706
      %v2777 = vmul.f32 %v2706, %v2776
      %v2778 = vsub.f32 1.0, %v2777
      %v2779 = vmul.f32 %v2776, %v2778
      %v2780 = vadd.f32 %v2776, %v2779
      %vm2781 = vweird.f32 %v2706
      %vm2782 = vweird.f32 %v2776
      %vm2783 = vmor %vm2781, %vm2782
      %v2784 = vsel %vm2783, %v2776, %v2780
      %v2785 = vand.u32 2147483647, %v2706
      %vm2786 = vcmp.eq.f32.partialorder %v2785, 8.507059e+37
      %v2787 = vand.u32 %v2706, 2147483648
      %v2788 = vor.u32 1.1754944e-38, %v2787
      %v2789 = vsel %vm2786, %v2788, %v2784
      %v2790 = vmul.f32 %v2685, %v2789
      %v2791 = vrcp.pop %v2709
      %v2792 = vmul.f32 %v2709, %v2791
      %v2793 = vsub.f32 1.0, %v2792
      %v2794 = vmul.f32 %v2791, %v2793
      %v2795 = vadd.f32 %v2791, %v2794
      %vm2796 = vweird.f32 %v2709
      %vm2797 = vweird.f32 %v2791
      %vm2798 = vmor %vm2796, %vm2797
      %v2799 = vsel %vm2798, %v2791, %v2795
      %v2800 = vand.u32 2147483647, %v2709
      %vm2801 = vcmp.eq.f32.partialorder %v2800, 8.507059e+37
      %v2802 = vand.u32 %v2709, 2147483648
      %v2803 = vor.u32 1.1754944e-38, %v2802
      %v2804 = vsel %vm2801, %v2803, %v2799
      %v2805 = vmul.f32 %v2687, %v2804
      %v2806 = vrcp.pop %v2712
      %v2807 = vmul.f32 %v2712, %v2806
      %v2808 = vsub.f32 1.0, %v2807
      %v2809 = vmul.f32 %v2806, %v2808
      %v2810 = vadd.f32 %v2806, %v2809
      %vm2811 = vweird.f32 %v2712
      %vm2812 = vweird.f32 %v2806
      %vm2813 = vmor %vm2811, %vm2812
      %v2814 = vsel %vm2813, %v2806, %v2810
      %v2815 = vand.u32 2147483647, %v2712
      %vm2816 = vcmp.eq.f32.partialorder %v2815, 8.507059e+37
      %v2817 = vand.u32 %v2712, 2147483648
      %v2818 = vor.u32 1.1754944e-38, %v2817
      %v2819 = vsel %vm2816, %v2818, %v2814
      %v2820 = vmul.f32 %v2689, %v2819
      %v2821 = vrcp.pop %v2715
      %v2822 = vmul.f32 %v2715, %v2821
      %v2823 = vsub.f32 1.0, %v2822
      %v2824 = vmul.f32 %v2821, %v2823
      %v2825 = vadd.f32 %v2821, %v2824
      %vm2826 = vweird.f32 %v2715
      %vm2827 = vweird.f32 %v2821
      %vm2828 = vmor %vm2826, %vm2827
      %v2829 = vsel %vm2828, %v2821, %v2825
      %v2830 = vand.u32 2147483647, %v2715
      %vm2831 = vcmp.eq.f32.partialorder %v2830, 8.507059e+37
      %v2832 = vand.u32 %v2715, 2147483648
      %v2833 = vor.u32 1.1754944e-38, %v2832
      %v2834 = vsel %vm2831, %v2833, %v2829
      %v2835 = vmul.f32 %v2691, %v2834
      %v2836 = vpack.c.bf16 %v2745, %v2730
      %v2837 = vpack.c.bf16 %v2775, %v2760
      %v2838 = vpack.c.bf16 %v2805, %v2790
      %v2839 = vpack.c.bf16 %v2835, %v2820
      %2840 = vrot.lane.b32.xlu0 %v2502, 80
      %v2841 = vpop.permute.xlu0 %2840
      %2842 = vrot.lane.b32.xlu0 %v2503, 80
      %v2843 = vpop.permute.xlu0 %2842
      %2844 = vrot.lane.b32.xlu0 %v2504, 80
      %v2845 = vpop.permute.xlu0 %2844
      %2846 = vrot.lane.b32.xlu0 %v2505, 80
      %v2847 = vpop.permute.xlu0 %2846
      %v2853 = vsel %vm796, %v2836, 0
      %v2856 = vsel %vm796, %v2837, 0
      %v2859 = vsel %vm796, %v2838, 0
      %v2862 = vsel %vm796, %v2839, 0
      %2864 = vmatpush.bf16.msra.mxu0 0
      %2865 = vmatpush.bf16.msra.mxu0 0
      %2866 = vmatpush.bf16.msra.mxu0 0
      %2867 = vmatpush.bf16.msra.mxu0 0
      %2868 = vmatpush.bf16.msra.mxu0 %v2847
      %2869 = vmatpush.bf16.msra.mxu0 %v2845
      %2870 = vmatpush.bf16.msra.mxu0 %v2843
      %2871 = vmatpush.bf16.msra.mxu0 %v2841
      %2872 = vmatmul.bf16.gmra.mxu0 %v2853
      %v2873 = vpop.f32.mrf.mxu0
      %v2874 = vadd.f32 0.0, %v2873
      %v2875 = vpop.f32.mrf.mxu0
      %v2876 = vadd.f32 0.0, %v2875
      %2877 = vmatmul.bf16.gmra.mxu0 %v2856
      %v2878 = vpop.f32.mrf.mxu0
      %v2879 = vadd.f32 0.0, %v2878
      %v2880 = vpop.f32.mrf.mxu0
      %v2881 = vadd.f32 0.0, %v2880
      %2882 = vmatmul.bf16.gmra.mxu0 %v2859
      %v2883 = vpop.f32.mrf.mxu0
      %v2884 = vadd.f32 0.0, %v2883
      %v2885 = vpop.f32.mrf.mxu0
      %v2886 = vadd.f32 0.0, %v2885
      %2887 = vmatmul.bf16.gmra.mxu0 %v2862
      %v2888 = vpop.f32.mrf.mxu0
      %v2889 = vadd.f32 0.0, %v2888
      %v2890 = vpop.f32.mrf.mxu0
      %v2891 = vadd.f32 0.0, %v2890
      %2892 = vdwg.mxu0
      %2901 = vrot.lane.b32.xlu0 %v2874, 16
      %v2902 = vpop.permute.xlu0 %2901
      %2903 = vrot.lane.b32.xlu0 %v2876, 16
      %v2904 = vpop.permute.xlu0 %2903
      %2905 = vrot.lane.b32.xlu0 %v2879, 16
      %v2906 = vpop.permute.xlu0 %2905
      %2907 = vrot.lane.b32.xlu0 %v2881, 16
      %v2908 = vpop.permute.xlu0 %2907
      %2909 = vrot.lane.b32.xlu0 %v2884, 16
      %v2910 = vpop.permute.xlu0 %2909
      %2911 = vrot.lane.b32.xlu0 %v2886, 16
      %v2912 = vpop.permute.xlu0 %2911
      %2913 = vrot.lane.b32.xlu0 %v2889, 16
      %v2914 = vpop.permute.xlu0 %2913
      %2915 = vrot.lane.b32.xlu0 %v2891, 16
      %v2916 = vpop.permute.xlu0 %2915
      %v2925 = vsel %vm726, %v2540, %v2902
      %v2926 = vsel %vm726, %v2542, %v2904
      %v2927 = vsel %vm726, %v2545, %v2906
      %v2928 = vsel %vm726, %v2547, %v2908
      %v2929 = vsel %vm726, %v2550, %v2910
      %v2930 = vsel %vm726, %v2552, %v2912
      %v2931 = vsel %vm726, %v2555, %v2914
      %v2932 = vsel %vm726, %v2557, %v2916
      %v2933 = vpack.c.bf16 %v2926, %v2925
      %v2934 = vpack.c.bf16 %v2928, %v2927
      %v2935 = vpack.c.bf16 %v2930, %v2929
      %v2936 = vpack.c.bf16 %v2932, %v2931
      %v2937 = vperm.slane %v1830, 5
      %2938 = vrot.lane.b32.xlu0 %v2043, 32
      %v2939 = vpop.permute.xlu0 %2938
      %2940 = vrot.lane.b32.xlu0 %v2044, 32
      %v2941 = vpop.permute.xlu0 %2940
      %v2945 = vsel %vm329, %v2933, 0
      %v2948 = vsel %vm329, %v2934, 0
      %v2951 = vsel %vm329, %v2935, 0
      %v2954 = vsel %vm329, %v2936, 0
      %2956 = vmatpush.bf16.msra.mxu0 0
      %2957 = vmatpush.bf16.msra.mxu0 0
      %2958 = vmatpush.bf16.msra.mxu0 0
      %2959 = vmatpush.bf16.msra.mxu0 0
      %2960 = vmatpush.bf16.msra.mxu0 0
      %2961 = vmatpush.bf16.msra.mxu0 0
      %2962 = vmatpush.bf16.msra.mxu0 %v2941
      %2963 = vmatpush.bf16.msra.mxu0 %v2939
      %2964 = vmatmul.bf16.gmra.mxu0 %v2945
      %v2965 = vpop.f32.mrf.mxu0
      %v2966 = vadd.f32 %v2937, %v2965
      %v2967 = vpop.f32.mrf.mxu0
      %v2968 = vadd.f32 %v2937, %v2967
      %2969 = vmatmul.bf16.gmra.mxu0 %v2948
      %v2970 = vpop.f32.mrf.mxu0
      %v2971 = vadd.f32 %v2937, %v2970
      %v2972 = vpop.f32.mrf.mxu0
      %v2973 = vadd.f32 %v2937, %v2972
      %2974 = vmatmul.bf16.gmra.mxu0 %v2951
      %v2975 = vpop.f32.mrf.mxu0
      %v2976 = vadd.f32 %v2937, %v2975
      %v2977 = vpop.f32.mrf.mxu0
      %v2978 = vadd.f32 %v2937, %v2977
      %2979 = vmatmul.bf16.gmra.mxu0 %v2954
      %v2980 = vpop.f32.mrf.mxu0
      %v2981 = vadd.f32 %v2937, %v2980
      %v2982 = vpop.f32.mrf.mxu0
      %v2983 = vadd.f32 %v2937, %v2982
      %2984 = vdwg.mxu0
      %v2985 = vadd.f32 %v2018, %v2966
      %v2986 = vadd.f32 %v2019, %v2968
      %v2987 = vadd.f32 %v2020, %v2971
      %v2988 = vadd.f32 %v2021, %v2973
      %v2989 = vadd.f32 %v2022, %v2976
      %v2990 = vadd.f32 %v2023, %v2978
      %v2991 = vadd.f32 %v2024, %v2981
      %v2992 = vadd.f32 %v2025, %v2983
      %v2993 = vsel %vm329, %v2985, 0.0
      %2994 = vadd.xlane.f32.xlu0 %v2993
      %v2995 = vpop.xlane.xlu0 %2994
      %v2996 = vsel %vm329, %v2986, 0.0
      %2997 = vadd.xlane.f32.xlu0 %v2996
      %v2998 = vpop.xlane.xlu0 %2997
      %v2999 = vsel %vm329, %v2987, 0.0
      %3000 = vadd.xlane.f32.xlu0 %v2999
      %v3001 = vpop.xlane.xlu0 %3000
      %v3002 = vsel %vm329, %v2988, 0.0
      %3003 = vadd.xlane.f32.xlu0 %v3002
      %v3004 = vpop.xlane.xlu0 %3003
      %v3005 = vsel %vm329, %v2989, 0.0
      %3006 = vadd.xlane.f32.xlu0 %v3005
      %v3007 = vpop.xlane.xlu0 %3006
      %v3008 = vsel %vm329, %v2990, 0.0
      %3009 = vadd.xlane.f32.xlu0 %v3008
      %v3010 = vpop.xlane.xlu0 %3009
      %v3011 = vsel %vm329, %v2991, 0.0
      %3012 = vadd.xlane.f32.xlu0 %v3011
      %v3013 = vpop.xlane.xlu0 %3012
      %v3014 = vsel %vm329, %v2992, 0.0
      %3015 = vadd.xlane.f32.xlu0 %v3014
      %v3016 = vpop.xlane.xlu0 %3015
      %v3017 = vmul.f32 %v2995, %v360
      %v3018 = vmul.f32 %v2998, %v360
      %v3019 = vmul.f32 %v3001, %v360
      %v3020 = vmul.f32 %v3004, %v360
      %v3021 = vmul.f32 %v3007, %v360
      %v3022 = vmul.f32 %v3010, %v360
      %v3023 = vmul.f32 %v3013, %v360
      %v3024 = vmul.f32 %v3016, %v360
      %v3025 = vsub.f32 %v2985, %v3017
      %v3026 = vsub.f32 %v2986, %v3018
      %v3027 = vsub.f32 %v2987, %v3019
      %v3028 = vsub.f32 %v2988, %v3020
      %v3029 = vsub.f32 %v2989, %v3021
      %v3030 = vsub.f32 %v2990, %v3022
      %v3031 = vsub.f32 %v2991, %v3023
      %v3032 = vsub.f32 %v2992, %v3024
      %v3033 = vmul.f32 %v3025, %v3025
      %v3034 = vmul.f32 %v3026, %v3026
      %v3035 = vmul.f32 %v3027, %v3027
      %v3036 = vmul.f32 %v3028, %v3028
      %v3037 = vmul.f32 %v3029, %v3029
      %v3038 = vmul.f32 %v3030, %v3030
      %v3039 = vmul.f32 %v3031, %v3031
      %v3040 = vmul.f32 %v3032, %v3032
      %v3041 = vsel %vm329, %v3033, 0.0
      %3042 = vadd.xlane.f32.xlu0 %v3041
      %v3043 = vpop.xlane.xlu0 %3042
      %v3044 = vsel %vm329, %v3034, 0.0
      %3045 = vadd.xlane.f32.xlu0 %v3044
      %v3046 = vpop.xlane.xlu0 %3045
      %v3047 = vsel %vm329, %v3035, 0.0
      %3048 = vadd.xlane.f32.xlu0 %v3047
      %v3049 = vpop.xlane.xlu0 %3048
      %v3050 = vsel %vm329, %v3036, 0.0
      %3051 = vadd.xlane.f32.xlu0 %v3050
      %v3052 = vpop.xlane.xlu0 %3051
      %v3053 = vsel %vm329, %v3037, 0.0
      %3054 = vadd.xlane.f32.xlu0 %v3053
      %v3055 = vpop.xlane.xlu0 %3054
      %v3056 = vsel %vm329, %v3038, 0.0
      %3057 = vadd.xlane.f32.xlu0 %v3056
      %v3058 = vpop.xlane.xlu0 %3057
      %v3059 = vsel %vm329, %v3039, 0.0
      %3060 = vadd.xlane.f32.xlu0 %v3059
      %v3061 = vpop.xlane.xlu0 %3060
      %v3062 = vsel %vm329, %v3040, 0.0
      %3063 = vadd.xlane.f32.xlu0 %v3062
      %v3064 = vpop.xlane.xlu0 %3063
      %v3065 = vmul.f32 %v3043, %v360
      %v3066 = vmul.f32 %v3046, %v360
      %v3067 = vmul.f32 %v3049, %v360
      %v3068 = vmul.f32 %v3052, %v360
      %v3069 = vmul.f32 %v3055, %v360
      %v3070 = vmul.f32 %v3058, %v360
      %v3071 = vmul.f32 %v3061, %v360
      %v3072 = vmul.f32 %v3064, %v360
      %v3073 = vadd.f32 %v3065, 1e-08
      %v3074 = vadd.f32 %v3066, 1e-08
      %v3075 = vadd.f32 %v3067, 1e-08
      %v3076 = vadd.f32 %v3068, 1e-08
      %v3077 = vadd.f32 %v3069, 1e-08
      %v3078 = vadd.f32 %v3070, 1e-08
      %v3079 = vadd.f32 %v3071, 1e-08
      %v3080 = vadd.f32 %v3072, 1e-08
      %v3081 = vrsqrt.pop %v3073
      %v3082 = vmul.f32 %v3081, %v3073
      %v3083 = vmul.f32 %v3082, %v3081
      %v3084 = vmul.f32 0.5, %v3083
      %v3085 = vsub.f32 1.5, %v3084
      %v3086 = vmul.f32 %v3081, %v3085
      %vm3087 = vweird.f32 %v3073
      %vm3088 = vweird.f32 %v3081
      %vm3089 = vmor %vm3087, %vm3088
      %v3090 = vsel %vm3089, %v3081, %v3086
      %v3091 = vrsqrt.pop %v3074
      %v3092 = vmul.f32 %v3091, %v3074
      %v3093 = vmul.f32 %v3092, %v3091
      %v3094 = vmul.f32 0.5, %v3093
      %v3095 = vsub.f32 1.5, %v3094
      %v3096 = vmul.f32 %v3091, %v3095
      %vm3097 = vweird.f32 %v3074
      %vm3098 = vweird.f32 %v3091
      %vm3099 = vmor %vm3097, %vm3098
      %v3100 = vsel %vm3099, %v3091, %v3096
      %v3101 = vrsqrt.pop %v3075
      %v3102 = vmul.f32 %v3101, %v3075
      %v3103 = vmul.f32 %v3102, %v3101
      %v3104 = vmul.f32 0.5, %v3103
      %v3105 = vsub.f32 1.5, %v3104
      %v3106 = vmul.f32 %v3101, %v3105
      %vm3107 = vweird.f32 %v3075
      %vm3108 = vweird.f32 %v3101
      %vm3109 = vmor %vm3107, %vm3108
      %v3110 = vsel %vm3109, %v3101, %v3106
      %v3111 = vrsqrt.pop %v3076
      %v3112 = vmul.f32 %v3111, %v3076
      %v3113 = vmul.f32 %v3112, %v3111
      %v3114 = vmul.f32 0.5, %v3113
      %v3115 = vsub.f32 1.5, %v3114
      %v3116 = vmul.f32 %v3111, %v3115
      %vm3117 = vweird.f32 %v3076
      %vm3118 = vweird.f32 %v3111
      %vm3119 = vmor %vm3117, %vm3118
      %v3120 = vsel %vm3119, %v3111, %v3116
      %v3121 = vrsqrt.pop %v3077
      %v3122 = vmul.f32 %v3121, %v3077
      %v3123 = vmul.f32 %v3122, %v3121
      %v3124 = vmul.f32 0.5, %v3123
      %v3125 = vsub.f32 1.5, %v3124
      %v3126 = vmul.f32 %v3121, %v3125
      %vm3127 = vweird.f32 %v3077
      %vm3128 = vweird.f32 %v3121
      %vm3129 = vmor %vm3127, %vm3128
      %v3130 = vsel %vm3129, %v3121, %v3126
      %v3131 = vrsqrt.pop %v3078
      %v3132 = vmul.f32 %v3131, %v3078
      %v3133 = vmul.f32 %v3132, %v3131
      %v3134 = vmul.f32 0.5, %v3133
      %v3135 = vsub.f32 1.5, %v3134
      %v3136 = vmul.f32 %v3131, %v3135
      %vm3137 = vweird.f32 %v3078
      %vm3138 = vweird.f32 %v3131
      %vm3139 = vmor %vm3137, %vm3138
      %v3140 = vsel %vm3139, %v3131, %v3136
      %v3141 = vrsqrt.pop %v3079
      %v3142 = vmul.f32 %v3141, %v3079
      %v3143 = vmul.f32 %v3142, %v3141
      %v3144 = vmul.f32 0.5, %v3143
      %v3145 = vsub.f32 1.5, %v3144
      %v3146 = vmul.f32 %v3141, %v3145
      %vm3147 = vweird.f32 %v3079
      %vm3148 = vweird.f32 %v3141
      %vm3149 = vmor %vm3147, %vm3148
      %v3150 = vsel %vm3149, %v3141, %v3146
      %v3151 = vrsqrt.pop %v3080
      %v3152 = vmul.f32 %v3151, %v3080
      %v3153 = vmul.f32 %v3152, %v3151
      %v3154 = vmul.f32 0.5, %v3153
      %v3155 = vsub.f32 1.5, %v3154
      %v3156 = vmul.f32 %v3151, %v3155
      %vm3157 = vweird.f32 %v3080
      %vm3158 = vweird.f32 %v3151
      %vm3159 = vmor %vm3157, %vm3158
      %v3160 = vsel %vm3159, %v3151, %v3156
      %v3161 = vmul.f32 %v3025, %v3090
      %v3162 = vmul.f32 %v3026, %v3100
      %v3163 = vmul.f32 %v3027, %v3110
      %v3164 = vmul.f32 %v3028, %v3120
      %v3165 = vmul.f32 %v3029, %v3130
      %v3166 = vmul.f32 %v3030, %v3140
      %v3167 = vmul.f32 %v3031, %v3150
      %v3168 = vmul.f32 %v3032, %v3160
      %v3169 = vperm.slane %v1830, 6
      %v3170 = vmul.f32 %v3161, %v3169
      %v3171 = vmul.f32 %v3162, %v3169
      %v3172 = vmul.f32 %v3163, %v3169
      %v3173 = vmul.f32 %v3164, %v3169
      %v3174 = vmul.f32 %v3165, %v3169
      %v3175 = vmul.f32 %v3166, %v3169
      %v3176 = vmul.f32 %v3167, %v3169
      %v3177 = vmul.f32 %v3168, %v3169
      %v3178 = vperm.slane %v1830, 7
      %v3179 = vadd.f32 %v3170, %v3178
      %v3180 = vadd.f32 %v3171, %v3178
      %v3181 = vadd.f32 %v3172, %v3178
      %v3182 = vadd.f32 %v3173, %v3178
      %v3183 = vadd.f32 %v3174, %v3178
      %v3184 = vadd.f32 %v3175, %v3178
      %v3185 = vadd.f32 %v3176, %v3178
      %v3186 = vadd.f32 %v3177, %v3178
      %v3187 = vpack.c.bf16 %v3180, %v3179
      %v3188 = vpack.c.bf16 %v3182, %v3181
      %v3189 = vpack.c.bf16 %v3184, %v3183
      %v3190 = vpack.c.bf16 %v3186, %v3185
      %v3191 = vperm.slane %v1831, 0
      %v3192 = vunpack.c.h.b16 %v1825
      %v3193 = vunpack.c.h.b16 %v1826
      %v3194 = vunpack.c.h.b16 %v1827
      %v3195 = vunpack.c.h.b16 %v1828
      %v3196 = vpack.c.b16 %v3193, %v3192
      %v3197 = vpack.c.b16 %v3195, %v3194
      %v3201 = vsel %vm329, %v3187, 0
      %v3204 = vsel %vm329, %v3188, 0
      %v3207 = vsel %vm329, %v3189, 0
      %v3210 = vsel %vm329, %v3190, 0
      %3212 = vmatpush.bf16.msra.mxu0 0
      %3213 = vmatpush.bf16.msra.mxu0 0
      %3214 = vmatpush.bf16.msra.mxu0 0
      %3215 = vmatpush.bf16.msra.mxu0 0
      %3216 = vmatpush.bf16.msra.mxu0 0
      %3217 = vmatpush.bf16.msra.mxu0 0
      %3218 = vmatpush.bf16.msra.mxu0 %v3197
      %3219 = vmatpush.bf16.msra.mxu0 %v3196
      %3220 = vmatmul.bf16.gmra.mxu0 %v3201
      %v3221 = vpop.f32.mrf.mxu0
      %v3222 = vadd.f32 %v3191, %v3221
      %v3223 = vpop.f32.mrf.mxu0
      %v3224 = vadd.f32 %v3191, %v3223
      %3225 = vmatmul.bf16.gmra.mxu0 %v3204
      %v3226 = vpop.f32.mrf.mxu0
      %v3227 = vadd.f32 %v3191, %v3226
      %v3228 = vpop.f32.mrf.mxu0
      %v3229 = vadd.f32 %v3191, %v3228
      %3230 = vmatmul.bf16.gmra.mxu0 %v3207
      %v3231 = vpop.f32.mrf.mxu0
      %v3232 = vadd.f32 %v3191, %v3231
      %v3233 = vpop.f32.mrf.mxu0
      %v3234 = vadd.f32 %v3191, %v3233
      %3235 = vmatmul.bf16.gmra.mxu0 %v3210
      %v3236 = vpop.f32.mrf.mxu0
      %v3237 = vadd.f32 %v3191, %v3236
      %v3238 = vpop.f32.mrf.mxu0
      %v3239 = vadd.f32 %v3191, %v3238
      %3240 = vdwg.mxu0
      %v3241 = vmax.f32 %v3222, 0.0
      %v3242 = vmax.f32 %v3224, 0.0
      %v3243 = vmax.f32 %v3227, 0.0
      %v3244 = vmax.f32 %v3229, 0.0
      %v3245 = vmax.f32 %v3232, 0.0
      %v3246 = vmax.f32 %v3234, 0.0
      %v3247 = vmax.f32 %v3237, 0.0
      %v3248 = vmax.f32 %v3239, 0.0
      %v3249 = vpack.c.bf16 %v3242, %v3241
      %v3250 = vpack.c.bf16 %v3244, %v3243
      %v3251 = vpack.c.bf16 %v3246, %v3245
      %v3252 = vpack.c.bf16 %v3248, %v3247
      %v3253 = vperm.slane %v1831, 1
      %3254 = vrot.lane.b32.xlu0 %v3196, 96
      %v3255 = vpop.permute.xlu0 %3254
      %3256 = vrot.lane.b32.xlu0 %v3197, 96
      %v3257 = vpop.permute.xlu0 %3256
      %v3261 = vsel %vm329, %v3249, 0
      %v3264 = vsel %vm329, %v3250, 0
      %v3267 = vsel %vm329, %v3251, 0
      %v3270 = vsel %vm329, %v3252, 0
      %3272 = vmatpush.bf16.msra.mxu0 0
      %3273 = vmatpush.bf16.msra.mxu0 0
      %3274 = vmatpush.bf16.msra.mxu0 0
      %3275 = vmatpush.bf16.msra.mxu0 0
      %3276 = vmatpush.bf16.msra.mxu0 0
      %3277 = vmatpush.bf16.msra.mxu0 0
      %3278 = vmatpush.bf16.msra.mxu0 %v3257
      %3279 = vmatpush.bf16.msra.mxu0 %v3255
      %3280 = vmatmul.bf16.gmra.mxu0 %v3261
      %v3281 = vpop.f32.mrf.mxu0
      %v3282 = vadd.f32 %v3253, %v3281
      %v3283 = vpop.f32.mrf.mxu0
      %v3284 = vadd.f32 %v3253, %v3283
      %3285 = vmatmul.bf16.gmra.mxu0 %v3264
      %v3286 = vpop.f32.mrf.mxu0
      %v3287 = vadd.f32 %v3253, %v3286
      %v3288 = vpop.f32.mrf.mxu0
      %v3289 = vadd.f32 %v3253, %v3288
      %3290 = vmatmul.bf16.gmra.mxu0 %v3267
      %v3291 = vpop.f32.mrf.mxu0
      %v3292 = vadd.f32 %v3253, %v3291
      %v3293 = vpop.f32.mrf.mxu0
      %v3294 = vadd.f32 %v3253, %v3293
      %3295 = vmatmul.bf16.gmra.mxu0 %v3270
      %v3296 = vpop.f32.mrf.mxu0
      %v3297 = vadd.f32 %v3253, %v3296
      %v3298 = vpop.f32.mrf.mxu0
      %v3299 = vadd.f32 %v3253, %v3298
      %3300 = vdwg.mxu0
      %v3301 = vadd.f32 %v3282, %v3179
      %v3302 = vadd.f32 %v3284, %v3180
      %v3303 = vadd.f32 %v3287, %v3181
      %v3304 = vadd.f32 %v3289, %v3182
      %v3305 = vadd.f32 %v3292, %v3183
      %v3306 = vadd.f32 %v3294, %v3184
      %v3307 = vadd.f32 %v3297, %v3185
      %v3308 = vadd.f32 %v3299, %v3186
      %v3309 = vmul.f32 %v3301, %v288
      %v3310 = vmul.f32 %v3302, %v289
      %v3311 = vmul.f32 %v3303, %v290
      %v3312 = vmul.f32 %v3304, %v291
      %v3313 = vmul.f32 %v3305, %v292
      %v3314 = vmul.f32 %v3306, %v293
      %v3315 = vmul.f32 %v3307, %v294
      %v3316 = vmul.f32 %v3308, %v295
      %s3317 = sld [smem:[#allocation3 + %s26]]
      %v3318 = vstv %s3317
      %vm3319 = vcmp.eq.s32.totalorder %v297, %v3318
      %vm3320 = vcmp.eq.s32.totalorder %v298, %v3318
      %vm3321 = vcmp.eq.s32.totalorder %v299, %v3318
      %vm3322 = vcmp.eq.s32.totalorder %v300, %v3318
      %vm3323 = vcmp.eq.s32.totalorder %v301, %v3318
      %vm3324 = vcmp.eq.s32.totalorder %v302, %v3318
      %vm3325 = vcmp.eq.s32.totalorder %v303, %v3318
      %vm3326 = vcmp.eq.s32.totalorder %v304, %v3318
      %v3327 = vsel %vm3319, %v3309, 0.0
      %v3328 = vsel %vm3320, %v3310, 0.0
      %v3329 = vsel %vm3321, %v3311, 0.0
      %v3330 = vsel %vm3322, %v3312, 0.0
      %v3331 = vsel %vm3323, %v3313, 0.0
      %v3332 = vsel %vm3324, %v3314, 0.0
      %v3333 = vsel %vm3325, %v3315, 0.0
      %v3334 = vsel %vm3326, %v3316, 0.0
      %v3335 = vsel %vm329, %v3327, 0.0
      %v3336 = vsel %vm329, %v3328, 0.0
      %v3337 = vadd.f32 %v3335, %v3336
      %v3338 = vsel %vm329, %v3329, 0.0
      %v3339 = vadd.f32 %v3337, %v3338
      %v3340 = vsel %vm329, %v3330, 0.0
      %v3341 = vadd.f32 %v3339, %v3340
      %v3342 = vsel %vm329, %v3331, 0.0
      %v3343 = vadd.f32 %v3341, %v3342
      %v3344 = vsel %vm329, %v3332, 0.0
      %v3345 = vadd.f32 %v3343, %v3344
      %v3346 = vsel %vm329, %v3333, 0.0
      %v3347 = vadd.f32 %v3345, %v3346
      %v3348 = vsel %vm329, %v3334, 0.0
      %v3349 = vadd.f32 %v3347, %v3348
      %v3350 = vrot.slane %v3349, 4
      %v3351 = vadd.f32 %v3349, %v3350
      %v3352 = vrot.slane %v3351, 2
      %v3353 = vadd.f32 %v3351, %v3352
      %v3354 = vrot.slane %v3353, 1
      %v3355 = vadd.f32 %v3353, %v3354
      %v3356 = vld [vmem:[%s5] sm:$0x3]
      %v3357 = vsel %vm329, %v3355, 0.0
      %3358 = vadd.xlane.f32.xlu0 %v3357
      %v3359 = vpop.xlane.xlu0 %3358
      %v3360 = vmul.f32 %v3359, %v360
      %v3361 = vsub.f32 %v3355, %v3360
      %v3362 = vmul.f32 %v3361, %v3361
      %v3363 = vsel %vm329, %v3362, 0.0
      %3364 = vadd.xlane.f32.xlu0 %v3363
      %v3365 = vpop.xlane.xlu0 %3364
      %v3366 = vmul.f32 %v3365, %v360
      %v3367 = vadd.f32 %v3366, 1e-08
      %v3368 = vrsqrt.pop %v3367
      %v3369 = vmul.f32 %v3368, %v3367
      %v3370 = vmul.f32 %v3369, %v3368
      %v3371 = vmul.f32 0.5, %v3370
      %v3372 = vsub.f32 1.5, %v3371
      %v3373 = vmul.f32 %v3368, %v3372
      %vm3374 = vweird.f32 %v3367
      %vm3375 = vweird.f32 %v3368
      %vm3376 = vmor %vm3374, %vm3375
      %v3377 = vsel %vm3376, %v3368, %v3373
      %v3378 = vmul.f32 %v3361, %v3377
      %v3379 = vmul.f32 %v3378, %v3356
      %v3381 = vrot.slane %v3356, 1
      %v3383 = vadd.f32 %v3379, %v3381
      %v3384 = vperm.slane %v3383, 0
      %v3385 = vld [vmem:[%s6] sm:$0xff]
      %v3386 = vld [vmem:[%s6 + $0x8] sm:$0xff]
      %v3387 = vld [vmem:[%s6 + $0x10] sm:$0xff]
      %v3388 = vld [vmem:[%s6 + $0x18] sm:$0xff]
      %v3390 = vsel %vm329, %v3384, 0
      %3392 = vmatpush.msra.mxu0 0.0
      %3393 = vmatpush.msra.mxu0 0.0
      %3394 = vmatpush.msra.mxu0 0.0
      %3395 = vmatpush.msra.mxu0 0.0
      %3396 = vmatpush.msra.mxu0 0.0
      %3397 = vmatpush.msra.mxu0 0.0
      %3398 = vmatpush.msra.mxu0 0.0
      %3399 = vmatpush.msra.mxu0 0.0
      %3400 = vmatpush.msra.mxu0 0.0
      %3401 = vmatpush.msra.mxu0 0.0
      %3402 = vmatpush.msra.mxu0 0.0
      %3403 = vmatpush.msra.mxu0 0.0
      %3404 = vmatpush.msra.mxu0 %v3388
      %3405 = vmatpush.msra.mxu0 %v3387
      %3406 = vmatpush.msra.mxu0 %v3386
      %3407 = vmatpush.msra.mxu0 %v3385
      %3408 = vmatmul.f32.gmra.mxu0 %v3390
      %v3409 = vpop.f32.mrf.mxu0
      %v3410 = vadd.f32 0.0, %v3409
      %3411 = vdwg.mxu0
      %3412 = vst [vmem:[%s278] sm:$0xff] %v3410
      %p3413 = scmp.lt.s32.totalorder %s26, 1
      %s3414 = scalar_select %p3413, %s26, 1
      %s3415 = smul.addr %s3414, 8
      %s3416 = scalar_lea.vmem %s7, %s3415
      // Predicated region
      $region45: #{sasrec_forward.1} parent=43 // pred_check
        %p3417 = pneg %p180
      $region46: #{sasrec_forward.1} parent=43 // pred_check_branch
        %3419 = sbr.rel (%p3417) target = $region48
      $region47: #{sasrec_forward.1} parent=43 // pred_region
        _
      $region48: #{sasrec_forward.1} parent=43 // pred_fallthru
        _
    $region44: #{sasrec_forward.1} parent=5 // pred_fallthru
      _
    %p3420 = scmp.le.s32.totalorder 2, %s21
    // Predicated region
    $region49: #{sasrec_forward.1} parent=5 // pred_check
      %p3421 = pneg %p3420
    $region50: #{sasrec_forward.1} parent=5 // pred_check_branch
      %3423 = sbr.rel (%p3421) target = $region52
    $region51: #{sasrec_forward.1} parent=5 // pred_region
      %s3424 = ssub.s32 %s21, 2
      // Predicated region
      $region53: #{sasrec_forward.1} parent=51 // pred_check
        %p3425 = pneg %p186
      $region54: #{sasrec_forward.1} parent=51 // pred_check_branch
        %3427 = sbr.rel (%p3425) target = $region56
      $region55: #{sasrec_forward.1} parent=51 // pred_region
        %p3428 = scmp.lt.s32.totalorder %s27, 1
        %s3429 = scalar_select %p3428, %s27, 1
        %s3430 = smul.addr %s3429, 8
        %s3431 = scalar_lea.vmem %s7, %s3430
      $region56: #{sasrec_forward.1} parent=51 // pred_fallthru
        _
    $region52: #{sasrec_forward.1} parent=5 // pred_fallthru
      _
  $region6: #{sasrec_forward.1} parent=0 // loop_footer
    %s25 = sadd.s32 1, %s21
  $region7: #{sasrec_forward.1} parent=0 // loop_footer_branch
    %20 = sbr.rel target = $region3
  $region8: #{sasrec_forward.1} parent=0 // loop_exit
    _

</llo_original>
